<compile_context>
chip_gen: v7x
topology: tpu7x:2x2x1
jax: 0.10.0
libtpu: 0.0.40
codegen_flags: <defaults>
</compile_context>

<pallas_src>
import jax
import jax.numpy as jnp
from jax import lax
from jax.experimental import pallas as pl
from jax.experimental.pallas import tpu as pltpu

HIDDEN_SIZE = 128
INPUT_SIZE = 28
NUM_CLASSES = 10
NUM_LAYERS = 2  # hard-coded as two explicit layers in the kernel


def _lstm_kernel(g1_ref, whh1_ref, w2_ref, b2_ref, h2_out_ref):
    """g1_ref:  (S, B, 4H)  precomputed x@wih1 + b1 (time-major)
       whh1_ref:(H, 4H)     layer-1 recurrent weights
       w2_ref:  (2H, 4H)    fused [wih2; whh2]
       b2_ref:  (1, 4H)     layer-2 bias (b_ih + b_hh)
       h2_out_ref: (B, H)   last-timestep top-layer hidden state (lane-dense)."""
    S, B, _ = g1_ref.shape
    H = HIDDEN_SIZE

    # Load weights once; hoist the (1,4H)->(B,4H) bias broadcast out of the loop.
    whh1 = whh1_ref[...]
    w2 = w2_ref[...]
    b2 = jnp.broadcast_to(b2_ref[...], (B, 4 * H))

    def activate(gates, c_prev):
        i_g = jax.nn.sigmoid(gates[:, 0 * H:1 * H])
        f_g = jax.nn.sigmoid(gates[:, 1 * H:2 * H])
        g_g = jnp.tanh(gates[:, 2 * H:3 * H])
        o_g = jax.nn.sigmoid(gates[:, 3 * H:4 * H])
        c_new = f_g * c_prev + i_g * g_g
        h_new = o_g * jnp.tanh(c_new)
        return h_new, c_new

    def step(t, carry):
        h1, c1, h2, c2 = carry
        # Layer 1: input projection was precomputed (includes b1) -> only the
        # recurrent matmul sits on the serial chain.
        gates1 = g1_ref[t] + jnp.dot(h1, whh1, preferred_element_type=jnp.float32)
        h1n, c1n = activate(gates1, c1)
        # Layer 2: single fused matmul, K = 2H = 256.
        x2 = jnp.concatenate([h1n, h2], axis=-1)           # (B, 2H)
        gates2 = jnp.dot(x2, w2, preferred_element_type=jnp.float32) + b2
        h2n, c2n = activate(gates2, c2)
        return (h1n, c1n, h2n, c2n)

    z = jnp.zeros((B, H), jnp.float32)  # ho, co = zeros (PyTorch forward)
    # unroll=True: layer1(t+1) only depends on h1(t)/c1(t)/g1[t+1], so the
    # scheduler can overlap it with layer2(t) (MXU/EUP latency hiding).
    _, _, h2_fin, _ = lax.fori_loop(0, S, step, (z, z, z, z), unroll=True)
    h2_out_ref[...] = h2_fin


@jax.jit
def lstm_model_forward(x, params):
    """x: (B, S, INPUT_SIZE) float32, batch_first like PyTorch."""
    B, S, I = x.shape
    assert I == INPUT_SIZE
    H = HIDDEN_SIZE

    (wih1, whh1, b1, wih2, whh2, b2, wfc, bfc) = params

    # Pad batch to a multiple of 8 (f32 sublane) so gate math fills vregs.
    Bp = max(8, ((B + 7) // 8) * 8)
    if Bp != B:
        x = jnp.pad(x, ((0, Bp - B), (0, 0), (0, 0)))

    # Hoist the layer-1 input projection out of the recurrence: one batched
    # matmul, emitted time-major (S, Bp, 4H), with b1 folded in.
    g1 = jnp.einsum('bsi,ig->sbg', x, wih1) + b1

    # Fuse layer-2's two matmuls: K = 2H = 256.
    w2 = jnp.concatenate([wih2, whh2], axis=0)              # (2H, 4H)

    vmem_full = pl.BlockSpec(memory_space=pltpu.MemorySpace.VMEM)
    # TODO(synk): for very long sequences, chunk S (grid over S-tiles) so the
    # staged (S,B,4H) gates buffer stays within the VMEM limit (v7x: 64 MiB).
    h2 = pl.pallas_call(
        _lstm_kernel,
        out_shape=jax.ShapeDtypeStruct((Bp, H), jnp.float32),
        in_specs=[vmem_full, vmem_full, vmem_full, vmem_full],
        out_specs=vmem_full,
    )(g1, whh1, w2, b2)

    # Tiny (H x NUM_CLASSES) fc on the last timestep, done by XLA on the
    # lane-dense hidden state (avoids a 10-wide masked store in the kernel).
    return h2[:B] @ wfc + bfc


def init_params(key):
    """Deterministic init matching PyTorch nn.LSTM / nn.Linear shapes.

    Weights are pre-transposed to (in_features, 4H) / (H, num_classes) and
    the two LSTM bias vectors per layer are pre-summed (b_ih + b_hh)."""
    H, I, C = HIDDEN_SIZE, INPUT_SIZE, NUM_CLASSES
    ks = jax.random.split(key, 9)
    bound = 1.0 / jnp.sqrt(H)
    u = lambda k, shape: jax.random.uniform(k, shape, jnp.float32, -bound, bound)

    # layer 1: W_ih (4H, I) -> transposed (I, 4H); W_hh (4H, H) -> (H, 4H)
    wih1 = u(ks[0], (I, 4 * H))
    whh1 = u(ks[1], (H, 4 * H))
    b1 = (u(ks[2], (1, 4 * H)) + u(ks[3], (1, 4 * H)))  # b_ih + b_hh
    # layer 2: input is H-dim
    wih2 = u(ks[4], (H, 4 * H))
    whh2 = u(ks[5], (H, 4 * H))
    b2 = (u(ks[6], (1, 4 * H)) + u(ks[7], (1, 4 * H)))
    # fc1: Linear(H, C) -> transposed (H, C), bias (1, C)
    kb = jax.random.split(ks[8], 2)
    bound_fc = 1.0 / jnp.sqrt(H)
    wfc = jax.random.uniform(kb[0], (H, C), jnp.float32, -bound_fc, bound_fc)
    bfc = jax.random.uniform(kb[1], (1, C), jnp.float32, -bound_fc, bound_fc)
    return (wih1, whh1, b1, wih2, whh2, b2, wfc, bfc)


def reference_forward(x, params):
    """Pure-JAX reference mirroring torch.nn.LSTM + Linear semantics."""
    (wih1, whh1, b1, wih2, whh2, b2, wfc, bfc) = params
    B, S, _ = x.shape
    H = HIDDEN_SIZE

    def cell(x_in, h, c, wih, whh, b):
        g = x_in @ wih + h @ whh + b
        i = jax.nn.sigmoid(g[:, 0 * H:1 * H])
        f = jax.nn.sigmoid(g[:, 1 * H:2 * H])
        gg = jnp.tanh(g[:, 2 * H:3 * H])
        o = jax.nn.sigmoid(g[:, 3 * H:4 * H])
        c_new = f * c + i * gg
        h_new = o * jnp.tanh(c_new)
        return h_new, c_new

    h1 = jnp.zeros((B, H)); c1 = jnp.zeros((B, H))
    h2 = jnp.zeros((B, H)); c2 = jnp.zeros((B, H))
    for t in range(S):
        h1, c1 = cell(x[:, t, :], h1, c1, wih1, whh1, b1)
        h2, c2 = cell(h1, h2, c2, wih2, whh2, b2)
    return h2 @ wfc + bfc


if __name__ == "__main__":
    key = jax.random.PRNGKey(0)
    k_x, k_p = jax.random.split(key)

    B, S = 4, 8
    x = jax.random.normal(k_x, (B, S, INPUT_SIZE), dtype=jnp.float32)
    params = init_params(k_p)

    out = lstm_model_forward(x, params)
    out = jax.block_until_ready(out)

    ref = reference_forward(x, params)
    assert out.shape == (B, NUM_CLASSES)
    assert jnp.allclose(out, ref, atol=1e-4, rtol=1e-4), "mismatch vs JAX reference"

    print("KERNEL_OK")
</pallas_src>

<mosaic_0001>
module attributes {stable_mosaic.version = 11 : i64} {
  func.func @_lstm_kernel(%arg0: memref<8x8x512xf32, #tpu.memory_space<vmem>>, %arg1: memref<128x512xf32, #tpu.memory_space<vmem>>, %arg2: memref<256x512xf32, #tpu.memory_space<vmem>>, %arg3: memref<1x512xf32, #tpu.memory_space<vmem>>, %arg4: memref<8x128xf32, #tpu.memory_space<vmem>>) attributes {dimension_semantics = [], scalar_prefetch = 0 : i64, scratch_operands = 0 : i64, tpu.core_type = #tpu.core_type<tc>} {
    %c0 = arith.constant 0 : index
    %c0_0 = arith.constant 0 : index
    %0 = vector.load %arg1[%c0, %c0_0] : memref<128x512xf32, #tpu.memory_space<vmem>>, vector<128x512xf32>
    %c0_1 = arith.constant 0 : index
    %c0_2 = arith.constant 0 : index
    %1 = vector.load %arg2[%c0_1, %c0_2] : memref<256x512xf32, #tpu.memory_space<vmem>>, vector<256x512xf32>
    %c0_3 = arith.constant 0 : index
    %c0_4 = arith.constant 0 : index
    %2 = vector.load %arg3[%c0_3, %c0_4] : memref<1x512xf32, #tpu.memory_space<vmem>>, vector<1x512xf32>
    %3 = vector.shape_cast %2 : vector<1x512xf32> to vector<1x512xf32>
    %4 = vector.broadcast %3 : vector<1x512xf32> to vector<8x512xf32>
    %cst = arith.constant 0.000000e+00 : f32
    %5 = vector.broadcast %cst : f32 to vector<8x128xf32>
    %c0_i32 = arith.constant 0 : i32
    %6 = arith.index_cast %c0_i32 : i32 to index
    %c0_5 = arith.constant 0 : index
    %c0_6 = arith.constant 0 : index
    %7 = vector.load %arg0[%6, %c0_5, %c0_6] : memref<8x8x512xf32, #tpu.memory_space<vmem>>, vector<1x8x512xf32>
    %8 = vector.shape_cast %7 : vector<1x8x512xf32> to vector<8x512xf32>
    %cst_7 = arith.constant dense<0.000000e+00> : vector<8x512xf32>
    %9 = tpu.matmul %5, %0, %cst_7 {dimension_numbers = #tpu.dot_dimension_numbers<[1], [0], [0], [1], [0, 0, 1, 1], [], []>} : vector<8x128xf32>, vector<128x512xf32>, vector<8x512xf32> -> vector<8x512xf32>
    %10 = arith.addf %8, %9 : vector<8x512xf32>
    %11 = vector.extract_strided_slice %10 {offsets = [0, 0], sizes = [8, 128], strides = [1, 1]} : vector<8x512xf32> to vector<8x128xf32>
    %12 = arith.negf %11 : vector<8x128xf32>
    %13 = math.exp %12 : vector<8x128xf32>
    %cst_8 = arith.constant 1.000000e+00 : f32
    %14 = vector.broadcast %cst_8 : f32 to vector<8x128xf32>
    %15 = arith.addf %14, %13 : vector<8x128xf32>
    %16 = arith.divf %14, %15 : vector<8x128xf32>
    %17 = vector.extract_strided_slice %10 {offsets = [0, 128], sizes = [8, 128], strides = [1, 1]} : vector<8x512xf32> to vector<8x128xf32>
    %18 = arith.negf %17 : vector<8x128xf32>
    %19 = math.exp %18 : vector<8x128xf32>
    %cst_9 = arith.constant 1.000000e+00 : f32
    %20 = vector.broadcast %cst_9 : f32 to vector<8x128xf32>
    %21 = arith.addf %20, %19 : vector<8x128xf32>
    %22 = arith.divf %20, %21 : vector<8x128xf32>
    %23 = vector.extract_strided_slice %10 {offsets = [0, 256], sizes = [8, 128], strides = [1, 1]} : vector<8x512xf32> to vector<8x128xf32>
    %24 = math.tanh %23 : vector<8x128xf32>
    %25 = vector.extract_strided_slice %10 {offsets = [0, 384], sizes = [8, 128], strides = [1, 1]} : vector<8x512xf32> to vector<8x128xf32>
    %26 = arith.negf %25 : vector<8x128xf32>
    %27 = math.exp %26 : vector<8x128xf32>
    %cst_10 = arith.constant 1.000000e+00 : f32
    %28 = vector.broadcast %cst_10 : f32 to vector<8x128xf32>
    %29 = arith.addf %28, %27 : vector<8x128xf32>
    %30 = arith.divf %28, %29 : vector<8x128xf32>
    %31 = arith.mulf %22, %5 : vector<8x128xf32>
    %32 = arith.mulf %16, %24 : vector<8x128xf32>
    %33 = arith.addf %31, %32 : vector<8x128xf32>
    %34 = math.tanh %33 : vector<8x128xf32>
    %35 = arith.mulf %30, %34 : vector<8x128xf32>
    %36 = tpu.concatenate %35, %5 in 1 : vector<8x128xf32>, vector<8x128xf32> -> vector<8x256xf32>
    %cst_11 = arith.constant dense<0.000000e+00> : vector<8x512xf32>
    %37 = tpu.matmul %36, %1, %cst_11 {dimension_numbers = #tpu.dot_dimension_numbers<[1], [0], [0], [1], [0, 0, 1, 1], [], []>} : vector<8x256xf32>, vector<256x512xf32>, vector<8x512xf32> -> vector<8x512xf32>
    %38 = arith.addf %37, %4 : vector<8x512xf32>
    %39 = vector.extract_strided_slice %38 {offsets = [0, 0], sizes = [8, 128], strides = [1, 1]} : vector<8x512xf32> to vector<8x128xf32>
    %40 = arith.negf %39 : vector<8x128xf32>
    %41 = math.exp %40 : vector<8x128xf32>
    %cst_12 = arith.constant 1.000000e+00 : f32
    %42 = vector.broadcast %cst_12 : f32 to vector<8x128xf32>
    %43 = arith.addf %42, %41 : vector<8x128xf32>
    %44 = arith.divf %42, %43 : vector<8x128xf32>
    %45 = vector.extract_strided_slice %38 {offsets = [0, 128], sizes = [8, 128], strides = [1, 1]} : vector<8x512xf32> to vector<8x128xf32>
    %46 = arith.negf %45 : vector<8x128xf32>
    %47 = math.exp %46 : vector<8x128xf32>
    %cst_13 = arith.constant 1.000000e+00 : f32
    %48 = vector.broadcast %cst_13 : f32 to vector<8x128xf32>
    %49 = arith.addf %48, %47 : vector<8x128xf32>
    %50 = arith.divf %48, %49 : vector<8x128xf32>
    %51 = vector.extract_strided_slice %38 {offsets = [0, 256], sizes = [8, 128], strides = [1, 1]} : vector<8x512xf32> to vector<8x128xf32>
    %52 = math.tanh %51 : vector<8x128xf32>
    %53 = vector.extract_strided_slice %38 {offsets = [0, 384], sizes = [8, 128], strides = [1, 1]} : vector<8x512xf32> to vector<8x128xf32>
    %54 = arith.negf %53 : vector<8x128xf32>
    %55 = math.exp %54 : vector<8x128xf32>
    %cst_14 = arith.constant 1.000000e+00 : f32
    %56 = vector.broadcast %cst_14 : f32 to vector<8x128xf32>
    %57 = arith.addf %56, %55 : vector<8x128xf32>
    %58 = arith.divf %56, %57 : vector<8x128xf32>
    %59 = arith.mulf %50, %5 : vector<8x128xf32>
    %60 = arith.mulf %44, %52 : vector<8x128xf32>
    %61 = arith.addf %59, %60 : vector<8x128xf32>
    %62 = math.tanh %61 : vector<8x128xf32>
    %63 = arith.mulf %58, %62 : vector<8x128xf32>
    %c1_i32 = arith.constant 1 : i32
    %64 = arith.index_cast %c1_i32 : i32 to index
    %c0_15 = arith.constant 0 : index
    %c0_16 = arith.constant 0 : index
    %65 = vector.load %arg0[%64, %c0_15, %c0_16] : memref<8x8x512xf32, #tpu.memory_space<vmem>>, vector<1x8x512xf32>
    %66 = vector.shape_cast %65 : vector<1x8x512xf32> to vector<8x512xf32>
    %cst_17 = arith.constant dense<0.000000e+00> : vector<8x512xf32>
    %67 = tpu.matmul %35, %0, %cst_17 {dimension_numbers = #tpu.dot_dimension_numbers<[1], [0], [0], [1], [0, 0, 1, 1], [], []>} : vector<8x128xf32>, vector<128x512xf32>, vector<8x512xf32> -> vector<8x512xf32>
    %68 = arith.addf %66, %67 : vector<8x512xf32>
    %69 = vector.extract_strided_slice %68 {offsets = [0, 0], sizes = [8, 128], strides = [1, 1]} : vector<8x512xf32> to vector<8x128xf32>
    %70 = arith.negf %69 : vector<8x128xf32>
    %71 = math.exp %70 : vector<8x128xf32>
    %cst_18 = arith.constant 1.000000e+00 : f32
    %72 = vector.broadcast %cst_18 : f32 to vector<8x128xf32>
    %73 = arith.addf %72, %71 : vector<8x128xf32>
    %74 = arith.divf %72, %73 : vector<8x128xf32>
    %75 = vector.extract_strided_slice %68 {offsets = [0, 128], sizes = [8, 128], strides = [1, 1]} : vector<8x512xf32> to vector<8x128xf32>
    %76 = arith.negf %75 : vector<8x128xf32>
    %77 = math.exp %76 : vector<8x128xf32>
    %cst_19 = arith.constant 1.000000e+00 : f32
    %78 = vector.broadcast %cst_19 : f32 to vector<8x128xf32>
    %79 = arith.addf %78, %77 : vector<8x128xf32>
    %80 = arith.divf %78, %79 : vector<8x128xf32>
    %81 = vector.extract_strided_slice %68 {offsets = [0, 256], sizes = [8, 128], strides = [1, 1]} : vector<8x512xf32> to vector<8x128xf32>
    %82 = math.tanh %81 : vector<8x128xf32>
    %83 = vector.extract_strided_slice %68 {offsets = [0, 384], sizes = [8, 128], strides = [1, 1]} : vector<8x512xf32> to vector<8x128xf32>
    %84 = arith.negf %83 : vector<8x128xf32>
    %85 = math.exp %84 : vector<8x128xf32>
    %cst_20 = arith.constant 1.000000e+00 : f32
    %86 = vector.broadcast %cst_20 : f32 to vector<8x128xf32>
    %87 = arith.addf %86, %85 : vector<8x128xf32>
    %88 = arith.divf %86, %87 : vector<8x128xf32>
    %89 = arith.mulf %80, %33 : vector<8x128xf32>
    %90 = arith.mulf %74, %82 : vector<8x128xf32>
    %91 = arith.addf %89, %90 : vector<8x128xf32>
    %92 = math.tanh %91 : vector<8x128xf32>
    %93 = arith.mulf %88, %92 : vector<8x128xf32>
    %94 = tpu.concatenate %93, %63 in 1 : vector<8x128xf32>, vector<8x128xf32> -> vector<8x256xf32>
    %cst_21 = arith.constant dense<0.000000e+00> : vector<8x512xf32>
    %95 = tpu.matmul %94, %1, %cst_21 {dimension_numbers = #tpu.dot_dimension_numbers<[1], [0], [0], [1], [0, 0, 1, 1], [], []>} : vector<8x256xf32>, vector<256x512xf32>, vector<8x512xf32> -> vector<8x512xf32>
    %96 = arith.addf %95, %4 : vector<8x512xf32>
    %97 = vector.extract_strided_slice %96 {offsets = [0, 0], sizes = [8, 128], strides = [1, 1]} : vector<8x512xf32> to vector<8x128xf32>
    %98 = arith.negf %97 : vector<8x128xf32>
    %99 = math.exp %98 : vector<8x128xf32>
    %cst_22 = arith.constant 1.000000e+00 : f32
    %100 = vector.broadcast %cst_22 : f32 to vector<8x128xf32>
    %101 = arith.addf %100, %99 : vector<8x128xf32>
    %102 = arith.divf %100, %101 : vector<8x128xf32>
    %103 = vector.extract_strided_slice %96 {offsets = [0, 128], sizes = [8, 128], strides = [1, 1]} : vector<8x512xf32> to vector<8x128xf32>
    %104 = arith.negf %103 : vector<8x128xf32>
    %105 = math.exp %104 : vector<8x128xf32>
    %cst_23 = arith.constant 1.000000e+00 : f32
    %106 = vector.broadcast %cst_23 : f32 to vector<8x128xf32>
    %107 = arith.addf %106, %105 : vector<8x128xf32>
    %108 = arith.divf %106, %107 : vector<8x128xf32>
    %109 = vector.extract_strided_slice %96 {offsets = [0, 256], sizes = [8, 128], strides = [1, 1]} : vector<8x512xf32> to vector<8x128xf32>
    %110 = math.tanh %109 : vector<8x128xf32>
    %111 = vector.extract_strided_slice %96 {offsets = [0, 384], sizes = [8, 128], strides = [1, 1]} : vector<8x512xf32> to vector<8x128xf32>
    %112 = arith.negf %111 : vector<8x128xf32>
    %113 = math.exp %112 : vector<8x128xf32>
    %cst_24 = arith.constant 1.000000e+00 : f32
    %114 = vector.broadcast %cst_24 : f32 to vector<8x128xf32>
    %115 = arith.addf %114, %113 : vector<8x128xf32>
    %116 = arith.divf %114, %115 : vector<8x128xf32>
    %117 = arith.mulf %108, %61 : vector<8x128xf32>
    %118 = arith.mulf %102, %110 : vector<8x128xf32>
    %119 = arith.addf %117, %118 : vector<8x128xf32>
    %120 = math.tanh %119 : vector<8x128xf32>
    %121 = arith.mulf %116, %120 : vector<8x128xf32>
    %c2_i32 = arith.constant 2 : i32
    %122 = arith.index_cast %c2_i32 : i32 to index
    %c0_25 = arith.constant 0 : index
    %c0_26 = arith.constant 0 : index
    %123 = vector.load %arg0[%122, %c0_25, %c0_26] : memref<8x8x512xf32, #tpu.memory_space<vmem>>, vector<1x8x512xf32>
    %124 = vector.shape_cast %123 : vector<1x8x512xf32> to vector<8x512xf32>
    %cst_27 = arith.constant dense<0.000000e+00> : vector<8x512xf32>
    %125 = tpu.matmul %93, %0, %cst_27 {dimension_numbers = #tpu.dot_dimension_numbers<[1], [0], [0], [1], [0, 0, 1, 1], [], []>} : vector<8x128xf32>, vector<128x512xf32>, vector<8x512xf32> -> vector<8x512xf32>
    %126 = arith.addf %124, %125 : vector<8x512xf32>
    %127 = vector.extract_strided_slice %126 {offsets = [0, 0], sizes = [8, 128], strides = [1, 1]} : vector<8x512xf32> to vector<8x128xf32>
    %128 = arith.negf %127 : vector<8x128xf32>
    %129 = math.exp %128 : vector<8x128xf32>
    %cst_28 = arith.constant 1.000000e+00 : f32
    %130 = vector.broadcast %cst_28 : f32 to vector<8x128xf32>
    %131 = arith.addf %130, %129 : vector<8x128xf32>
    %132 = arith.divf %130, %131 : vector<8x128xf32>
    %133 = vector.extract_strided_slice %126 {offsets = [0, 128], sizes = [8, 128], strides = [1, 1]} : vector<8x512xf32> to vector<8x128xf32>
    %134 = arith.negf %133 : vector<8x128xf32>
    %135 = math.exp %134 : vector<8x128xf32>
    %cst_29 = arith.constant 1.000000e+00 : f32
    %136 = vector.broadcast %cst_29 : f32 to vector<8x128xf32>
    %137 = arith.addf %136, %135 : vector<8x128xf32>
    %138 = arith.divf %136, %137 : vector<8x128xf32>
    %139 = vector.extract_strided_slice %126 {offsets = [0, 256], sizes = [8, 128], strides = [1, 1]} : vector<8x512xf32> to vector<8x128xf32>
    %140 = math.tanh %139 : vector<8x128xf32>
    %141 = vector.extract_strided_slice %126 {offsets = [0, 384], sizes = [8, 128], strides = [1, 1]} : vector<8x512xf32> to vector<8x128xf32>
    %142 = arith.negf %141 : vector<8x128xf32>
    %143 = math.exp %142 : vector<8x128xf32>
    %cst_30 = arith.constant 1.000000e+00 : f32
    %144 = vector.broadcast %cst_30 : f32 to vector<8x128xf32>
    %145 = arith.addf %144, %143 : vector<8x128xf32>
    %146 = arith.divf %144, %145 : vector<8x128xf32>
    %147 = arith.mulf %138, %91 : vector<8x128xf32>
    %148 = arith.mulf %132, %140 : vector<8x128xf32>
    %149 = arith.addf %147, %148 : vector<8x128xf32>
    %150 = math.tanh %149 : vector<8x128xf32>
    %151 = arith.mulf %146, %150 : vector<8x128xf32>
    %152 = tpu.concatenate %151, %121 in 1 : vector<8x128xf32>, vector<8x128xf32> -> vector<8x256xf32>
    %cst_31 = arith.constant dense<0.000000e+00> : vector<8x512xf32>
    %153 = tpu.matmul %152, %1, %cst_31 {dimension_numbers = #tpu.dot_dimension_numbers<[1], [0], [0], [1], [0, 0, 1, 1], [], []>} : vector<8x256xf32>, vector<256x512xf32>, vector<8x512xf32> -> vector<8x512xf32>
    %154 = arith.addf %153, %4 : vector<8x512xf32>
    %155 = vector.extract_strided_slice %154 {offsets = [0, 0], sizes = [8, 128], strides = [1, 1]} : vector<8x512xf32> to vector<8x128xf32>
    %156 = arith.negf %155 : vector<8x128xf32>
    %157 = math.exp %156 : vector<8x128xf32>
    %cst_32 = arith.constant 1.000000e+00 : f32
    %158 = vector.broadcast %cst_32 : f32 to vector<8x128xf32>
    %159 = arith.addf %158, %157 : vector<8x128xf32>
    %160 = arith.divf %158, %159 : vector<8x128xf32>
    %161 = vector.extract_strided_slice %154 {offsets = [0, 128], sizes = [8, 128], strides = [1, 1]} : vector<8x512xf32> to vector<8x128xf32>
    %162 = arith.negf %161 : vector<8x128xf32>
    %163 = math.exp %162 : vector<8x128xf32>
    %cst_33 = arith.constant 1.000000e+00 : f32
    %164 = vector.broadcast %cst_33 : f32 to vector<8x128xf32>
    %165 = arith.addf %164, %163 : vector<8x128xf32>
    %166 = arith.divf %164, %165 : vector<8x128xf32>
    %167 = vector.extract_strided_slice %154 {offsets = [0, 256], sizes = [8, 128], strides = [1, 1]} : vector<8x512xf32> to vector<8x128xf32>
    %168 = math.tanh %167 : vector<8x128xf32>
    %169 = vector.extract_strided_slice %154 {offsets = [0, 384], sizes = [8, 128], strides = [1, 1]} : vector<8x512xf32> to vector<8x128xf32>
    %170 = arith.negf %169 : vector<8x128xf32>
    %171 = math.exp %170 : vector<8x128xf32>
    %cst_34 = arith.constant 1.000000e+00 : f32
    %172 = vector.broadcast %cst_34 : f32 to vector<8x128xf32>
    %173 = arith.addf %172, %171 : vector<8x128xf32>
    %174 = arith.divf %172, %173 : vector<8x128xf32>
    %175 = arith.mulf %166, %119 : vector<8x128xf32>
    %176 = arith.mulf %160, %168 : vector<8x128xf32>
    %177 = arith.addf %175, %176 : vector<8x128xf32>
    %178 = math.tanh %177 : vector<8x128xf32>
    %179 = arith.mulf %174, %178 : vector<8x128xf32>
    %c3_i32 = arith.constant 3 : i32
    %180 = arith.index_cast %c3_i32 : i32 to index
    %c0_35 = arith.constant 0 : index
    %c0_36 = arith.constant 0 : index
    %181 = vector.load %arg0[%180, %c0_35, %c0_36] : memref<8x8x512xf32, #tpu.memory_space<vmem>>, vector<1x8x512xf32>
    %182 = vector.shape_cast %181 : vector<1x8x512xf32> to vector<8x512xf32>
    %cst_37 = arith.constant dense<0.000000e+00> : vector<8x512xf32>
    %183 = tpu.matmul %151, %0, %cst_37 {dimension_numbers = #tpu.dot_dimension_numbers<[1], [0], [0], [1], [0, 0, 1, 1], [], []>} : vector<8x128xf32>, vector<128x512xf32>, vector<8x512xf32> -> vector<8x512xf32>
    %184 = arith.addf %182, %183 : vector<8x512xf32>
    %185 = vector.extract_strided_slice %184 {offsets = [0, 0], sizes = [8, 128], strides = [1, 1]} : vector<8x512xf32> to vector<8x128xf32>
    %186 = arith.negf %185 : vector<8x128xf32>
    %187 = math.exp %186 : vector<8x128xf32>
    %cst_38 = arith.constant 1.000000e+00 : f32
    %188 = vector.broadcast %cst_38 : f32 to vector<8x128xf32>
    %189 = arith.addf %188, %187 : vector<8x128xf32>
    %190 = arith.divf %188, %189 : vector<8x128xf32>
    %191 = vector.extract_strided_slice %184 {offsets = [0, 128], sizes = [8, 128], strides = [1, 1]} : vector<8x512xf32> to vector<8x128xf32>
    %192 = arith.negf %191 : vector<8x128xf32>
    %193 = math.exp %192 : vector<8x128xf32>
    %cst_39 = arith.constant 1.000000e+00 : f32
    %194 = vector.broadcast %cst_39 : f32 to vector<8x128xf32>
    %195 = arith.addf %194, %193 : vector<8x128xf32>
    %196 = arith.divf %194, %195 : vector<8x128xf32>
    %197 = vector.extract_strided_slice %184 {offsets = [0, 256], sizes = [8, 128], strides = [1, 1]} : vector<8x512xf32> to vector<8x128xf32>
    %198 = math.tanh %197 : vector<8x128xf32>
    %199 = vector.extract_strided_slice %184 {offsets = [0, 384], sizes = [8, 128], strides = [1, 1]} : vector<8x512xf32> to vector<8x128xf32>
    %200 = arith.negf %199 : vector<8x128xf32>
    %201 = math.exp %200 : vector<8x128xf32>
    %cst_40 = arith.constant 1.000000e+00 : f32
    %202 = vector.broadcast %cst_40 : f32 to vector<8x128xf32>
    %203 = arith.addf %202, %201 : vector<8x128xf32>
    %204 = arith.divf %202, %203 : vector<8x128xf32>
    %205 = arith.mulf %196, %149 : vector<8x128xf32>
    %206 = arith.mulf %190, %198 : vector<8x128xf32>
    %207 = arith.addf %205, %206 : vector<8x128xf32>
    %208 = math.tanh %207 : vector<8x128xf32>
    %209 = arith.mulf %204, %208 : vector<8x128xf32>
    %210 = tpu.concatenate %209, %179 in 1 : vector<8x128xf32>, vector<8x128xf32> -> vector<8x256xf32>
    %cst_41 = arith.constant dense<0.000000e+00> : vector<8x512xf32>
    %211 = tpu.matmul %210, %1, %cst_41 {dimension_numbers = #tpu.dot_dimension_numbers<[1], [0], [0], [1], [0, 0, 1, 1], [], []>} : vector<8x256xf32>, vector<256x512xf32>, vector<8x512xf32> -> vector<8x512xf32>
    %212 = arith.addf %211, %4 : vector<8x512xf32>
    %213 = vector.extract_strided_slice %212 {offsets = [0, 0], sizes = [8, 128], strides = [1, 1]} : vector<8x512xf32> to vector<8x128xf32>
    %214 = arith.negf %213 : vector<8x128xf32>
    %215 = math.exp %214 : vector<8x128xf32>
    %cst_42 = arith.constant 1.000000e+00 : f32
    %216 = vector.broadcast %cst_42 : f32 to vector<8x128xf32>
    %217 = arith.addf %216, %215 : vector<8x128xf32>
    %218 = arith.divf %216, %217 : vector<8x128xf32>
    %219 = vector.extract_strided_slice %212 {offsets = [0, 128], sizes = [8, 128], strides = [1, 1]} : vector<8x512xf32> to vector<8x128xf32>
    %220 = arith.negf %219 : vector<8x128xf32>
    %221 = math.exp %220 : vector<8x128xf32>
    %cst_43 = arith.constant 1.000000e+00 : f32
    %222 = vector.broadcast %cst_43 : f32 to vector<8x128xf32>
    %223 = arith.addf %222, %221 : vector<8x128xf32>
    %224 = arith.divf %222, %223 : vector<8x128xf32>
    %225 = vector.extract_strided_slice %212 {offsets = [0, 256], sizes = [8, 128], strides = [1, 1]} : vector<8x512xf32> to vector<8x128xf32>
    %226 = math.tanh %225 : vector<8x128xf32>
    %227 = vector.extract_strided_slice %212 {offsets = [0, 384], sizes = [8, 128], strides = [1, 1]} : vector<8x512xf32> to vector<8x128xf32>
    %228 = arith.negf %227 : vector<8x128xf32>
    %229 = math.exp %228 : vector<8x128xf32>
    %cst_44 = arith.constant 1.000000e+00 : f32
    %230 = vector.broadcast %cst_44 : f32 to vector<8x128xf32>
    %231 = arith.addf %230, %229 : vector<8x128xf32>
    %232 = arith.divf %230, %231 : vector<8x128xf32>
    %233 = arith.mulf %224, %177 : vector<8x128xf32>
    %234 = arith.mulf %218, %226 : vector<8x128xf32>
    %235 = arith.addf %233, %234 : vector<8x128xf32>
    %236 = math.tanh %235 : vector<8x128xf32>
    %237 = arith.mulf %232, %236 : vector<8x128xf32>
    %c4_i32 = arith.constant 4 : i32
    %238 = arith.index_cast %c4_i32 : i32 to index
    %c0_45 = arith.constant 0 : index
    %c0_46 = arith.constant 0 : index
    %239 = vector.load %arg0[%238, %c0_45, %c0_46] : memref<8x8x512xf32, #tpu.memory_space<vmem>>, vector<1x8x512xf32>
    %240 = vector.shape_cast %239 : vector<1x8x512xf32> to vector<8x512xf32>
    %cst_47 = arith.constant dense<0.000000e+00> : vector<8x512xf32>
    %241 = tpu.matmul %209, %0, %cst_47 {dimension_numbers = #tpu.dot_dimension_numbers<[1], [0], [0], [1], [0, 0, 1, 1], [], []>} : vector<8x128xf32>, vector<128x512xf32>, vector<8x512xf32> -> vector<8x512xf32>
    %242 = arith.addf %240, %241 : vector<8x512xf32>
    %243 = vector.extract_strided_slice %242 {offsets = [0, 0], sizes = [8, 128], strides = [1, 1]} : vector<8x512xf32> to vector<8x128xf32>
    %244 = arith.negf %243 : vector<8x128xf32>
    %245 = math.exp %244 : vector<8x128xf32>
    %cst_48 = arith.constant 1.000000e+00 : f32
    %246 = vector.broadcast %cst_48 : f32 to vector<8x128xf32>
    %247 = arith.addf %246, %245 : vector<8x128xf32>
    %248 = arith.divf %246, %247 : vector<8x128xf32>
    %249 = vector.extract_strided_slice %242 {offsets = [0, 128], sizes = [8, 128], strides = [1, 1]} : vector<8x512xf32> to vector<8x128xf32>
    %250 = arith.negf %249 : vector<8x128xf32>
    %251 = math.exp %250 : vector<8x128xf32>
    %cst_49 = arith.constant 1.000000e+00 : f32
    %252 = vector.broadcast %cst_49 : f32 to vector<8x128xf32>
    %253 = arith.addf %252, %251 : vector<8x128xf32>
    %254 = arith.divf %252, %253 : vector<8x128xf32>
    %255 = vector.extract_strided_slice %242 {offsets = [0, 256], sizes = [8, 128], strides = [1, 1]} : vector<8x512xf32> to vector<8x128xf32>
    %256 = math.tanh %255 : vector<8x128xf32>
    %257 = vector.extract_strided_slice %242 {offsets = [0, 384], sizes = [8, 128], strides = [1, 1]} : vector<8x512xf32> to vector<8x128xf32>
    %258 = arith.negf %257 : vector<8x128xf32>
    %259 = math.exp %258 : vector<8x128xf32>
    %cst_50 = arith.constant 1.000000e+00 : f32
    %260 = vector.broadcast %cst_50 : f32 to vector<8x128xf32>
    %261 = arith.addf %260, %259 : vector<8x128xf32>
    %262 = arith.divf %260, %261 : vector<8x128xf32>
    %263 = arith.mulf %254, %207 : vector<8x128xf32>
    %264 = arith.mulf %248, %256 : vector<8x128xf32>
    %265 = arith.addf %263, %264 : vector<8x128xf32>
    %266 = math.tanh %265 : vector<8x128xf32>
    %267 = arith.mulf %262, %266 : vector<8x128xf32>
    %268 = tpu.concatenate %267, %237 in 1 : vector<8x128xf32>, vector<8x128xf32> -> vector<8x256xf32>
    %cst_51 = arith.constant dense<0.000000e+00> : vector<8x512xf32>
    %269 = tpu.matmul %268, %1, %cst_51 {dimension_numbers = #tpu.dot_dimension_numbers<[1], [0], [0], [1], [0, 0, 1, 1], [], []>} : vector<8x256xf32>, vector<256x512xf32>, vector<8x512xf32> -> vector<8x512xf32>
    %270 = arith.addf %269, %4 : vector<8x512xf32>
    %271 = vector.extract_strided_slice %270 {offsets = [0, 0], sizes = [8, 128], strides = [1, 1]} : vector<8x512xf32> to vector<8x128xf32>
    %272 = arith.negf %271 : vector<8x128xf32>
    %273 = math.exp %272 : vector<8x128xf32>
    %cst_52 = arith.constant 1.000000e+00 : f32
    %274 = vector.broadcast %cst_52 : f32 to vector<8x128xf32>
    %275 = arith.addf %274, %273 : vector<8x128xf32>
    %276 = arith.divf %274, %275 : vector<8x128xf32>
    %277 = vector.extract_strided_slice %270 {offsets = [0, 128], sizes = [8, 128], strides = [1, 1]} : vector<8x512xf32> to vector<8x128xf32>
    %278 = arith.negf %277 : vector<8x128xf32>
    %279 = math.exp %278 : vector<8x128xf32>
    %cst_53 = arith.constant 1.000000e+00 : f32
    %280 = vector.broadcast %cst_53 : f32 to vector<8x128xf32>
    %281 = arith.addf %280, %279 : vector<8x128xf32>
    %282 = arith.divf %280, %281 : vector<8x128xf32>
    %283 = vector.extract_strided_slice %270 {offsets = [0, 256], sizes = [8, 128], strides = [1, 1]} : vector<8x512xf32> to vector<8x128xf32>
    %284 = math.tanh %283 : vector<8x128xf32>
    %285 = vector.extract_strided_slice %270 {offsets = [0, 384], sizes = [8, 128], strides = [1, 1]} : vector<8x512xf32> to vector<8x128xf32>
    %286 = arith.negf %285 : vector<8x128xf32>
    %287 = math.exp %286 : vector<8x128xf32>
    %cst_54 = arith.constant 1.000000e+00 : f32
    %288 = vector.broadcast %cst_54 : f32 to vector<8x128xf32>
    %289 = arith.addf %288, %287 : vector<8x128xf32>
    %290 = arith.divf %288, %289 : vector<8x128xf32>
    %291 = arith.mulf %282, %235 : vector<8x128xf32>
    %292 = arith.mulf %276, %284 : vector<8x128xf32>
    %293 = arith.addf %291, %292 : vector<8x128xf32>
    %294 = math.tanh %293 : vector<8x128xf32>
    %295 = arith.mulf %290, %294 : vector<8x128xf32>
    %c5_i32 = arith.constant 5 : i32
    %296 = arith.index_cast %c5_i32 : i32 to index
    %c0_55 = arith.constant 0 : index
    %c0_56 = arith.constant 0 : index
    %297 = vector.load %arg0[%296, %c0_55, %c0_56] : memref<8x8x512xf32, #tpu.memory_space<vmem>>, vector<1x8x512xf32>
    %298 = vector.shape_cast %297 : vector<1x8x512xf32> to vector<8x512xf32>
    %cst_57 = arith.constant dense<0.000000e+00> : vector<8x512xf32>
    %299 = tpu.matmul %267, %0, %cst_57 {dimension_numbers = #tpu.dot_dimension_numbers<[1], [0], [0], [1], [0, 0, 1, 1], [], []>} : vector<8x128xf32>, vector<128x512xf32>, vector<8x512xf32> -> vector<8x512xf32>
    %300 = arith.addf %298, %299 : vector<8x512xf32>
    %301 = vector.extract_strided_slice %300 {offsets = [0, 0], sizes = [8, 128], strides = [1, 1]} : vector<8x512xf32> to vector<8x128xf32>
    %302 = arith.negf %301 : vector<8x128xf32>
    %303 = math.exp %302 : vector<8x128xf32>
    %cst_58 = arith.constant 1.000000e+00 : f32
    %304 = vector.broadcast %cst_58 : f32 to vector<8x128xf32>
    %305 = arith.addf %304, %303 : vector<8x128xf32>
    %306 = arith.divf %304, %305 : vector<8x128xf32>
    %307 = vector.extract_strided_slice %300 {offsets = [0, 128], sizes = [8, 128], strides = [1, 1]} : vector<8x512xf32> to vector<8x128xf32>
    %308 = arith.negf %307 : vector<8x128xf32>
    %309 = math.exp %308 : vector<8x128xf32>
    %cst_59 = arith.constant 1.000000e+00 : f32
    %310 = vector.broadcast %cst_59 : f32 to vector<8x128xf32>
    %311 = arith.addf %310, %309 : vector<8x128xf32>
    %312 = arith.divf %310, %311 : vector<8x128xf32>
    %313 = vector.extract_strided_slice %300 {offsets = [0, 256], sizes = [8, 128], strides = [1, 1]} : vector<8x512xf32> to vector<8x128xf32>
    %314 = math.tanh %313 : vector<8x128xf32>
    %315 = vector.extract_strided_slice %300 {offsets = [0, 384], sizes = [8, 128], strides = [1, 1]} : vector<8x512xf32> to vector<8x128xf32>
    %316 = arith.negf %315 : vector<8x128xf32>
    %317 = math.exp %316 : vector<8x128xf32>
    %cst_60 = arith.constant 1.000000e+00 : f32
    %318 = vector.broadcast %cst_60 : f32 to vector<8x128xf32>
    %319 = arith.addf %318, %317 : vector<8x128xf32>
    %320 = arith.divf %318, %319 : vector<8x128xf32>
    %321 = arith.mulf %312, %265 : vector<8x128xf32>
    %322 = arith.mulf %306, %314 : vector<8x128xf32>
    %323 = arith.addf %321, %322 : vector<8x128xf32>
    %324 = math.tanh %323 : vector<8x128xf32>
    %325 = arith.mulf %320, %324 : vector<8x128xf32>
    %326 = tpu.concatenate %325, %295 in 1 : vector<8x128xf32>, vector<8x128xf32> -> vector<8x256xf32>
    %cst_61 = arith.constant dense<0.000000e+00> : vector<8x512xf32>
    %327 = tpu.matmul %326, %1, %cst_61 {dimension_numbers = #tpu.dot_dimension_numbers<[1], [0], [0], [1], [0, 0, 1, 1], [], []>} : vector<8x256xf32>, vector<256x512xf32>, vector<8x512xf32> -> vector<8x512xf32>
    %328 = arith.addf %327, %4 : vector<8x512xf32>
    %329 = vector.extract_strided_slice %328 {offsets = [0, 0], sizes = [8, 128], strides = [1, 1]} : vector<8x512xf32> to vector<8x128xf32>
    %330 = arith.negf %329 : vector<8x128xf32>
    %331 = math.exp %330 : vector<8x128xf32>
    %cst_62 = arith.constant 1.000000e+00 : f32
    %332 = vector.broadcast %cst_62 : f32 to vector<8x128xf32>
    %333 = arith.addf %332, %331 : vector<8x128xf32>
    %334 = arith.divf %332, %333 : vector<8x128xf32>
    %335 = vector.extract_strided_slice %328 {offsets = [0, 128], sizes = [8, 128], strides = [1, 1]} : vector<8x512xf32> to vector<8x128xf32>
    %336 = arith.negf %335 : vector<8x128xf32>
    %337 = math.exp %336 : vector<8x128xf32>
    %cst_63 = arith.constant 1.000000e+00 : f32
    %338 = vector.broadcast %cst_63 : f32 to vector<8x128xf32>
    %339 = arith.addf %338, %337 : vector<8x128xf32>
    %340 = arith.divf %338, %339 : vector<8x128xf32>
    %341 = vector.extract_strided_slice %328 {offsets = [0, 256], sizes = [8, 128], strides = [1, 1]} : vector<8x512xf32> to vector<8x128xf32>
    %342 = math.tanh %341 : vector<8x128xf32>
    %343 = vector.extract_strided_slice %328 {offsets = [0, 384], sizes = [8, 128], strides = [1, 1]} : vector<8x512xf32> to vector<8x128xf32>
    %344 = arith.negf %343 : vector<8x128xf32>
    %345 = math.exp %344 : vector<8x128xf32>
    %cst_64 = arith.constant 1.000000e+00 : f32
    %346 = vector.broadcast %cst_64 : f32 to vector<8x128xf32>
    %347 = arith.addf %346, %345 : vector<8x128xf32>
    %348 = arith.divf %346, %347 : vector<8x128xf32>
    %349 = arith.mulf %340, %293 : vector<8x128xf32>
    %350 = arith.mulf %334, %342 : vector<8x128xf32>
    %351 = arith.addf %349, %350 : vector<8x128xf32>
    %352 = math.tanh %351 : vector<8x128xf32>
    %353 = arith.mulf %348, %352 : vector<8x128xf32>
    %c6_i32 = arith.constant 6 : i32
    %354 = arith.index_cast %c6_i32 : i32 to index
    %c0_65 = arith.constant 0 : index
    %c0_66 = arith.constant 0 : index
    %355 = vector.load %arg0[%354, %c0_65, %c0_66] : memref<8x8x512xf32, #tpu.memory_space<vmem>>, vector<1x8x512xf32>
    %356 = vector.shape_cast %355 : vector<1x8x512xf32> to vector<8x512xf32>
    %cst_67 = arith.constant dense<0.000000e+00> : vector<8x512xf32>
    %357 = tpu.matmul %325, %0, %cst_67 {dimension_numbers = #tpu.dot_dimension_numbers<[1], [0], [0], [1], [0, 0, 1, 1], [], []>} : vector<8x128xf32>, vector<128x512xf32>, vector<8x512xf32> -> vector<8x512xf32>
    %358 = arith.addf %356, %357 : vector<8x512xf32>
    %359 = vector.extract_strided_slice %358 {offsets = [0, 0], sizes = [8, 128], strides = [1, 1]} : vector<8x512xf32> to vector<8x128xf32>
    %360 = arith.negf %359 : vector<8x128xf32>
    %361 = math.exp %360 : vector<8x128xf32>
    %cst_68 = arith.constant 1.000000e+00 : f32
    %362 = vector.broadcast %cst_68 : f32 to vector<8x128xf32>
    %363 = arith.addf %362, %361 : vector<8x128xf32>
    %364 = arith.divf %362, %363 : vector<8x128xf32>
    %365 = vector.extract_strided_slice %358 {offsets = [0, 128], sizes = [8, 128], strides = [1, 1]} : vector<8x512xf32> to vector<8x128xf32>
    %366 = arith.negf %365 : vector<8x128xf32>
    %367 = math.exp %366 : vector<8x128xf32>
    %cst_69 = arith.constant 1.000000e+00 : f32
    %368 = vector.broadcast %cst_69 : f32 to vector<8x128xf32>
    %369 = arith.addf %368, %367 : vector<8x128xf32>
    %370 = arith.divf %368, %369 : vector<8x128xf32>
    %371 = vector.extract_strided_slice %358 {offsets = [0, 256], sizes = [8, 128], strides = [1, 1]} : vector<8x512xf32> to vector<8x128xf32>
    %372 = math.tanh %371 : vector<8x128xf32>
    %373 = vector.extract_strided_slice %358 {offsets = [0, 384], sizes = [8, 128], strides = [1, 1]} : vector<8x512xf32> to vector<8x128xf32>
    %374 = arith.negf %373 : vector<8x128xf32>
    %375 = math.exp %374 : vector<8x128xf32>
    %cst_70 = arith.constant 1.000000e+00 : f32
    %376 = vector.broadcast %cst_70 : f32 to vector<8x128xf32>
    %377 = arith.addf %376, %375 : vector<8x128xf32>
    %378 = arith.divf %376, %377 : vector<8x128xf32>
    %379 = arith.mulf %370, %323 : vector<8x128xf32>
    %380 = arith.mulf %364, %372 : vector<8x128xf32>
    %381 = arith.addf %379, %380 : vector<8x128xf32>
    %382 = math.tanh %381 : vector<8x128xf32>
    %383 = arith.mulf %378, %382 : vector<8x128xf32>
    %384 = tpu.concatenate %383, %353 in 1 : vector<8x128xf32>, vector<8x128xf32> -> vector<8x256xf32>
    %cst_71 = arith.constant dense<0.000000e+00> : vector<8x512xf32>
    %385 = tpu.matmul %384, %1, %cst_71 {dimension_numbers = #tpu.dot_dimension_numbers<[1], [0], [0], [1], [0, 0, 1, 1], [], []>} : vector<8x256xf32>, vector<256x512xf32>, vector<8x512xf32> -> vector<8x512xf32>
    %386 = arith.addf %385, %4 : vector<8x512xf32>
    %387 = vector.extract_strided_slice %386 {offsets = [0, 0], sizes = [8, 128], strides = [1, 1]} : vector<8x512xf32> to vector<8x128xf32>
    %388 = arith.negf %387 : vector<8x128xf32>
    %389 = math.exp %388 : vector<8x128xf32>
    %cst_72 = arith.constant 1.000000e+00 : f32
    %390 = vector.broadcast %cst_72 : f32 to vector<8x128xf32>
    %391 = arith.addf %390, %389 : vector<8x128xf32>
    %392 = arith.divf %390, %391 : vector<8x128xf32>
    %393 = vector.extract_strided_slice %386 {offsets = [0, 128], sizes = [8, 128], strides = [1, 1]} : vector<8x512xf32> to vector<8x128xf32>
    %394 = arith.negf %393 : vector<8x128xf32>
    %395 = math.exp %394 : vector<8x128xf32>
    %cst_73 = arith.constant 1.000000e+00 : f32
    %396 = vector.broadcast %cst_73 : f32 to vector<8x128xf32>
    %397 = arith.addf %396, %395 : vector<8x128xf32>
    %398 = arith.divf %396, %397 : vector<8x128xf32>
    %399 = vector.extract_strided_slice %386 {offsets = [0, 256], sizes = [8, 128], strides = [1, 1]} : vector<8x512xf32> to vector<8x128xf32>
    %400 = math.tanh %399 : vector<8x128xf32>
    %401 = vector.extract_strided_slice %386 {offsets = [0, 384], sizes = [8, 128], strides = [1, 1]} : vector<8x512xf32> to vector<8x128xf32>
    %402 = arith.negf %401 : vector<8x128xf32>
    %403 = math.exp %402 : vector<8x128xf32>
    %cst_74 = arith.constant 1.000000e+00 : f32
    %404 = vector.broadcast %cst_74 : f32 to vector<8x128xf32>
    %405 = arith.addf %404, %403 : vector<8x128xf32>
    %406 = arith.divf %404, %405 : vector<8x128xf32>
    %407 = arith.mulf %398, %351 : vector<8x128xf32>
    %408 = arith.mulf %392, %400 : vector<8x128xf32>
    %409 = arith.addf %407, %408 : vector<8x128xf32>
    %410 = math.tanh %409 : vector<8x128xf32>
    %411 = arith.mulf %406, %410 : vector<8x128xf32>
    %c7_i32 = arith.constant 7 : i32
    %412 = arith.index_cast %c7_i32 : i32 to index
    %c0_75 = arith.constant 0 : index
    %c0_76 = arith.constant 0 : index
    %413 = vector.load %arg0[%412, %c0_75, %c0_76] : memref<8x8x512xf32, #tpu.memory_space<vmem>>, vector<1x8x512xf32>
    %414 = vector.shape_cast %413 : vector<1x8x512xf32> to vector<8x512xf32>
    %cst_77 = arith.constant dense<0.000000e+00> : vector<8x512xf32>
    %415 = tpu.matmul %383, %0, %cst_77 {dimension_numbers = #tpu.dot_dimension_numbers<[1], [0], [0], [1], [0, 0, 1, 1], [], []>} : vector<8x128xf32>, vector<128x512xf32>, vector<8x512xf32> -> vector<8x512xf32>
    %416 = arith.addf %414, %415 : vector<8x512xf32>
    %417 = vector.extract_strided_slice %416 {offsets = [0, 0], sizes = [8, 128], strides = [1, 1]} : vector<8x512xf32> to vector<8x128xf32>
    %418 = arith.negf %417 : vector<8x128xf32>
    %419 = math.exp %418 : vector<8x128xf32>
    %cst_78 = arith.constant 1.000000e+00 : f32
    %420 = vector.broadcast %cst_78 : f32 to vector<8x128xf32>
    %421 = arith.addf %420, %419 : vector<8x128xf32>
    %422 = arith.divf %420, %421 : vector<8x128xf32>
    %423 = vector.extract_strided_slice %416 {offsets = [0, 128], sizes = [8, 128], strides = [1, 1]} : vector<8x512xf32> to vector<8x128xf32>
    %424 = arith.negf %423 : vector<8x128xf32>
    %425 = math.exp %424 : vector<8x128xf32>
    %cst_79 = arith.constant 1.000000e+00 : f32
    %426 = vector.broadcast %cst_79 : f32 to vector<8x128xf32>
    %427 = arith.addf %426, %425 : vector<8x128xf32>
    %428 = arith.divf %426, %427 : vector<8x128xf32>
    %429 = vector.extract_strided_slice %416 {offsets = [0, 256], sizes = [8, 128], strides = [1, 1]} : vector<8x512xf32> to vector<8x128xf32>
    %430 = math.tanh %429 : vector<8x128xf32>
    %431 = vector.extract_strided_slice %416 {offsets = [0, 384], sizes = [8, 128], strides = [1, 1]} : vector<8x512xf32> to vector<8x128xf32>
    %432 = arith.negf %431 : vector<8x128xf32>
    %433 = math.exp %432 : vector<8x128xf32>
    %cst_80 = arith.constant 1.000000e+00 : f32
    %434 = vector.broadcast %cst_80 : f32 to vector<8x128xf32>
    %435 = arith.addf %434, %433 : vector<8x128xf32>
    %436 = arith.divf %434, %435 : vector<8x128xf32>
    %437 = arith.mulf %428, %381 : vector<8x128xf32>
    %438 = arith.mulf %422, %430 : vector<8x128xf32>
    %439 = arith.addf %437, %438 : vector<8x128xf32>
    %440 = math.tanh %439 : vector<8x128xf32>
    %441 = arith.mulf %436, %440 : vector<8x128xf32>
    %442 = tpu.concatenate %441, %411 in 1 : vector<8x128xf32>, vector<8x128xf32> -> vector<8x256xf32>
    %cst_81 = arith.constant dense<0.000000e+00> : vector<8x512xf32>
    %443 = tpu.matmul %442, %1, %cst_81 {dimension_numbers = #tpu.dot_dimension_numbers<[1], [0], [0], [1], [0, 0, 1, 1], [], []>} : vector<8x256xf32>, vector<256x512xf32>, vector<8x512xf32> -> vector<8x512xf32>
    %444 = arith.addf %443, %4 : vector<8x512xf32>
    %445 = vector.extract_strided_slice %444 {offsets = [0, 0], sizes = [8, 128], strides = [1, 1]} : vector<8x512xf32> to vector<8x128xf32>
    %446 = arith.negf %445 : vector<8x128xf32>
    %447 = math.exp %446 : vector<8x128xf32>
    %cst_82 = arith.constant 1.000000e+00 : f32
    %448 = vector.broadcast %cst_82 : f32 to vector<8x128xf32>
    %449 = arith.addf %448, %447 : vector<8x128xf32>
    %450 = arith.divf %448, %449 : vector<8x128xf32>
    %451 = vector.extract_strided_slice %444 {offsets = [0, 128], sizes = [8, 128], strides = [1, 1]} : vector<8x512xf32> to vector<8x128xf32>
    %452 = arith.negf %451 : vector<8x128xf32>
    %453 = math.exp %452 : vector<8x128xf32>
    %cst_83 = arith.constant 1.000000e+00 : f32
    %454 = vector.broadcast %cst_83 : f32 to vector<8x128xf32>
    %455 = arith.addf %454, %453 : vector<8x128xf32>
    %456 = arith.divf %454, %455 : vector<8x128xf32>
    %457 = vector.extract_strided_slice %444 {offsets = [0, 256], sizes = [8, 128], strides = [1, 1]} : vector<8x512xf32> to vector<8x128xf32>
    %458 = math.tanh %457 : vector<8x128xf32>
    %459 = vector.extract_strided_slice %444 {offsets = [0, 384], sizes = [8, 128], strides = [1, 1]} : vector<8x512xf32> to vector<8x128xf32>
    %460 = arith.negf %459 : vector<8x128xf32>
    %461 = math.exp %460 : vector<8x128xf32>
    %cst_84 = arith.constant 1.000000e+00 : f32
    %462 = vector.broadcast %cst_84 : f32 to vector<8x128xf32>
    %463 = arith.addf %462, %461 : vector<8x128xf32>
    %464 = arith.divf %462, %463 : vector<8x128xf32>
    %465 = arith.mulf %456, %409 : vector<8x128xf32>
    %466 = arith.mulf %450, %458 : vector<8x128xf32>
    %467 = arith.addf %465, %466 : vector<8x128xf32>
    %468 = math.tanh %467 : vector<8x128xf32>
    %469 = arith.mulf %464, %468 : vector<8x128xf32>
    %c8_i32 = arith.constant 8 : i32
    %c0_85 = arith.constant 0 : index
    %c0_86 = arith.constant 0 : index
    %470 = vector.load %arg4[%c0_85, %c0_86] : memref<8x128xf32, #tpu.memory_space<vmem>>, vector<8x128xf32>
    tpu.vector_store %arg4[%c0_85, %c0_86], %469 {strides = array<i32>} : memref<8x128xf32, #tpu.memory_space<vmem>>, vector<8x128xf32>,
    return
  }
}

</mosaic_0001>

<llo_original>
// kernel: lstm_model_forward.1
$region0: #{lstm_model_forward.1}
  #allocation0 [shape = 'u32[]', space=smem, size = 0x4, offset = 0x4, fixed_abs, tag = 'smem constant byte address 0x4 - core index']
  #allocation1 [shape = 'u32[144,128]{1,0:T(1,128)}', space=vmem, size = 0x12000, scoped, tag = 'internal scratch']
  %s0 = inlined_call_operand.vmem [shape: f32[8,8,512], index: 0, kind: input, shape index: {}]
  %s1 = inlined_call_operand.vmem [shape: f32[128,512], index: 1, kind: input, shape index: {}]
  %s2 = inlined_call_operand.vmem [shape: f32[256,512], index: 2, kind: input, shape index: {}]
  %s3 = inlined_call_operand.vmem [shape: f32[1,512], index: 3, kind: input, shape index: {}]
  %s4 = inlined_call_operand.vmem [shape: f32[8,128], index: 4, kind: output, shape index: {}]
  %s5 = sld [smem:[#allocation0]]
  $region26: #{lstm_model_forward.1} parent=0
    _
  %s7 = ssub.s32 1, %s5
  %s8 = scalar_select 0, %s7, %s5
  // Predicated region
  $region2: #{lstm_model_forward.1} parent=0 // pred_check
    _
  $region3: #{lstm_model_forward.1} parent=0 // pred_check_branch
    %10 = sbr.rel (0) target = $region5
  $region4: #{lstm_model_forward.1} parent=0 // pred_region
    _
  $region5: #{lstm_model_forward.1} parent=0 // pred_fallthru
    _
  // Predicated region
  $region6: #{lstm_model_forward.1} parent=0 // pred_check
    _
  $region7: #{lstm_model_forward.1} parent=0 // pred_check_branch
    %12 = sbr.rel (0) target = $region9
  $region8: #{lstm_model_forward.1} parent=0 // pred_region
    _
  $region9: #{lstm_model_forward.1} parent=0 // pred_fallthru
    _
  // Predicated region
  $region10: #{lstm_model_forward.1} parent=0 // pred_check
    _
  $region11: #{lstm_model_forward.1} parent=0 // pred_check_branch
    %14 = sbr.rel (0) target = $region13
  $region12: #{lstm_model_forward.1} parent=0 // pred_region
    _
  $region13: #{lstm_model_forward.1} parent=0 // pred_fallthru
    _
  // Predicated region
  $region14: #{lstm_model_forward.1} parent=0 // pred_check
    _
  $region15: #{lstm_model_forward.1} parent=0 // pred_check_branch
    %16 = sbr.rel (0) target = $region17
  $region16: #{lstm_model_forward.1} parent=0 // pred_region
    _
  $region17: #{lstm_model_forward.1} parent=0 // pred_fallthru
    _
  %v17 = vld [vmem:[%s1] sm:$0xff]
  %v18 = vld [vmem:[%s1 + $0x8] sm:$0xff]
  %v19 = vld [vmem:[%s1 + $0x10] sm:$0xff]
  %v20 = vld [vmem:[%s1 + $0x18] sm:$0xff]
  %v21 = vld [vmem:[%s1 + $0x20] sm:$0xff]
  %v22 = vld [vmem:[%s1 + $0x28] sm:$0xff]
  %v23 = vld [vmem:[%s1 + $0x30] sm:$0xff]
  %v24 = vld [vmem:[%s1 + $0x38] sm:$0xff]
  %v25 = vld [vmem:[%s1 + $0x40] sm:$0xff]
  %v26 = vld [vmem:[%s1 + $0x48] sm:$0xff]
  %v27 = vld [vmem:[%s1 + $0x50] sm:$0xff]
  %v28 = vld [vmem:[%s1 + $0x58] sm:$0xff]
  %v29 = vld [vmem:[%s1 + $0x60] sm:$0xff]
  %v30 = vld [vmem:[%s1 + $0x68] sm:$0xff]
  %v31 = vld [vmem:[%s1 + $0x70] sm:$0xff]
  %v32 = vld [vmem:[%s1 + $0x78] sm:$0xff]
  %v33 = vld [vmem:[%s1 + $0x80] sm:$0xff]
  %v34 = vld [vmem:[%s1 + $0x88] sm:$0xff]
  %v35 = vld [vmem:[%s1 + $0x90] sm:$0xff]
  %v36 = vld [vmem:[%s1 + $0x98] sm:$0xff]
  %v37 = vld [vmem:[%s1 + $0xa0] sm:$0xff]
  %v38 = vld [vmem:[%s1 + $0xa8] sm:$0xff]
  %v39 = vld [vmem:[%s1 + $0xb0] sm:$0xff]
  %v40 = vld [vmem:[%s1 + $0xb8] sm:$0xff]
  %v41 = vld [vmem:[%s1 + $0xc0] sm:$0xff]
  %v42 = vld [vmem:[%s1 + $0xc8] sm:$0xff]
  %v43 = vld [vmem:[%s1 + $0xd0] sm:$0xff]
  %v44 = vld [vmem:[%s1 + $0xd8] sm:$0xff]
  %v45 = vld [vmem:[%s1 + $0xe0] sm:$0xff]
  %v46 = vld [vmem:[%s1 + $0xe8] sm:$0xff]
  %v47 = vld [vmem:[%s1 + $0xf0] sm:$0xff]
  %v48 = vld [vmem:[%s1 + $0xf8] sm:$0xff]
  %v49 = vld [vmem:[%s1 + $0x100] sm:$0xff]
  %v50 = vld [vmem:[%s1 + $0x108] sm:$0xff]
  %v51 = vld [vmem:[%s1 + $0x110] sm:$0xff]
  %v52 = vld [vmem:[%s1 + $0x118] sm:$0xff]
  %v53 = vld [vmem:[%s1 + $0x120] sm:$0xff]
  %v54 = vld [vmem:[%s1 + $0x128] sm:$0xff]
  %v55 = vld [vmem:[%s1 + $0x130] sm:$0xff]
  %v56 = vld [vmem:[%s1 + $0x138] sm:$0xff]
  %v57 = vld [vmem:[%s1 + $0x140] sm:$0xff]
  %v58 = vld [vmem:[%s1 + $0x148] sm:$0xff]
  %v59 = vld [vmem:[%s1 + $0x150] sm:$0xff]
  %v60 = vld [vmem:[%s1 + $0x158] sm:$0xff]
  %v61 = vld [vmem:[%s1 + $0x160] sm:$0xff]
  %v62 = vld [vmem:[%s1 + $0x168] sm:$0xff]
  %v63 = vld [vmem:[%s1 + $0x170] sm:$0xff]
  %v64 = vld [vmem:[%s1 + $0x178] sm:$0xff]
  %v65 = vld [vmem:[%s1 + $0x180] sm:$0xff]
  %v66 = vld [vmem:[%s1 + $0x188] sm:$0xff]
  %v67 = vld [vmem:[%s1 + $0x190] sm:$0xff]
  %v68 = vld [vmem:[%s1 + $0x198] sm:$0xff]
  %v69 = vld [vmem:[%s1 + $0x1a0] sm:$0xff]
  %v70 = vld [vmem:[%s1 + $0x1a8] sm:$0xff]
  %v71 = vld [vmem:[%s1 + $0x1b0] sm:$0xff]
  %v72 = vld [vmem:[%s1 + $0x1b8] sm:$0xff]
  %v73 = vld [vmem:[%s1 + $0x1c0] sm:$0xff]
  %v74 = vld [vmem:[%s1 + $0x1c8] sm:$0xff]
  %v75 = vld [vmem:[%s1 + $0x1d0] sm:$0xff]
  %v76 = vld [vmem:[%s1 + $0x1d8] sm:$0xff]
  %v77 = vld [vmem:[%s1 + $0x1e0] sm:$0xff]
  %v78 = vld [vmem:[%s1 + $0x1e8] sm:$0xff]
  %v79 = vld [vmem:[%s1 + $0x1f0] sm:$0xff]
  %v80 = vld [vmem:[%s1 + $0x1f8] sm:$0xff]
  %v81 = vld [vmem:[%s2] sm:$0xff]
  %v82 = vld [vmem:[%s2 + $0x8] sm:$0xff]
  %v83 = vld [vmem:[%s2 + $0x10] sm:$0xff]
  %v84 = vld [vmem:[%s2 + $0x18] sm:$0xff]
  %v85 = vld [vmem:[%s2 + $0x20] sm:$0xff]
  %v86 = vld [vmem:[%s2 + $0x28] sm:$0xff]
  %v87 = vld [vmem:[%s2 + $0x30] sm:$0xff]
  %v88 = vld [vmem:[%s2 + $0x38] sm:$0xff]
  %v89 = vld [vmem:[%s2 + $0x40] sm:$0xff]
  %v90 = vld [vmem:[%s2 + $0x48] sm:$0xff]
  %v91 = vld [vmem:[%s2 + $0x50] sm:$0xff]
  %v92 = vld [vmem:[%s2 + $0x58] sm:$0xff]
  %v93 = vld [vmem:[%s2 + $0x60] sm:$0xff]
  %v94 = vld [vmem:[%s2 + $0x68] sm:$0xff]
  %v95 = vld [vmem:[%s2 + $0x70] sm:$0xff]
  %v96 = vld [vmem:[%s2 + $0x78] sm:$0xff]
  %v97 = vld [vmem:[%s2 + $0x80] sm:$0xff]
  %v98 = vld [vmem:[%s2 + $0x88] sm:$0xff]
  %v99 = vld [vmem:[%s2 + $0x90] sm:$0xff]
  %v100 = vld [vmem:[%s2 + $0x98] sm:$0xff]
  %v101 = vld [vmem:[%s2 + $0xa0] sm:$0xff]
  %v102 = vld [vmem:[%s2 + $0xa8] sm:$0xff]
  %v103 = vld [vmem:[%s2 + $0xb0] sm:$0xff]
  %v104 = vld [vmem:[%s2 + $0xb8] sm:$0xff]
  %v105 = vld [vmem:[%s2 + $0xc0] sm:$0xff]
  %v106 = vld [vmem:[%s2 + $0xc8] sm:$0xff]
  %v107 = vld [vmem:[%s2 + $0xd0] sm:$0xff]
  %v108 = vld [vmem:[%s2 + $0xd8] sm:$0xff]
  %v109 = vld [vmem:[%s2 + $0xe0] sm:$0xff]
  %v110 = vld [vmem:[%s2 + $0xe8] sm:$0xff]
  %v111 = vld [vmem:[%s2 + $0xf0] sm:$0xff]
  %v112 = vld [vmem:[%s2 + $0xf8] sm:$0xff]
  %v113 = vld [vmem:[%s2 + $0x100] sm:$0xff]
  %v114 = vld [vmem:[%s2 + $0x108] sm:$0xff]
  %v115 = vld [vmem:[%s2 + $0x110] sm:$0xff]
  %v116 = vld [vmem:[%s2 + $0x118] sm:$0xff]
  %v117 = vld [vmem:[%s2 + $0x120] sm:$0xff]
  %v118 = vld [vmem:[%s2 + $0x128] sm:$0xff]
  %v119 = vld [vmem:[%s2 + $0x130] sm:$0xff]
  %v120 = vld [vmem:[%s2 + $0x138] sm:$0xff]
  %v121 = vld [vmem:[%s2 + $0x140] sm:$0xff]
  %v122 = vld [vmem:[%s2 + $0x148] sm:$0xff]
  %v123 = vld [vmem:[%s2 + $0x150] sm:$0xff]
  %v124 = vld [vmem:[%s2 + $0x158] sm:$0xff]
  %v125 = vld [vmem:[%s2 + $0x160] sm:$0xff]
  %v126 = vld [vmem:[%s2 + $0x168] sm:$0xff]
  %v127 = vld [vmem:[%s2 + $0x170] sm:$0xff]
  %v128 = vld [vmem:[%s2 + $0x178] sm:$0xff]
  %v129 = vld [vmem:[%s2 + $0x180] sm:$0xff]
  %v130 = vld [vmem:[%s2 + $0x188] sm:$0xff]
  %v131 = vld [vmem:[%s2 + $0x190] sm:$0xff]
  %v132 = vld [vmem:[%s2 + $0x198] sm:$0xff]
  %v133 = vld [vmem:[%s2 + $0x1a0] sm:$0xff]
  %v134 = vld [vmem:[%s2 + $0x1a8] sm:$0xff]
  %v135 = vld [vmem:[%s2 + $0x1b0] sm:$0xff]
  %v136 = vld [vmem:[%s2 + $0x1b8] sm:$0xff]
  %v137 = vld [vmem:[%s2 + $0x1c0] sm:$0xff]
  %v138 = vld [vmem:[%s2 + $0x1c8] sm:$0xff]
  %v139 = vld [vmem:[%s2 + $0x1d0] sm:$0xff]
  %v140 = vld [vmem:[%s2 + $0x1d8] sm:$0xff]
  %v141 = vld [vmem:[%s2 + $0x1e0] sm:$0xff]
  %v142 = vld [vmem:[%s2 + $0x1e8] sm:$0xff]
  %v143 = vld [vmem:[%s2 + $0x1f0] sm:$0xff]
  %v144 = vld [vmem:[%s2 + $0x1f8] sm:$0xff]
  %v145 = vld [vmem:[%s2 + $0x200] sm:$0xff]
  %v146 = vld [vmem:[%s2 + $0x208] sm:$0xff]
  %v147 = vld [vmem:[%s2 + $0x210] sm:$0xff]
  %v148 = vld [vmem:[%s2 + $0x218] sm:$0xff]
  %v149 = vld [vmem:[%s2 + $0x220] sm:$0xff]
  %v150 = vld [vmem:[%s2 + $0x228] sm:$0xff]
  %v151 = vld [vmem:[%s2 + $0x230] sm:$0xff]
  %v152 = vld [vmem:[%s2 + $0x238] sm:$0xff]
  %v153 = vld [vmem:[%s2 + $0x240] sm:$0xff]
  %v154 = vld [vmem:[%s2 + $0x248] sm:$0xff]
  %v155 = vld [vmem:[%s2 + $0x250] sm:$0xff]
  %v156 = vld [vmem:[%s2 + $0x258] sm:$0xff]
  %v157 = vld [vmem:[%s2 + $0x260] sm:$0xff]
  %v158 = vld [vmem:[%s2 + $0x268] sm:$0xff]
  %v159 = vld [vmem:[%s2 + $0x270] sm:$0xff]
  %v160 = vld [vmem:[%s2 + $0x278] sm:$0xff]
  %v161 = vld [vmem:[%s2 + $0x280] sm:$0xff]
  %v162 = vld [vmem:[%s2 + $0x288] sm:$0xff]
  %v163 = vld [vmem:[%s2 + $0x290] sm:$0xff]
  %v164 = vld [vmem:[%s2 + $0x298] sm:$0xff]
  %v165 = vld [vmem:[%s2 + $0x2a0] sm:$0xff]
  %v166 = vld [vmem:[%s2 + $0x2a8] sm:$0xff]
  %v167 = vld [vmem:[%s2 + $0x2b0] sm:$0xff]
  %v168 = vld [vmem:[%s2 + $0x2b8] sm:$0xff]
  %v169 = vld [vmem:[%s2 + $0x2c0] sm:$0xff]
  %v170 = vld [vmem:[%s2 + $0x2c8] sm:$0xff]
  %v171 = vld [vmem:[%s2 + $0x2d0] sm:$0xff]
  %v172 = vld [vmem:[%s2 + $0x2d8] sm:$0xff]
  %v173 = vld [vmem:[%s2 + $0x2e0] sm:$0xff]
  %v174 = vld [vmem:[%s2 + $0x2e8] sm:$0xff]
  %v175 = vld [vmem:[%s2 + $0x2f0] sm:$0xff]
  %v176 = vld [vmem:[%s2 + $0x2f8] sm:$0xff]
  %v177 = vld [vmem:[%s2 + $0x300] sm:$0xff]
  %v178 = vld [vmem:[%s2 + $0x308] sm:$0xff]
  %v179 = vld [vmem:[%s2 + $0x310] sm:$0xff]
  %v180 = vld [vmem:[%s2 + $0x318] sm:$0xff]
  %v181 = vld [vmem:[%s2 + $0x320] sm:$0xff]
  %v182 = vld [vmem:[%s2 + $0x328] sm:$0xff]
  %v183 = vld [vmem:[%s2 + $0x330] sm:$0xff]
  %v184 = vld [vmem:[%s2 + $0x338] sm:$0xff]
  %v185 = vld [vmem:[%s2 + $0x340] sm:$0xff]
  %v186 = vld [vmem:[%s2 + $0x348] sm:$0xff]
  %v187 = vld [vmem:[%s2 + $0x350] sm:$0xff]
  %v188 = vld [vmem:[%s2 + $0x358] sm:$0xff]
  %v189 = vld [vmem:[%s2 + $0x360] sm:$0xff]
  %v190 = vld [vmem:[%s2 + $0x368] sm:$0xff]
  %v191 = vld [vmem:[%s2 + $0x370] sm:$0xff]
  %v192 = vld [vmem:[%s2 + $0x378] sm:$0xff]
  %v193 = vld [vmem:[%s2 + $0x380] sm:$0xff]
  %v194 = vld [vmem:[%s2 + $0x388] sm:$0xff]
  %v195 = vld [vmem:[%s2 + $0x390] sm:$0xff]
  %v196 = vld [vmem:[%s2 + $0x398] sm:$0xff]
  %v197 = vld [vmem:[%s2 + $0x3a0] sm:$0xff]
  %v198 = vld [vmem:[%s2 + $0x3a8] sm:$0xff]
  %v199 = vld [vmem:[%s2 + $0x3b0] sm:$0xff]
  %v200 = vld [vmem:[%s2 + $0x3b8] sm:$0xff]
  %v201 = vld [vmem:[%s2 + $0x3c0] sm:$0xff]
  %v202 = vld [vmem:[%s2 + $0x3c8] sm:$0xff]
  %v203 = vld [vmem:[%s2 + $0x3d0] sm:$0xff]
  %v204 = vld [vmem:[%s2 + $0x3d8] sm:$0xff]
  %v205 = vld [vmem:[%s2 + $0x3e0] sm:$0xff]
  %v206 = vld [vmem:[%s2 + $0x3e8] sm:$0xff]
  %v207 = vld [vmem:[%s2 + $0x3f0] sm:$0xff]
  %v208 = vld [vmem:[%s2 + $0x3f8] sm:$0xff]
  %v209 = vld [vmem:[%s3] sm:$0xf]
  %v211 = vlaneseq
  %v212 = vshrl.u32 %v211, 7
  %v213 = vsub.s32 0, %v212
  %v214 = vrot.slane %v209, %v213
  %v215 = vlaneseq
  %v216 = vshrl.u32 %v215, 7
  %v217 = vsub.s32 1, %v216
  %v218 = vrot.slane %v209, %v217
  %v219 = vlaneseq
  %v220 = vshrl.u32 %v219, 7
  %v221 = vsub.s32 2, %v220
  %v222 = vrot.slane %v209, %v221
  %v223 = vlaneseq
  %v224 = vshrl.u32 %v223, 7
  %v225 = vsub.s32 3, %v224
  %v226 = vrot.slane %v209, %v225
  %v231 = vld [vmem:[%s0] sm:$0xff]
  %v232 = vld [vmem:[%s0 + $0x8] sm:$0xff]
  %v233 = vld [vmem:[%s0 + $0x10] sm:$0xff]
  %v234 = vld [vmem:[%s0 + $0x18] sm:$0xff]
  %235 = vmatprep.subr.mxu0 %v18
  %236 = vmatpush1.msra.mxu0 %v17
  %237 = vmatprep.subr.mxu0 %v22
  %238 = vmatpush1.msra.mxu0 %v21
  %239 = vmatprep.subr.mxu0 %v26
  %240 = vmatpush1.msra.mxu0 %v25
  %241 = vmatprep.subr.mxu0 %v30
  %242 = vmatpush1.msra.mxu0 %v29
  %243 = vmatprep.subr.mxu0 %v34
  %244 = vmatpush1.msra.mxu0 %v33
  %245 = vmatprep.subr.mxu0 %v38
  %246 = vmatpush1.msra.mxu0 %v37
  %247 = vmatprep.subr.mxu0 %v42
  %248 = vmatpush1.msra.mxu0 %v41
  %249 = vmatprep.subr.mxu0 %v46
  %250 = vmatpush1.msra.mxu0 %v45
  %251 = vmatprep.subr.mxu0 %v50
  %252 = vmatpush1.msra.mxu0 %v49
  %253 = vmatprep.subr.mxu0 %v54
  %254 = vmatpush1.msra.mxu0 %v53
  %255 = vmatprep.subr.mxu0 %v58
  %256 = vmatpush1.msra.mxu0 %v57
  %257 = vmatprep.subr.mxu0 %v62
  %258 = vmatpush1.msra.mxu0 %v61
  %259 = vmatprep.subr.mxu0 %v66
  %260 = vmatpush1.msra.mxu0 %v65
  %261 = vmatprep.subr.mxu0 %v70
  %262 = vmatpush1.msra.mxu0 %v69
  %263 = vmatprep.subr.mxu0 %v74
  %264 = vmatpush1.msra.mxu0 %v73
  %265 = vmatprep.subr.mxu0 %v78
  %266 = vmatpush1.msra.mxu0 %v77
  %267 = vmatprep.subr.mxu0 0.0
  %268 = vmatpush1.msra.mxu0 0.0
  %269 = vmatprep.subr.mxu0 0.0
  %270 = vmatpush1.msra.mxu0 0.0
  %271 = vmatprep.subr.mxu0 0.0
  %272 = vmatpush1.msra.mxu0 0.0
  %273 = vmatprep.subr.mxu0 0.0
  %274 = vmatpush1.msra.mxu0 0.0
  %275 = vmatprep.subr.mxu0 0.0
  %276 = vmatpush1.msra.mxu0 0.0
  %277 = vmatprep.subr.mxu0 0.0
  %278 = vmatpush1.msra.mxu0 0.0
  %279 = vmatprep.subr.mxu0 0.0
  %280 = vmatpush1.msra.mxu0 0.0
  %281 = vmatprep.subr.mxu0 0.0
  %282 = vmatpush1.msra.mxu0 0.0
  %283 = vmatprep.subr.mxu0 0.0
  %284 = vmatpush1.msra.mxu0 0.0
  %285 = vmatprep.subr.mxu0 0.0
  %286 = vmatpush1.msra.mxu0 0.0
  %287 = vmatprep.subr.mxu0 0.0
  %288 = vmatpush1.msra.mxu0 0.0
  %289 = vmatprep.subr.mxu0 0.0
  %290 = vmatpush1.msra.mxu0 0.0
  %291 = vmatprep.subr.mxu0 0.0
  %292 = vmatpush1.msra.mxu0 0.0
  %293 = vmatprep.subr.mxu0 0.0
  %294 = vmatpush1.msra.mxu0 0.0
  %295 = vmatprep.subr.mxu0 0.0
  %296 = vmatpush1.msra.mxu0 0.0
  %297 = vmatprep.subr.mxu0 0.0
  %298 = vmatpush1.msra.mxu0 0.0
  %299 = vmatprep.mubr.f32.mxu0 0.0
  %300 = vmatmul.mubr.f32.gmra.mrb[0].mxu0 0.0
  %v301 = vpop.f32.mrb[0].mxu0
  %v302 = vadd.f32 0.0, %v301
  %v303 = vpop.f32.mrb[0].mxu0
  %v304 = vadd.f32 0.0, %v303
  %305 = vdwg.mxu0
  %306 = vmatprep.subr.mxu0 %v20
  %307 = vmatpush1.msra.mxu0 %v19
  %308 = vmatprep.subr.mxu0 %v24
  %309 = vmatpush1.msra.mxu0 %v23
  %310 = vmatprep.subr.mxu0 %v28
  %311 = vmatpush1.msra.mxu0 %v27
  %312 = vmatprep.subr.mxu0 %v32
  %313 = vmatpush1.msra.mxu0 %v31
  %314 = vmatprep.subr.mxu0 %v36
  %315 = vmatpush1.msra.mxu0 %v35
  %316 = vmatprep.subr.mxu0 %v40
  %317 = vmatpush1.msra.mxu0 %v39
  %318 = vmatprep.subr.mxu0 %v44
  %319 = vmatpush1.msra.mxu0 %v43
  %320 = vmatprep.subr.mxu0 %v48
  %321 = vmatpush1.msra.mxu0 %v47
  %322 = vmatprep.subr.mxu0 %v52
  %323 = vmatpush1.msra.mxu0 %v51
  %324 = vmatprep.subr.mxu0 %v56
  %325 = vmatpush1.msra.mxu0 %v55
  %326 = vmatprep.subr.mxu0 %v60
  %327 = vmatpush1.msra.mxu0 %v59
  %328 = vmatprep.subr.mxu0 %v64
  %329 = vmatpush1.msra.mxu0 %v63
  %330 = vmatprep.subr.mxu0 %v68
  %331 = vmatpush1.msra.mxu0 %v67
  %332 = vmatprep.subr.mxu0 %v72
  %333 = vmatpush1.msra.mxu0 %v71
  %334 = vmatprep.subr.mxu0 %v76
  %335 = vmatpush1.msra.mxu0 %v75
  %336 = vmatprep.subr.mxu0 %v80
  %337 = vmatpush1.msra.mxu0 %v79
  %338 = vmatprep.subr.mxu0 0.0
  %339 = vmatpush1.msra.mxu0 0.0
  %340 = vmatprep.subr.mxu0 0.0
  %341 = vmatpush1.msra.mxu0 0.0
  %342 = vmatprep.subr.mxu0 0.0
  %343 = vmatpush1.msra.mxu0 0.0
  %344 = vmatprep.subr.mxu0 0.0
  %345 = vmatpush1.msra.mxu0 0.0
  %346 = vmatprep.subr.mxu0 0.0
  %347 = vmatpush1.msra.mxu0 0.0
  %348 = vmatprep.subr.mxu0 0.0
  %349 = vmatpush1.msra.mxu0 0.0
  %350 = vmatprep.subr.mxu0 0.0
  %351 = vmatpush1.msra.mxu0 0.0
  %352 = vmatprep.subr.mxu0 0.0
  %353 = vmatpush1.msra.mxu0 0.0
  %354 = vmatprep.subr.mxu0 0.0
  %355 = vmatpush1.msra.mxu0 0.0
  %356 = vmatprep.subr.mxu0 0.0
  %357 = vmatpush1.msra.mxu0 0.0
  %358 = vmatprep.subr.mxu0 0.0
  %359 = vmatpush1.msra.mxu0 0.0
  %360 = vmatprep.subr.mxu0 0.0
  %361 = vmatpush1.msra.mxu0 0.0
  %362 = vmatprep.subr.mxu0 0.0
  %363 = vmatpush1.msra.mxu0 0.0
  %364 = vmatprep.subr.mxu0 0.0
  %365 = vmatpush1.msra.mxu0 0.0
  %366 = vmatprep.subr.mxu0 0.0
  %367 = vmatpush1.msra.mxu0 0.0
  %368 = vmatprep.subr.mxu0 0.0
  %369 = vmatpush1.msra.mxu0 0.0
  %370 = vmatprep.mubr.f32.mxu0 0.0
  %371 = vmatmul.mubr.f32.gmra.mrb[0].mxu0 0.0
  %v372 = vpop.f32.mrb[0].mxu0
  %v373 = vadd.f32 0.0, %v372
  %v374 = vpop.f32.mrb[0].mxu0
  %v375 = vadd.f32 0.0, %v374
  %376 = vdwg.mxu0
  %v377 = vadd.f32 %v231, %v302
  %v378 = vadd.f32 %v232, %v304
  %v379 = vadd.f32 %v233, %v373
  %v380 = vadd.f32 %v234, %v375
  %v381 = vxor.u32 %v377, 2147483648
  %v382 = vmul.f32 %v381, 1.442695
  %v383 = vpow.pop %v382
  %v384 = vadd.f32 %v383, 1.0
  %v385 = vrcp.pop %v384
  %v386 = vmul.f32 1.0, %v385
  %v387 = vxor.u32 %v378, 2147483648
  %v388 = vmul.f32 %v387, 1.442695
  %v389 = vpow.pop %v388
  %v390 = vadd.f32 %v389, 1.0
  %v391 = vrcp.pop %v390
  %v392 = vmul.f32 1.0, %v391
  %v393 = vtanh.pop %v379
  %v394 = vxor.u32 %v380, 2147483648
  %v395 = vmul.f32 %v394, 1.442695
  %v396 = vpow.pop %v395
  %v397 = vadd.f32 %v396, 1.0
  %v398 = vrcp.pop %v397
  %v399 = vmul.f32 1.0, %v398
  %v400 = vmul.f32 %v392, 0.0
  %v401 = vmul.f32 %v386, %v393
  %v402 = vadd.f32 %v400, %v401
  %v403 = vtanh.pop %v402
  %v404 = vmul.f32 %v399, %v403
  %405 = vmatprep.subr.mxu0 %v82
  %406 = vmatpush1.msra.mxu0 %v81
  %407 = vmatprep.subr.mxu0 %v86
  %408 = vmatpush1.msra.mxu0 %v85
  %409 = vmatprep.subr.mxu0 %v90
  %410 = vmatpush1.msra.mxu0 %v89
  %411 = vmatprep.subr.mxu0 %v94
  %412 = vmatpush1.msra.mxu0 %v93
  %413 = vmatprep.subr.mxu0 %v98
  %414 = vmatpush1.msra.mxu0 %v97
  %415 = vmatprep.subr.mxu0 %v102
  %416 = vmatpush1.msra.mxu0 %v101
  %417 = vmatprep.subr.mxu0 %v106
  %418 = vmatpush1.msra.mxu0 %v105
  %419 = vmatprep.subr.mxu0 %v110
  %420 = vmatpush1.msra.mxu0 %v109
  %421 = vmatprep.subr.mxu0 %v114
  %422 = vmatpush1.msra.mxu0 %v113
  %423 = vmatprep.subr.mxu0 %v118
  %424 = vmatpush1.msra.mxu0 %v117
  %425 = vmatprep.subr.mxu0 %v122
  %426 = vmatpush1.msra.mxu0 %v121
  %427 = vmatprep.subr.mxu0 %v126
  %428 = vmatpush1.msra.mxu0 %v125
  %429 = vmatprep.subr.mxu0 %v130
  %430 = vmatpush1.msra.mxu0 %v129
  %431 = vmatprep.subr.mxu0 %v134
  %432 = vmatpush1.msra.mxu0 %v133
  %433 = vmatprep.subr.mxu0 %v138
  %434 = vmatpush1.msra.mxu0 %v137
  %435 = vmatprep.subr.mxu0 %v142
  %436 = vmatpush1.msra.mxu0 %v141
  %437 = vmatprep.subr.mxu0 %v146
  %438 = vmatpush1.msra.mxu0 %v145
  %439 = vmatprep.subr.mxu0 %v150
  %440 = vmatpush1.msra.mxu0 %v149
  %441 = vmatprep.subr.mxu0 %v154
  %442 = vmatpush1.msra.mxu0 %v153
  %443 = vmatprep.subr.mxu0 %v158
  %444 = vmatpush1.msra.mxu0 %v157
  %445 = vmatprep.subr.mxu0 %v162
  %446 = vmatpush1.msra.mxu0 %v161
  %447 = vmatprep.subr.mxu0 %v166
  %448 = vmatpush1.msra.mxu0 %v165
  %449 = vmatprep.subr.mxu0 %v170
  %450 = vmatpush1.msra.mxu0 %v169
  %451 = vmatprep.subr.mxu0 %v174
  %452 = vmatpush1.msra.mxu0 %v173
  %453 = vmatprep.subr.mxu0 %v178
  %454 = vmatpush1.msra.mxu0 %v177
  %455 = vmatprep.subr.mxu0 %v182
  %456 = vmatpush1.msra.mxu0 %v181
  %457 = vmatprep.subr.mxu0 %v186
  %458 = vmatpush1.msra.mxu0 %v185
  %459 = vmatprep.subr.mxu0 %v190
  %460 = vmatpush1.msra.mxu0 %v189
  %461 = vmatprep.subr.mxu0 %v194
  %462 = vmatpush1.msra.mxu0 %v193
  %463 = vmatprep.subr.mxu0 %v198
  %464 = vmatpush1.msra.mxu0 %v197
  %465 = vmatprep.subr.mxu0 %v202
  %466 = vmatpush1.msra.mxu0 %v201
  %467 = vmatprep.subr.mxu0 %v206
  %468 = vmatpush1.msra.mxu0 %v205
  %469 = vmatprep.mubr.f32.mxu0 0.0
  %470 = vmatmul.mubr.f32.gmra.mrb[0].mxu0 %v404
  %v471 = vpop.f32.mrb[0].mxu0
  %v472 = vadd.f32 %v214, %v471
  %v473 = vpop.f32.mrb[0].mxu0
  %v474 = vadd.f32 %v218, %v473
  %475 = vdwg.mxu0
  %476 = vmatprep.subr.mxu0 %v84
  %477 = vmatpush1.msra.mxu0 %v83
  %478 = vmatprep.subr.mxu0 %v88
  %479 = vmatpush1.msra.mxu0 %v87
  %480 = vmatprep.subr.mxu0 %v92
  %481 = vmatpush1.msra.mxu0 %v91
  %482 = vmatprep.subr.mxu0 %v96
  %483 = vmatpush1.msra.mxu0 %v95
  %484 = vmatprep.subr.mxu0 %v100
  %485 = vmatpush1.msra.mxu0 %v99
  %486 = vmatprep.subr.mxu0 %v104
  %487 = vmatpush1.msra.mxu0 %v103
  %488 = vmatprep.subr.mxu0 %v108
  %489 = vmatpush1.msra.mxu0 %v107
  %490 = vmatprep.subr.mxu0 %v112
  %491 = vmatpush1.msra.mxu0 %v111
  %492 = vmatprep.subr.mxu0 %v116
  %493 = vmatpush1.msra.mxu0 %v115
  %494 = vmatprep.subr.mxu0 %v120
  %495 = vmatpush1.msra.mxu0 %v119
  %496 = vmatprep.subr.mxu0 %v124
  %497 = vmatpush1.msra.mxu0 %v123
  %498 = vmatprep.subr.mxu0 %v128
  %499 = vmatpush1.msra.mxu0 %v127
  %500 = vmatprep.subr.mxu0 %v132
  %501 = vmatpush1.msra.mxu0 %v131
  %502 = vmatprep.subr.mxu0 %v136
  %503 = vmatpush1.msra.mxu0 %v135
  %504 = vmatprep.subr.mxu0 %v140
  %505 = vmatpush1.msra.mxu0 %v139
  %506 = vmatprep.subr.mxu0 %v144
  %507 = vmatpush1.msra.mxu0 %v143
  %508 = vmatprep.subr.mxu0 %v148
  %509 = vmatpush1.msra.mxu0 %v147
  %510 = vmatprep.subr.mxu0 %v152
  %511 = vmatpush1.msra.mxu0 %v151
  %512 = vmatprep.subr.mxu0 %v156
  %513 = vmatpush1.msra.mxu0 %v155
  %514 = vmatprep.subr.mxu0 %v160
  %515 = vmatpush1.msra.mxu0 %v159
  %516 = vmatprep.subr.mxu0 %v164
  %517 = vmatpush1.msra.mxu0 %v163
  %518 = vmatprep.subr.mxu0 %v168
  %519 = vmatpush1.msra.mxu0 %v167
  %520 = vmatprep.subr.mxu0 %v172
  %521 = vmatpush1.msra.mxu0 %v171
  %522 = vmatprep.subr.mxu0 %v176
  %523 = vmatpush1.msra.mxu0 %v175
  %524 = vmatprep.subr.mxu0 %v180
  %525 = vmatpush1.msra.mxu0 %v179
  %526 = vmatprep.subr.mxu0 %v184
  %527 = vmatpush1.msra.mxu0 %v183
  %528 = vmatprep.subr.mxu0 %v188
  %529 = vmatpush1.msra.mxu0 %v187
  %530 = vmatprep.subr.mxu0 %v192
  %531 = vmatpush1.msra.mxu0 %v191
  %532 = vmatprep.subr.mxu0 %v196
  %533 = vmatpush1.msra.mxu0 %v195
  %534 = vmatprep.subr.mxu0 %v200
  %535 = vmatpush1.msra.mxu0 %v199
  %536 = vmatprep.subr.mxu0 %v204
  %537 = vmatpush1.msra.mxu0 %v203
  %538 = vmatprep.subr.mxu0 %v208
  %539 = vmatpush1.msra.mxu0 %v207
  %540 = vmatprep.mubr.f32.mxu0 0.0
  %541 = vmatmul.mubr.f32.gmra.mrb[0].mxu0 %v404
  %v542 = vpop.f32.mrb[0].mxu0
  %v543 = vadd.f32 %v222, %v542
  %v544 = vpop.f32.mrb[0].mxu0
  %v545 = vadd.f32 %v226, %v544
  %546 = vdwg.mxu0
  %v547 = vxor.u32 %v472, 2147483648
  %v548 = vmul.f32 %v547, 1.442695
  %v549 = vpow.pop %v548
  %v550 = vadd.f32 %v549, 1.0
  %v551 = vrcp.pop %v550
  %v552 = vmul.f32 1.0, %v551
  %v553 = vxor.u32 %v474, 2147483648
  %v554 = vmul.f32 %v553, 1.442695
  %v555 = vpow.pop %v554
  %v556 = vadd.f32 %v555, 1.0
  %v557 = vrcp.pop %v556
  %v558 = vmul.f32 1.0, %v557
  %v559 = vtanh.pop %v543
  %v560 = vxor.u32 %v545, 2147483648
  %v561 = vmul.f32 %v560, 1.442695
  %v562 = vpow.pop %v561
  %v563 = vadd.f32 %v562, 1.0
  %v564 = vrcp.pop %v563
  %v565 = vmul.f32 1.0, %v564
  %v566 = vmul.f32 %v558, 0.0
  %v567 = vmul.f32 %v552, %v559
  %v568 = vadd.f32 %v566, %v567
  %v569 = vtanh.pop %v568
  %v570 = vmul.f32 %v565, %v569
  %s571 = scalar_lea.vmem %s0, 32
  %v572 = vld [vmem:[%s571] sm:$0xff]
  %v573 = vld [vmem:[%s571 + $0x8] sm:$0xff]
  %v574 = vld [vmem:[%s571 + $0x10] sm:$0xff]
  %v575 = vld [vmem:[%s571 + $0x18] sm:$0xff]
  %576 = vmatprep.subr.mxu0 %v18
  %577 = vmatpush1.msra.mxu0 %v17
  %578 = vmatprep.subr.mxu0 %v22
  %579 = vmatpush1.msra.mxu0 %v21
  %580 = vmatprep.subr.mxu0 %v26
  %581 = vmatpush1.msra.mxu0 %v25
  %582 = vmatprep.subr.mxu0 %v30
  %583 = vmatpush1.msra.mxu0 %v29
  %584 = vmatprep.subr.mxu0 %v34
  %585 = vmatpush1.msra.mxu0 %v33
  %586 = vmatprep.subr.mxu0 %v38
  %587 = vmatpush1.msra.mxu0 %v37
  %588 = vmatprep.subr.mxu0 %v42
  %589 = vmatpush1.msra.mxu0 %v41
  %590 = vmatprep.subr.mxu0 %v46
  %591 = vmatpush1.msra.mxu0 %v45
  %592 = vmatprep.subr.mxu0 %v50
  %593 = vmatpush1.msra.mxu0 %v49
  %594 = vmatprep.subr.mxu0 %v54
  %595 = vmatpush1.msra.mxu0 %v53
  %596 = vmatprep.subr.mxu0 %v58
  %597 = vmatpush1.msra.mxu0 %v57
  %598 = vmatprep.subr.mxu0 %v62
  %599 = vmatpush1.msra.mxu0 %v61
  %600 = vmatprep.subr.mxu0 %v66
  %601 = vmatpush1.msra.mxu0 %v65
  %602 = vmatprep.subr.mxu0 %v70
  %603 = vmatpush1.msra.mxu0 %v69
  %604 = vmatprep.subr.mxu0 %v74
  %605 = vmatpush1.msra.mxu0 %v73
  %606 = vmatprep.subr.mxu0 %v78
  %607 = vmatpush1.msra.mxu0 %v77
  %608 = vmatprep.subr.mxu0 0.0
  %609 = vmatpush1.msra.mxu0 0.0
  %610 = vmatprep.subr.mxu0 0.0
  %611 = vmatpush1.msra.mxu0 0.0
  %612 = vmatprep.subr.mxu0 0.0
  %613 = vmatpush1.msra.mxu0 0.0
  %614 = vmatprep.subr.mxu0 0.0
  %615 = vmatpush1.msra.mxu0 0.0
  %616 = vmatprep.subr.mxu0 0.0
  %617 = vmatpush1.msra.mxu0 0.0
  %618 = vmatprep.subr.mxu0 0.0
  %619 = vmatpush1.msra.mxu0 0.0
  %620 = vmatprep.subr.mxu0 0.0
  %621 = vmatpush1.msra.mxu0 0.0
  %622 = vmatprep.subr.mxu0 0.0
  %623 = vmatpush1.msra.mxu0 0.0
  %624 = vmatprep.subr.mxu0 0.0
  %625 = vmatpush1.msra.mxu0 0.0
  %626 = vmatprep.subr.mxu0 0.0
  %627 = vmatpush1.msra.mxu0 0.0
  %628 = vmatprep.subr.mxu0 0.0
  %629 = vmatpush1.msra.mxu0 0.0
  %630 = vmatprep.subr.mxu0 0.0
  %631 = vmatpush1.msra.mxu0 0.0
  %632 = vmatprep.subr.mxu0 0.0
  %633 = vmatpush1.msra.mxu0 0.0
  %634 = vmatprep.subr.mxu0 0.0
  %635 = vmatpush1.msra.mxu0 0.0
  %636 = vmatprep.subr.mxu0 0.0
  %637 = vmatpush1.msra.mxu0 0.0
  %638 = vmatprep.subr.mxu0 0.0
  %639 = vmatpush1.msra.mxu0 0.0
  %640 = vmatprep.mubr.f32.mxu0 0.0
  %641 = vmatmul.mubr.f32.gmra.mrb[0].mxu0 %v404
  %v642 = vpop.f32.mrb[0].mxu0
  %v643 = vadd.f32 0.0, %v642
  %v644 = vpop.f32.mrb[0].mxu0
  %v645 = vadd.f32 0.0, %v644
  %646 = vdwg.mxu0
  %647 = vmatprep.subr.mxu0 %v20
  %648 = vmatpush1.msra.mxu0 %v19
  %649 = vmatprep.subr.mxu0 %v24
  %650 = vmatpush1.msra.mxu0 %v23
  %651 = vmatprep.subr.mxu0 %v28
  %652 = vmatpush1.msra.mxu0 %v27
  %653 = vmatprep.subr.mxu0 %v32
  %654 = vmatpush1.msra.mxu0 %v31
  %655 = vmatprep.subr.mxu0 %v36
  %656 = vmatpush1.msra.mxu0 %v35
  %657 = vmatprep.subr.mxu0 %v40
  %658 = vmatpush1.msra.mxu0 %v39
  %659 = vmatprep.subr.mxu0 %v44
  %660 = vmatpush1.msra.mxu0 %v43
  %661 = vmatprep.subr.mxu0 %v48
  %662 = vmatpush1.msra.mxu0 %v47
  %663 = vmatprep.subr.mxu0 %v52
  %664 = vmatpush1.msra.mxu0 %v51
  %665 = vmatprep.subr.mxu0 %v56
  %666 = vmatpush1.msra.mxu0 %v55
  %667 = vmatprep.subr.mxu0 %v60
  %668 = vmatpush1.msra.mxu0 %v59
  %669 = vmatprep.subr.mxu0 %v64
  %670 = vmatpush1.msra.mxu0 %v63
  %671 = vmatprep.subr.mxu0 %v68
  %672 = vmatpush1.msra.mxu0 %v67
  %673 = vmatprep.subr.mxu0 %v72
  %674 = vmatpush1.msra.mxu0 %v71
  %675 = vmatprep.subr.mxu0 %v76
  %676 = vmatpush1.msra.mxu0 %v75
  %677 = vmatprep.subr.mxu0 %v80
  %678 = vmatpush1.msra.mxu0 %v79
  %679 = vmatprep.subr.mxu0 0.0
  %680 = vmatpush1.msra.mxu0 0.0
  %681 = vmatprep.subr.mxu0 0.0
  %682 = vmatpush1.msra.mxu0 0.0
  %683 = vmatprep.subr.mxu0 0.0
  %684 = vmatpush1.msra.mxu0 0.0
  %685 = vmatprep.subr.mxu0 0.0
  %686 = vmatpush1.msra.mxu0 0.0
  %687 = vmatprep.subr.mxu0 0.0
  %688 = vmatpush1.msra.mxu0 0.0
  %689 = vmatprep.subr.mxu0 0.0
  %690 = vmatpush1.msra.mxu0 0.0
  %691 = vmatprep.subr.mxu0 0.0
  %692 = vmatpush1.msra.mxu0 0.0
  %693 = vmatprep.subr.mxu0 0.0
  %694 = vmatpush1.msra.mxu0 0.0
  %695 = vmatprep.subr.mxu0 0.0
  %696 = vmatpush1.msra.mxu0 0.0
  %697 = vmatprep.subr.mxu0 0.0
  %698 = vmatpush1.msra.mxu0 0.0
  %699 = vmatprep.subr.mxu0 0.0
  %700 = vmatpush1.msra.mxu0 0.0
  %701 = vmatprep.subr.mxu0 0.0
  %702 = vmatpush1.msra.mxu0 0.0
  %703 = vmatprep.subr.mxu0 0.0
  %704 = vmatpush1.msra.mxu0 0.0
  %705 = vmatprep.subr.mxu0 0.0
  %706 = vmatpush1.msra.mxu0 0.0
  %707 = vmatprep.subr.mxu0 0.0
  %708 = vmatpush1.msra.mxu0 0.0
  %709 = vmatprep.subr.mxu0 0.0
  %710 = vmatpush1.msra.mxu0 0.0
  %711 = vmatprep.mubr.f32.mxu0 0.0
  %712 = vmatmul.mubr.f32.gmra.mrb[0].mxu0 %v404
  %v713 = vpop.f32.mrb[0].mxu0
  %v714 = vadd.f32 0.0, %v713
  %v715 = vpop.f32.mrb[0].mxu0
  %v716 = vadd.f32 0.0, %v715
  %717 = vdwg.mxu0
  %v718 = vadd.f32 %v572, %v643
  %v719 = vadd.f32 %v573, %v645
  %v720 = vadd.f32 %v574, %v714
  %v721 = vadd.f32 %v575, %v716
  %v722 = vxor.u32 %v718, 2147483648
  %v723 = vmul.f32 %v722, 1.442695
  %v724 = vpow.pop %v723
  %v725 = vadd.f32 %v724, 1.0
  %v726 = vrcp.pop %v725
  %v727 = vmul.f32 1.0, %v726
  %v728 = vxor.u32 %v719, 2147483648
  %v729 = vmul.f32 %v728, 1.442695
  %v730 = vpow.pop %v729
  %v731 = vadd.f32 %v730, 1.0
  %v732 = vrcp.pop %v731
  %v733 = vmul.f32 1.0, %v732
  %v734 = vtanh.pop %v720
  %v735 = vxor.u32 %v721, 2147483648
  %v736 = vmul.f32 %v735, 1.442695
  %v737 = vpow.pop %v736
  %v738 = vadd.f32 %v737, 1.0
  %v739 = vrcp.pop %v738
  %v740 = vmul.f32 1.0, %v739
  %v741 = vmul.f32 %v733, %v402
  %v742 = vmul.f32 %v727, %v734
  %v743 = vadd.f32 %v741, %v742
  %v744 = vtanh.pop %v743
  %v745 = vmul.f32 %v740, %v744
  %746 = vmatprep.subr.mxu0 %v82
  %747 = vmatpush1.msra.mxu0 %v81
  %748 = vmatprep.subr.mxu0 %v86
  %749 = vmatpush1.msra.mxu0 %v85
  %750 = vmatprep.subr.mxu0 %v90
  %751 = vmatpush1.msra.mxu0 %v89
  %752 = vmatprep.subr.mxu0 %v94
  %753 = vmatpush1.msra.mxu0 %v93
  %754 = vmatprep.subr.mxu0 %v98
  %755 = vmatpush1.msra.mxu0 %v97
  %756 = vmatprep.subr.mxu0 %v102
  %757 = vmatpush1.msra.mxu0 %v101
  %758 = vmatprep.subr.mxu0 %v106
  %759 = vmatpush1.msra.mxu0 %v105
  %760 = vmatprep.subr.mxu0 %v110
  %761 = vmatpush1.msra.mxu0 %v109
  %762 = vmatprep.subr.mxu0 %v114
  %763 = vmatpush1.msra.mxu0 %v113
  %764 = vmatprep.subr.mxu0 %v118
  %765 = vmatpush1.msra.mxu0 %v117
  %766 = vmatprep.subr.mxu0 %v122
  %767 = vmatpush1.msra.mxu0 %v121
  %768 = vmatprep.subr.mxu0 %v126
  %769 = vmatpush1.msra.mxu0 %v125
  %770 = vmatprep.subr.mxu0 %v130
  %771 = vmatpush1.msra.mxu0 %v129
  %772 = vmatprep.subr.mxu0 %v134
  %773 = vmatpush1.msra.mxu0 %v133
  %774 = vmatprep.subr.mxu0 %v138
  %775 = vmatpush1.msra.mxu0 %v137
  %776 = vmatprep.subr.mxu0 %v142
  %777 = vmatpush1.msra.mxu0 %v141
  %778 = vmatprep.subr.mxu0 %v146
  %779 = vmatpush1.msra.mxu0 %v145
  %780 = vmatprep.subr.mxu0 %v150
  %781 = vmatpush1.msra.mxu0 %v149
  %782 = vmatprep.subr.mxu0 %v154
  %783 = vmatpush1.msra.mxu0 %v153
  %784 = vmatprep.subr.mxu0 %v158
  %785 = vmatpush1.msra.mxu0 %v157
  %786 = vmatprep.subr.mxu0 %v162
  %787 = vmatpush1.msra.mxu0 %v161
  %788 = vmatprep.subr.mxu0 %v166
  %789 = vmatpush1.msra.mxu0 %v165
  %790 = vmatprep.subr.mxu0 %v170
  %791 = vmatpush1.msra.mxu0 %v169
  %792 = vmatprep.subr.mxu0 %v174
  %793 = vmatpush1.msra.mxu0 %v173
  %794 = vmatprep.subr.mxu0 %v178
  %795 = vmatpush1.msra.mxu0 %v177
  %796 = vmatprep.subr.mxu0 %v182
  %797 = vmatpush1.msra.mxu0 %v181
  %798 = vmatprep.subr.mxu0 %v186
  %799 = vmatpush1.msra.mxu0 %v185
  %800 = vmatprep.subr.mxu0 %v190
  %801 = vmatpush1.msra.mxu0 %v189
  %802 = vmatprep.subr.mxu0 %v194
  %803 = vmatpush1.msra.mxu0 %v193
  %804 = vmatprep.subr.mxu0 %v198
  %805 = vmatpush1.msra.mxu0 %v197
  %806 = vmatprep.subr.mxu0 %v202
  %807 = vmatpush1.msra.mxu0 %v201
  %808 = vmatprep.subr.mxu0 %v206
  %809 = vmatpush1.msra.mxu0 %v205
  %810 = vmatprep.mubr.f32.mxu0 %v570
  %811 = vmatmul.mubr.f32.gmra.mrb[0].mxu0 %v745
  %v812 = vpop.f32.mrb[0].mxu0
  %v813 = vadd.f32 %v214, %v812
  %v814 = vpop.f32.mrb[0].mxu0
  %v815 = vadd.f32 %v218, %v814
  %816 = vdwg.mxu0
  %817 = vmatprep.subr.mxu0 %v84
  %818 = vmatpush1.msra.mxu0 %v83
  %819 = vmatprep.subr.mxu0 %v88
  %820 = vmatpush1.msra.mxu0 %v87
  %821 = vmatprep.subr.mxu0 %v92
  %822 = vmatpush1.msra.mxu0 %v91
  %823 = vmatprep.subr.mxu0 %v96
  %824 = vmatpush1.msra.mxu0 %v95
  %825 = vmatprep.subr.mxu0 %v100
  %826 = vmatpush1.msra.mxu0 %v99
  %827 = vmatprep.subr.mxu0 %v104
  %828 = vmatpush1.msra.mxu0 %v103
  %829 = vmatprep.subr.mxu0 %v108
  %830 = vmatpush1.msra.mxu0 %v107
  %831 = vmatprep.subr.mxu0 %v112
  %832 = vmatpush1.msra.mxu0 %v111
  %833 = vmatprep.subr.mxu0 %v116
  %834 = vmatpush1.msra.mxu0 %v115
  %835 = vmatprep.subr.mxu0 %v120
  %836 = vmatpush1.msra.mxu0 %v119
  %837 = vmatprep.subr.mxu0 %v124
  %838 = vmatpush1.msra.mxu0 %v123
  %839 = vmatprep.subr.mxu0 %v128
  %840 = vmatpush1.msra.mxu0 %v127
  %841 = vmatprep.subr.mxu0 %v132
  %842 = vmatpush1.msra.mxu0 %v131
  %843 = vmatprep.subr.mxu0 %v136
  %844 = vmatpush1.msra.mxu0 %v135
  %845 = vmatprep.subr.mxu0 %v140
  %846 = vmatpush1.msra.mxu0 %v139
  %847 = vmatprep.subr.mxu0 %v144
  %848 = vmatpush1.msra.mxu0 %v143
  %849 = vmatprep.subr.mxu0 %v148
  %850 = vmatpush1.msra.mxu0 %v147
  %851 = vmatprep.subr.mxu0 %v152
  %852 = vmatpush1.msra.mxu0 %v151
  %853 = vmatprep.subr.mxu0 %v156
  %854 = vmatpush1.msra.mxu0 %v155
  %855 = vmatprep.subr.mxu0 %v160
  %856 = vmatpush1.msra.mxu0 %v159
  %857 = vmatprep.subr.mxu0 %v164
  %858 = vmatpush1.msra.mxu0 %v163
  %859 = vmatprep.subr.mxu0 %v168
  %860 = vmatpush1.msra.mxu0 %v167
  %861 = vmatprep.subr.mxu0 %v172
  %862 = vmatpush1.msra.mxu0 %v171
  %863 = vmatprep.subr.mxu0 %v176
  %864 = vmatpush1.msra.mxu0 %v175
  %865 = vmatprep.subr.mxu0 %v180
  %866 = vmatpush1.msra.mxu0 %v179
  %867 = vmatprep.subr.mxu0 %v184
  %868 = vmatpush1.msra.mxu0 %v183
  %869 = vmatprep.subr.mxu0 %v188
  %870 = vmatpush1.msra.mxu0 %v187
  %871 = vmatprep.subr.mxu0 %v192
  %872 = vmatpush1.msra.mxu0 %v191
  %873 = vmatprep.subr.mxu0 %v196
  %874 = vmatpush1.msra.mxu0 %v195
  %875 = vmatprep.subr.mxu0 %v200
  %876 = vmatpush1.msra.mxu0 %v199
  %877 = vmatprep.subr.mxu0 %v204
  %878 = vmatpush1.msra.mxu0 %v203
  %879 = vmatprep.subr.mxu0 %v208
  %880 = vmatpush1.msra.mxu0 %v207
  %881 = vmatprep.mubr.f32.mxu0 %v570
  %882 = vmatmul.mubr.f32.gmra.mrb[0].mxu0 %v745
  %v883 = vpop.f32.mrb[0].mxu0
  %v884 = vadd.f32 %v222, %v883
  %v885 = vpop.f32.mrb[0].mxu0
  %v886 = vadd.f32 %v226, %v885
  %887 = vdwg.mxu0
  %v888 = vxor.u32 %v813, 2147483648
  %v889 = vmul.f32 %v888, 1.442695
  %v890 = vpow.pop %v889
  %v891 = vadd.f32 %v890, 1.0
  %v892 = vrcp.pop %v891
  %v893 = vmul.f32 1.0, %v892
  %v894 = vxor.u32 %v815, 2147483648
  %v895 = vmul.f32 %v894, 1.442695
  %v896 = vpow.pop %v895
  %v897 = vadd.f32 %v896, 1.0
  %v898 = vrcp.pop %v897
  %v899 = vmul.f32 1.0, %v898
  %v900 = vtanh.pop %v884
  %v901 = vxor.u32 %v886, 2147483648
  %v902 = vmul.f32 %v901, 1.442695
  %v903 = vpow.pop %v902
  %v904 = vadd.f32 %v903, 1.0
  %v905 = vrcp.pop %v904
  %v906 = vmul.f32 1.0, %v905
  %v907 = vmul.f32 %v899, %v568
  %v908 = vmul.f32 %v893, %v900
  %v909 = vadd.f32 %v907, %v908
  %v910 = vtanh.pop %v909
  %v911 = vmul.f32 %v906, %v910
  %s912 = scalar_lea.vmem %s0, 64
  %v913 = vld [vmem:[%s912] sm:$0xff]
  %v914 = vld [vmem:[%s912 + $0x8] sm:$0xff]
  %v915 = vld [vmem:[%s912 + $0x10] sm:$0xff]
  %v916 = vld [vmem:[%s912 + $0x18] sm:$0xff]
  %917 = vmatprep.subr.mxu0 %v18
  %918 = vmatpush1.msra.mxu0 %v17
  %919 = vmatprep.subr.mxu0 %v22
  %920 = vmatpush1.msra.mxu0 %v21
  %921 = vmatprep.subr.mxu0 %v26
  %922 = vmatpush1.msra.mxu0 %v25
  %923 = vmatprep.subr.mxu0 %v30
  %924 = vmatpush1.msra.mxu0 %v29
  %925 = vmatprep.subr.mxu0 %v34
  %926 = vmatpush1.msra.mxu0 %v33
  %927 = vmatprep.subr.mxu0 %v38
  %928 = vmatpush1.msra.mxu0 %v37
  %929 = vmatprep.subr.mxu0 %v42
  %930 = vmatpush1.msra.mxu0 %v41
  %931 = vmatprep.subr.mxu0 %v46
  %932 = vmatpush1.msra.mxu0 %v45
  %933 = vmatprep.subr.mxu0 %v50
  %934 = vmatpush1.msra.mxu0 %v49
  %935 = vmatprep.subr.mxu0 %v54
  %936 = vmatpush1.msra.mxu0 %v53
  %937 = vmatprep.subr.mxu0 %v58
  %938 = vmatpush1.msra.mxu0 %v57
  %939 = vmatprep.subr.mxu0 %v62
  %940 = vmatpush1.msra.mxu0 %v61
  %941 = vmatprep.subr.mxu0 %v66
  %942 = vmatpush1.msra.mxu0 %v65
  %943 = vmatprep.subr.mxu0 %v70
  %944 = vmatpush1.msra.mxu0 %v69
  %945 = vmatprep.subr.mxu0 %v74
  %946 = vmatpush1.msra.mxu0 %v73
  %947 = vmatprep.subr.mxu0 %v78
  %948 = vmatpush1.msra.mxu0 %v77
  %949 = vmatprep.subr.mxu0 0.0
  %950 = vmatpush1.msra.mxu0 0.0
  %951 = vmatprep.subr.mxu0 0.0
  %952 = vmatpush1.msra.mxu0 0.0
  %953 = vmatprep.subr.mxu0 0.0
  %954 = vmatpush1.msra.mxu0 0.0
  %955 = vmatprep.subr.mxu0 0.0
  %956 = vmatpush1.msra.mxu0 0.0
  %957 = vmatprep.subr.mxu0 0.0
  %958 = vmatpush1.msra.mxu0 0.0
  %959 = vmatprep.subr.mxu0 0.0
  %960 = vmatpush1.msra.mxu0 0.0
  %961 = vmatprep.subr.mxu0 0.0
  %962 = vmatpush1.msra.mxu0 0.0
  %963 = vmatprep.subr.mxu0 0.0
  %964 = vmatpush1.msra.mxu0 0.0
  %965 = vmatprep.subr.mxu0 0.0
  %966 = vmatpush1.msra.mxu0 0.0
  %967 = vmatprep.subr.mxu0 0.0
  %968 = vmatpush1.msra.mxu0 0.0
  %969 = vmatprep.subr.mxu0 0.0
  %970 = vmatpush1.msra.mxu0 0.0
  %971 = vmatprep.subr.mxu0 0.0
  %972 = vmatpush1.msra.mxu0 0.0
  %973 = vmatprep.subr.mxu0 0.0
  %974 = vmatpush1.msra.mxu0 0.0
  %975 = vmatprep.subr.mxu0 0.0
  %976 = vmatpush1.msra.mxu0 0.0
  %977 = vmatprep.subr.mxu0 0.0
  %978 = vmatpush1.msra.mxu0 0.0
  %979 = vmatprep.subr.mxu0 0.0
  %980 = vmatpush1.msra.mxu0 0.0
  %981 = vmatprep.mubr.f32.mxu0 0.0
  %982 = vmatmul.mubr.f32.gmra.mrb[0].mxu0 %v745
  %v983 = vpop.f32.mrb[0].mxu0
  %v984 = vadd.f32 0.0, %v983
  %v985 = vpop.f32.mrb[0].mxu0
  %v986 = vadd.f32 0.0, %v985
  %987 = vdwg.mxu0
  %988 = vmatprep.subr.mxu0 %v20
  %989 = vmatpush1.msra.mxu0 %v19
  %990 = vmatprep.subr.mxu0 %v24
  %991 = vmatpush1.msra.mxu0 %v23
  %992 = vmatprep.subr.mxu0 %v28
  %993 = vmatpush1.msra.mxu0 %v27
  %994 = vmatprep.subr.mxu0 %v32
  %995 = vmatpush1.msra.mxu0 %v31
  %996 = vmatprep.subr.mxu0 %v36
  %997 = vmatpush1.msra.mxu0 %v35
  %998 = vmatprep.subr.mxu0 %v40
  %999 = vmatpush1.msra.mxu0 %v39
  %1000 = vmatprep.subr.mxu0 %v44
  %1001 = vmatpush1.msra.mxu0 %v43
  %1002 = vmatprep.subr.mxu0 %v48
  %1003 = vmatpush1.msra.mxu0 %v47
  %1004 = vmatprep.subr.mxu0 %v52
  %1005 = vmatpush1.msra.mxu0 %v51
  %1006 = vmatprep.subr.mxu0 %v56
  %1007 = vmatpush1.msra.mxu0 %v55
  %1008 = vmatprep.subr.mxu0 %v60
  %1009 = vmatpush1.msra.mxu0 %v59
  %1010 = vmatprep.subr.mxu0 %v64
  %1011 = vmatpush1.msra.mxu0 %v63
  %1012 = vmatprep.subr.mxu0 %v68
  %1013 = vmatpush1.msra.mxu0 %v67
  %1014 = vmatprep.subr.mxu0 %v72
  %1015 = vmatpush1.msra.mxu0 %v71
  %1016 = vmatprep.subr.mxu0 %v76
  %1017 = vmatpush1.msra.mxu0 %v75
  %1018 = vmatprep.subr.mxu0 %v80
  %1019 = vmatpush1.msra.mxu0 %v79
  %1020 = vmatprep.subr.mxu0 0.0
  %1021 = vmatpush1.msra.mxu0 0.0
  %1022 = vmatprep.subr.mxu0 0.0
  %1023 = vmatpush1.msra.mxu0 0.0
  %1024 = vmatprep.subr.mxu0 0.0
  %1025 = vmatpush1.msra.mxu0 0.0
  %1026 = vmatprep.subr.mxu0 0.0
  %1027 = vmatpush1.msra.mxu0 0.0
  %1028 = vmatprep.subr.mxu0 0.0
  %1029 = vmatpush1.msra.mxu0 0.0
  %1030 = vmatprep.subr.mxu0 0.0
  %1031 = vmatpush1.msra.mxu0 0.0
  %1032 = vmatprep.subr.mxu0 0.0
  %1033 = vmatpush1.msra.mxu0 0.0
  %1034 = vmatprep.subr.mxu0 0.0
  %1035 = vmatpush1.msra.mxu0 0.0
  %1036 = vmatprep.subr.mxu0 0.0
  %1037 = vmatpush1.msra.mxu0 0.0
  %1038 = vmatprep.subr.mxu0 0.0
  %1039 = vmatpush1.msra.mxu0 0.0
  %1040 = vmatprep.subr.mxu0 0.0
  %1041 = vmatpush1.msra.mxu0 0.0
  %1042 = vmatprep.subr.mxu0 0.0
  %1043 = vmatpush1.msra.mxu0 0.0
  %1044 = vmatprep.subr.mxu0 0.0
  %1045 = vmatpush1.msra.mxu0 0.0
  %1046 = vmatprep.subr.mxu0 0.0
  %1047 = vmatpush1.msra.mxu0 0.0
  %1048 = vmatprep.subr.mxu0 0.0
  %1049 = vmatpush1.msra.mxu0 0.0
  %1050 = vmatprep.subr.mxu0 0.0
  %1051 = vmatpush1.msra.mxu0 0.0
  %1052 = vmatprep.mubr.f32.mxu0 0.0
  %1053 = vmatmul.mubr.f32.gmra.mrb[0].mxu0 %v745
  %v1054 = vpop.f32.mrb[0].mxu0
  %v1055 = vadd.f32 0.0, %v1054
  %v1056 = vpop.f32.mrb[0].mxu0
  %v1057 = vadd.f32 0.0, %v1056
  %1058 = vdwg.mxu0
  %v1059 = vadd.f32 %v913, %v984
  %v1060 = vadd.f32 %v914, %v986
  %v1061 = vadd.f32 %v915, %v1055
  %v1062 = vadd.f32 %v916, %v1057
  %v1063 = vxor.u32 %v1059, 2147483648
  %v1064 = vmul.f32 %v1063, 1.442695
  %v1065 = vpow.pop %v1064
  %v1066 = vadd.f32 %v1065, 1.0
  %v1067 = vrcp.pop %v1066
  %v1068 = vmul.f32 1.0, %v1067
  %v1069 = vxor.u32 %v1060, 2147483648
  %v1070 = vmul.f32 %v1069, 1.442695
  %v1071 = vpow.pop %v1070
  %v1072 = vadd.f32 %v1071, 1.0
  %v1073 = vrcp.pop %v1072
  %v1074 = vmul.f32 1.0, %v1073
  %v1075 = vtanh.pop %v1061
  %v1076 = vxor.u32 %v1062, 2147483648
  %v1077 = vmul.f32 %v1076, 1.442695
  %v1078 = vpow.pop %v1077
  %v1079 = vadd.f32 %v1078, 1.0
  %v1080 = vrcp.pop %v1079
  %v1081 = vmul.f32 1.0, %v1080
  %v1082 = vmul.f32 %v1074, %v743
  %v1083 = vmul.f32 %v1068, %v1075
  %v1084 = vadd.f32 %v1082, %v1083
  %v1085 = vtanh.pop %v1084
  %v1086 = vmul.f32 %v1081, %v1085
  %1087 = vmatprep.subr.mxu0 %v82
  %1088 = vmatpush1.msra.mxu0 %v81
  %1089 = vmatprep.subr.mxu0 %v86
  %1090 = vmatpush1.msra.mxu0 %v85
  %1091 = vmatprep.subr.mxu0 %v90
  %1092 = vmatpush1.msra.mxu0 %v89
  %1093 = vmatprep.subr.mxu0 %v94
  %1094 = vmatpush1.msra.mxu0 %v93
  %1095 = vmatprep.subr.mxu0 %v98
  %1096 = vmatpush1.msra.mxu0 %v97
  %1097 = vmatprep.subr.mxu0 %v102
  %1098 = vmatpush1.msra.mxu0 %v101
  %1099 = vmatprep.subr.mxu0 %v106
  %1100 = vmatpush1.msra.mxu0 %v105
  %1101 = vmatprep.subr.mxu0 %v110
  %1102 = vmatpush1.msra.mxu0 %v109
  %1103 = vmatprep.subr.mxu0 %v114
  %1104 = vmatpush1.msra.mxu0 %v113
  %1105 = vmatprep.subr.mxu0 %v118
  %1106 = vmatpush1.msra.mxu0 %v117
  %1107 = vmatprep.subr.mxu0 %v122
  %1108 = vmatpush1.msra.mxu0 %v121
  %1109 = vmatprep.subr.mxu0 %v126
  %1110 = vmatpush1.msra.mxu0 %v125
  %1111 = vmatprep.subr.mxu0 %v130
  %1112 = vmatpush1.msra.mxu0 %v129
  %1113 = vmatprep.subr.mxu0 %v134
  %1114 = vmatpush1.msra.mxu0 %v133
  %1115 = vmatprep.subr.mxu0 %v138
  %1116 = vmatpush1.msra.mxu0 %v137
  %1117 = vmatprep.subr.mxu0 %v142
  %1118 = vmatpush1.msra.mxu0 %v141
  %1119 = vmatprep.subr.mxu0 %v146
  %1120 = vmatpush1.msra.mxu0 %v145
  %1121 = vmatprep.subr.mxu0 %v150
  %1122 = vmatpush1.msra.mxu0 %v149
  %1123 = vmatprep.subr.mxu0 %v154
  %1124 = vmatpush1.msra.mxu0 %v153
  %1125 = vmatprep.subr.mxu0 %v158
  %1126 = vmatpush1.msra.mxu0 %v157
  %1127 = vmatprep.subr.mxu0 %v162
  %1128 = vmatpush1.msra.mxu0 %v161
  %1129 = vmatprep.subr.mxu0 %v166
  %1130 = vmatpush1.msra.mxu0 %v165
  %1131 = vmatprep.subr.mxu0 %v170
  %1132 = vmatpush1.msra.mxu0 %v169
  %1133 = vmatprep.subr.mxu0 %v174
  %1134 = vmatpush1.msra.mxu0 %v173
  %1135 = vmatprep.subr.mxu0 %v178
  %1136 = vmatpush1.msra.mxu0 %v177
  %1137 = vmatprep.subr.mxu0 %v182
  %1138 = vmatpush1.msra.mxu0 %v181
  %1139 = vmatprep.subr.mxu0 %v186
  %1140 = vmatpush1.msra.mxu0 %v185
  %1141 = vmatprep.subr.mxu0 %v190
  %1142 = vmatpush1.msra.mxu0 %v189
  %1143 = vmatprep.subr.mxu0 %v194
  %1144 = vmatpush1.msra.mxu0 %v193
  %1145 = vmatprep.subr.mxu0 %v198
  %1146 = vmatpush1.msra.mxu0 %v197
  %1147 = vmatprep.subr.mxu0 %v202
  %1148 = vmatpush1.msra.mxu0 %v201
  %1149 = vmatprep.subr.mxu0 %v206
  %1150 = vmatpush1.msra.mxu0 %v205
  %1151 = vmatprep.mubr.f32.mxu0 %v911
  %1152 = vmatmul.mubr.f32.gmra.mrb[0].mxu0 %v1086
  %v1153 = vpop.f32.mrb[0].mxu0
  %v1154 = vadd.f32 %v214, %v1153
  %v1155 = vpop.f32.mrb[0].mxu0
  %v1156 = vadd.f32 %v218, %v1155
  %1157 = vdwg.mxu0
  %1158 = vmatprep.subr.mxu0 %v84
  %1159 = vmatpush1.msra.mxu0 %v83
  %1160 = vmatprep.subr.mxu0 %v88
  %1161 = vmatpush1.msra.mxu0 %v87
  %1162 = vmatprep.subr.mxu0 %v92
  %1163 = vmatpush1.msra.mxu0 %v91
  %1164 = vmatprep.subr.mxu0 %v96
  %1165 = vmatpush1.msra.mxu0 %v95
  %1166 = vmatprep.subr.mxu0 %v100
  %1167 = vmatpush1.msra.mxu0 %v99
  %1168 = vmatprep.subr.mxu0 %v104
  %1169 = vmatpush1.msra.mxu0 %v103
  %1170 = vmatprep.subr.mxu0 %v108
  %1171 = vmatpush1.msra.mxu0 %v107
  %1172 = vmatprep.subr.mxu0 %v112
  %1173 = vmatpush1.msra.mxu0 %v111
  %1174 = vmatprep.subr.mxu0 %v116
  %1175 = vmatpush1.msra.mxu0 %v115
  %1176 = vmatprep.subr.mxu0 %v120
  %1177 = vmatpush1.msra.mxu0 %v119
  %1178 = vmatprep.subr.mxu0 %v124
  %1179 = vmatpush1.msra.mxu0 %v123
  %1180 = vmatprep.subr.mxu0 %v128
  %1181 = vmatpush1.msra.mxu0 %v127
  %1182 = vmatprep.subr.mxu0 %v132
  %1183 = vmatpush1.msra.mxu0 %v131
  %1184 = vmatprep.subr.mxu0 %v136
  %1185 = vmatpush1.msra.mxu0 %v135
  %1186 = vmatprep.subr.mxu0 %v140
  %1187 = vmatpush1.msra.mxu0 %v139
  %1188 = vmatprep.subr.mxu0 %v144
  %1189 = vmatpush1.msra.mxu0 %v143
  %1190 = vmatprep.subr.mxu0 %v148
  %1191 = vmatpush1.msra.mxu0 %v147
  %1192 = vmatprep.subr.mxu0 %v152
  %1193 = vmatpush1.msra.mxu0 %v151
  %1194 = vmatprep.subr.mxu0 %v156
  %1195 = vmatpush1.msra.mxu0 %v155
  %1196 = vmatprep.subr.mxu0 %v160
  %1197 = vmatpush1.msra.mxu0 %v159
  %1198 = vmatprep.subr.mxu0 %v164
  %1199 = vmatpush1.msra.mxu0 %v163
  %1200 = vmatprep.subr.mxu0 %v168
  %1201 = vmatpush1.msra.mxu0 %v167
  %1202 = vmatprep.subr.mxu0 %v172
  %1203 = vmatpush1.msra.mxu0 %v171
  %1204 = vmatprep.subr.mxu0 %v176
  %1205 = vmatpush1.msra.mxu0 %v175
  %1206 = vmatprep.subr.mxu0 %v180
  %1207 = vmatpush1.msra.mxu0 %v179
  %1208 = vmatprep.subr.mxu0 %v184
  %1209 = vmatpush1.msra.mxu0 %v183
  %1210 = vmatprep.subr.mxu0 %v188
  %1211 = vmatpush1.msra.mxu0 %v187
  %1212 = vmatprep.subr.mxu0 %v192
  %1213 = vmatpush1.msra.mxu0 %v191
  %1214 = vmatprep.subr.mxu0 %v196
  %1215 = vmatpush1.msra.mxu0 %v195
  %1216 = vmatprep.subr.mxu0 %v200
  %1217 = vmatpush1.msra.mxu0 %v199
  %1218 = vmatprep.subr.mxu0 %v204
  %1219 = vmatpush1.msra.mxu0 %v203
  %1220 = vmatprep.subr.mxu0 %v208
  %1221 = vmatpush1.msra.mxu0 %v207
  %1222 = vmatprep.mubr.f32.mxu0 %v911
  %1223 = vmatmul.mubr.f32.gmra.mrb[0].mxu0 %v1086
  %v1224 = vpop.f32.mrb[0].mxu0
  %v1225 = vadd.f32 %v222, %v1224
  %v1226 = vpop.f32.mrb[0].mxu0
  %v1227 = vadd.f32 %v226, %v1226
  %1228 = vdwg.mxu0
  %v1229 = vxor.u32 %v1154, 2147483648
  %v1230 = vmul.f32 %v1229, 1.442695
  %v1231 = vpow.pop %v1230
  %v1232 = vadd.f32 %v1231, 1.0
  %v1233 = vrcp.pop %v1232
  %v1234 = vmul.f32 1.0, %v1233
  %v1235 = vxor.u32 %v1156, 2147483648
  %v1236 = vmul.f32 %v1235, 1.442695
  %v1237 = vpow.pop %v1236
  %v1238 = vadd.f32 %v1237, 1.0
  %v1239 = vrcp.pop %v1238
  %v1240 = vmul.f32 1.0, %v1239
  %v1241 = vtanh.pop %v1225
  %v1242 = vxor.u32 %v1227, 2147483648
  %v1243 = vmul.f32 %v1242, 1.442695
  %v1244 = vpow.pop %v1243
  %v1245 = vadd.f32 %v1244, 1.0
  %v1246 = vrcp.pop %v1245
  %v1247 = vmul.f32 1.0, %v1246
  %v1248 = vmul.f32 %v1240, %v909
  %v1249 = vmul.f32 %v1234, %v1241
  %v1250 = vadd.f32 %v1248, %v1249
  %v1251 = vtanh.pop %v1250
  %v1252 = vmul.f32 %v1247, %v1251
  %s1253 = scalar_lea.vmem %s0, 96
  %v1254 = vld [vmem:[%s1253] sm:$0xff]
  %v1255 = vld [vmem:[%s1253 + $0x8] sm:$0xff]
  %v1256 = vld [vmem:[%s1253 + $0x10] sm:$0xff]
  %v1257 = vld [vmem:[%s1253 + $0x18] sm:$0xff]
  %1258 = vmatprep.subr.mxu0 %v18
  %1259 = vmatpush1.msra.mxu0 %v17
  %1260 = vmatprep.subr.mxu0 %v22
  %1261 = vmatpush1.msra.mxu0 %v21
  %1262 = vmatprep.subr.mxu0 %v26
  %1263 = vmatpush1.msra.mxu0 %v25
  %1264 = vmatprep.subr.mxu0 %v30
  %1265 = vmatpush1.msra.mxu0 %v29
  %1266 = vmatprep.subr.mxu0 %v34
  %1267 = vmatpush1.msra.mxu0 %v33
  %1268 = vmatprep.subr.mxu0 %v38
  %1269 = vmatpush1.msra.mxu0 %v37
  %1270 = vmatprep.subr.mxu0 %v42
  %1271 = vmatpush1.msra.mxu0 %v41
  %1272 = vmatprep.subr.mxu0 %v46
  %1273 = vmatpush1.msra.mxu0 %v45
  %1274 = vmatprep.subr.mxu0 %v50
  %1275 = vmatpush1.msra.mxu0 %v49
  %1276 = vmatprep.subr.mxu0 %v54
  %1277 = vmatpush1.msra.mxu0 %v53
  %1278 = vmatprep.subr.mxu0 %v58
  %1279 = vmatpush1.msra.mxu0 %v57
  %1280 = vmatprep.subr.mxu0 %v62
  %1281 = vmatpush1.msra.mxu0 %v61
  %1282 = vmatprep.subr.mxu0 %v66
  %1283 = vmatpush1.msra.mxu0 %v65
  %1284 = vmatprep.subr.mxu0 %v70
  %1285 = vmatpush1.msra.mxu0 %v69
  %1286 = vmatprep.subr.mxu0 %v74
  %1287 = vmatpush1.msra.mxu0 %v73
  %1288 = vmatprep.subr.mxu0 %v78
  %1289 = vmatpush1.msra.mxu0 %v77
  %1290 = vmatprep.subr.mxu0 0.0
  %1291 = vmatpush1.msra.mxu0 0.0
  %1292 = vmatprep.subr.mxu0 0.0
  %1293 = vmatpush1.msra.mxu0 0.0
  %1294 = vmatprep.subr.mxu0 0.0
  %1295 = vmatpush1.msra.mxu0 0.0
  %1296 = vmatprep.subr.mxu0 0.0
  %1297 = vmatpush1.msra.mxu0 0.0
  %1298 = vmatprep.subr.mxu0 0.0
  %1299 = vmatpush1.msra.mxu0 0.0
  %1300 = vmatprep.subr.mxu0 0.0
  %1301 = vmatpush1.msra.mxu0 0.0
  %1302 = vmatprep.subr.mxu0 0.0
  %1303 = vmatpush1.msra.mxu0 0.0
  %1304 = vmatprep.subr.mxu0 0.0
  %1305 = vmatpush1.msra.mxu0 0.0
  %1306 = vmatprep.subr.mxu0 0.0
  %1307 = vmatpush1.msra.mxu0 0.0
  %1308 = vmatprep.subr.mxu0 0.0
  %1309 = vmatpush1.msra.mxu0 0.0
  %1310 = vmatprep.subr.mxu0 0.0
  %1311 = vmatpush1.msra.mxu0 0.0
  %1312 = vmatprep.subr.mxu0 0.0
  %1313 = vmatpush1.msra.mxu0 0.0
  %1314 = vmatprep.subr.mxu0 0.0
  %1315 = vmatpush1.msra.mxu0 0.0
  %1316 = vmatprep.subr.mxu0 0.0
  %1317 = vmatpush1.msra.mxu0 0.0
  %1318 = vmatprep.subr.mxu0 0.0
  %1319 = vmatpush1.msra.mxu0 0.0
  %1320 = vmatprep.subr.mxu0 0.0
  %1321 = vmatpush1.msra.mxu0 0.0
  %1322 = vmatprep.mubr.f32.mxu0 0.0
  %1323 = vmatmul.mubr.f32.gmra.mrb[0].mxu0 %v1086
  %v1324 = vpop.f32.mrb[0].mxu0
  %v1325 = vadd.f32 0.0, %v1324
  %v1326 = vpop.f32.mrb[0].mxu0
  %v1327 = vadd.f32 0.0, %v1326
  %1328 = vdwg.mxu0
  %1329 = vmatprep.subr.mxu0 %v20
  %1330 = vmatpush1.msra.mxu0 %v19
  %1331 = vmatprep.subr.mxu0 %v24
  %1332 = vmatpush1.msra.mxu0 %v23
  %1333 = vmatprep.subr.mxu0 %v28
  %1334 = vmatpush1.msra.mxu0 %v27
  %1335 = vmatprep.subr.mxu0 %v32
  %1336 = vmatpush1.msra.mxu0 %v31
  %1337 = vmatprep.subr.mxu0 %v36
  %1338 = vmatpush1.msra.mxu0 %v35
  %1339 = vmatprep.subr.mxu0 %v40
  %1340 = vmatpush1.msra.mxu0 %v39
  %1341 = vmatprep.subr.mxu0 %v44
  %1342 = vmatpush1.msra.mxu0 %v43
  %1343 = vmatprep.subr.mxu0 %v48
  %1344 = vmatpush1.msra.mxu0 %v47
  %1345 = vmatprep.subr.mxu0 %v52
  %1346 = vmatpush1.msra.mxu0 %v51
  %1347 = vmatprep.subr.mxu0 %v56
  %1348 = vmatpush1.msra.mxu0 %v55
  %1349 = vmatprep.subr.mxu0 %v60
  %1350 = vmatpush1.msra.mxu0 %v59
  %1351 = vmatprep.subr.mxu0 %v64
  %1352 = vmatpush1.msra.mxu0 %v63
  %1353 = vmatprep.subr.mxu0 %v68
  %1354 = vmatpush1.msra.mxu0 %v67
  %1355 = vmatprep.subr.mxu0 %v72
  %1356 = vmatpush1.msra.mxu0 %v71
  %1357 = vmatprep.subr.mxu0 %v76
  %1358 = vmatpush1.msra.mxu0 %v75
  %1359 = vmatprep.subr.mxu0 %v80
  %1360 = vmatpush1.msra.mxu0 %v79
  %1361 = vmatprep.subr.mxu0 0.0
  %1362 = vmatpush1.msra.mxu0 0.0
  %1363 = vmatprep.subr.mxu0 0.0
  %1364 = vmatpush1.msra.mxu0 0.0
  %1365 = vmatprep.subr.mxu0 0.0
  %1366 = vmatpush1.msra.mxu0 0.0
  %1367 = vmatprep.subr.mxu0 0.0
  %1368 = vmatpush1.msra.mxu0 0.0
  %1369 = vmatprep.subr.mxu0 0.0
  %1370 = vmatpush1.msra.mxu0 0.0
  %1371 = vmatprep.subr.mxu0 0.0
  %1372 = vmatpush1.msra.mxu0 0.0
  %1373 = vmatprep.subr.mxu0 0.0
  %1374 = vmatpush1.msra.mxu0 0.0
  %1375 = vmatprep.subr.mxu0 0.0
  %1376 = vmatpush1.msra.mxu0 0.0
  %1377 = vmatprep.subr.mxu0 0.0
  %1378 = vmatpush1.msra.mxu0 0.0
  %1379 = vmatprep.subr.mxu0 0.0
  %1380 = vmatpush1.msra.mxu0 0.0
  %1381 = vmatprep.subr.mxu0 0.0
  %1382 = vmatpush1.msra.mxu0 0.0
  %1383 = vmatprep.subr.mxu0 0.0
  %1384 = vmatpush1.msra.mxu0 0.0
  %1385 = vmatprep.subr.mxu0 0.0
  %1386 = vmatpush1.msra.mxu0 0.0
  %1387 = vmatprep.subr.mxu0 0.0
  %1388 = vmatpush1.msra.mxu0 0.0
  %1389 = vmatprep.subr.mxu0 0.0
  %1390 = vmatpush1.msra.mxu0 0.0
  %1391 = vmatprep.subr.mxu0 0.0
  %1392 = vmatpush1.msra.mxu0 0.0
  %1393 = vmatprep.mubr.f32.mxu0 0.0
  %1394 = vmatmul.mubr.f32.gmra.mrb[0].mxu0 %v1086
  %v1395 = vpop.f32.mrb[0].mxu0
  %v1396 = vadd.f32 0.0, %v1395
  %v1397 = vpop.f32.mrb[0].mxu0
  %v1398 = vadd.f32 0.0, %v1397
  %1399 = vdwg.mxu0
  %v1400 = vadd.f32 %v1254, %v1325
  %v1401 = vadd.f32 %v1255, %v1327
  %v1402 = vadd.f32 %v1256, %v1396
  %v1403 = vadd.f32 %v1257, %v1398
  %v1404 = vxor.u32 %v1400, 2147483648
  %v1405 = vmul.f32 %v1404, 1.442695
  %v1406 = vpow.pop %v1405
  %v1407 = vadd.f32 %v1406, 1.0
  %v1408 = vrcp.pop %v1407
  %v1409 = vmul.f32 1.0, %v1408
  %v1410 = vxor.u32 %v1401, 2147483648
  %v1411 = vmul.f32 %v1410, 1.442695
  %v1412 = vpow.pop %v1411
  %v1413 = vadd.f32 %v1412, 1.0
  %v1414 = vrcp.pop %v1413
  %v1415 = vmul.f32 1.0, %v1414
  %v1416 = vtanh.pop %v1402
  %v1417 = vxor.u32 %v1403, 2147483648
  %v1418 = vmul.f32 %v1417, 1.442695
  %v1419 = vpow.pop %v1418
  %v1420 = vadd.f32 %v1419, 1.0
  %v1421 = vrcp.pop %v1420
  %v1422 = vmul.f32 1.0, %v1421
  %v1423 = vmul.f32 %v1415, %v1084
  %v1424 = vmul.f32 %v1409, %v1416
  %v1425 = vadd.f32 %v1423, %v1424
  %v1426 = vtanh.pop %v1425
  %v1427 = vmul.f32 %v1422, %v1426
  %1428 = vmatprep.subr.mxu0 %v82
  %1429 = vmatpush1.msra.mxu0 %v81
  %1430 = vmatprep.subr.mxu0 %v86
  %1431 = vmatpush1.msra.mxu0 %v85
  %1432 = vmatprep.subr.mxu0 %v90
  %1433 = vmatpush1.msra.mxu0 %v89
  %1434 = vmatprep.subr.mxu0 %v94
  %1435 = vmatpush1.msra.mxu0 %v93
  %1436 = vmatprep.subr.mxu0 %v98
  %1437 = vmatpush1.msra.mxu0 %v97
  %1438 = vmatprep.subr.mxu0 %v102
  %1439 = vmatpush1.msra.mxu0 %v101
  %1440 = vmatprep.subr.mxu0 %v106
  %1441 = vmatpush1.msra.mxu0 %v105
  %1442 = vmatprep.subr.mxu0 %v110
  %1443 = vmatpush1.msra.mxu0 %v109
  %1444 = vmatprep.subr.mxu0 %v114
  %1445 = vmatpush1.msra.mxu0 %v113
  %1446 = vmatprep.subr.mxu0 %v118
  %1447 = vmatpush1.msra.mxu0 %v117
  %1448 = vmatprep.subr.mxu0 %v122
  %1449 = vmatpush1.msra.mxu0 %v121
  %1450 = vmatprep.subr.mxu0 %v126
  %1451 = vmatpush1.msra.mxu0 %v125
  %1452 = vmatprep.subr.mxu0 %v130
  %1453 = vmatpush1.msra.mxu0 %v129
  %1454 = vmatprep.subr.mxu0 %v134
  %1455 = vmatpush1.msra.mxu0 %v133
  %1456 = vmatprep.subr.mxu0 %v138
  %1457 = vmatpush1.msra.mxu0 %v137
  %1458 = vmatprep.subr.mxu0 %v142
  %1459 = vmatpush1.msra.mxu0 %v141
  %1460 = vmatprep.subr.mxu0 %v146
  %1461 = vmatpush1.msra.mxu0 %v145
  %1462 = vmatprep.subr.mxu0 %v150
  %1463 = vmatpush1.msra.mxu0 %v149
  %1464 = vmatprep.subr.mxu0 %v154
  %1465 = vmatpush1.msra.mxu0 %v153
  %1466 = vmatprep.subr.mxu0 %v158
  %1467 = vmatpush1.msra.mxu0 %v157
  %1468 = vmatprep.subr.mxu0 %v162
  %1469 = vmatpush1.msra.mxu0 %v161
  %1470 = vmatprep.subr.mxu0 %v166
  %1471 = vmatpush1.msra.mxu0 %v165
  %1472 = vmatprep.subr.mxu0 %v170
  %1473 = vmatpush1.msra.mxu0 %v169
  %1474 = vmatprep.subr.mxu0 %v174
  %1475 = vmatpush1.msra.mxu0 %v173
  %1476 = vmatprep.subr.mxu0 %v178
  %1477 = vmatpush1.msra.mxu0 %v177
  %1478 = vmatprep.subr.mxu0 %v182
  %1479 = vmatpush1.msra.mxu0 %v181
  %1480 = vmatprep.subr.mxu0 %v186
  %1481 = vmatpush1.msra.mxu0 %v185
  %1482 = vmatprep.subr.mxu0 %v190
  %1483 = vmatpush1.msra.mxu0 %v189
  %1484 = vmatprep.subr.mxu0 %v194
  %1485 = vmatpush1.msra.mxu0 %v193
  %1486 = vmatprep.subr.mxu0 %v198
  %1487 = vmatpush1.msra.mxu0 %v197
  %1488 = vmatprep.subr.mxu0 %v202
  %1489 = vmatpush1.msra.mxu0 %v201
  %1490 = vmatprep.subr.mxu0 %v206
  %1491 = vmatpush1.msra.mxu0 %v205
  %1492 = vmatprep.mubr.f32.mxu0 %v1252
  %1493 = vmatmul.mubr.f32.gmra.mrb[0].mxu0 %v1427
  %v1494 = vpop.f32.mrb[0].mxu0
  %v1495 = vadd.f32 %v214, %v1494
  %v1496 = vpop.f32.mrb[0].mxu0
  %v1497 = vadd.f32 %v218, %v1496
  %1498 = vdwg.mxu0
  %1499 = vmatprep.subr.mxu0 %v84
  %1500 = vmatpush1.msra.mxu0 %v83
  %1501 = vmatprep.subr.mxu0 %v88
  %1502 = vmatpush1.msra.mxu0 %v87
  %1503 = vmatprep.subr.mxu0 %v92
  %1504 = vmatpush1.msra.mxu0 %v91
  %1505 = vmatprep.subr.mxu0 %v96
  %1506 = vmatpush1.msra.mxu0 %v95
  %1507 = vmatprep.subr.mxu0 %v100
  %1508 = vmatpush1.msra.mxu0 %v99
  %1509 = vmatprep.subr.mxu0 %v104
  %1510 = vmatpush1.msra.mxu0 %v103
  %1511 = vmatprep.subr.mxu0 %v108
  %1512 = vmatpush1.msra.mxu0 %v107
  %1513 = vmatprep.subr.mxu0 %v112
  %1514 = vmatpush1.msra.mxu0 %v111
  %1515 = vmatprep.subr.mxu0 %v116
  %1516 = vmatpush1.msra.mxu0 %v115
  %1517 = vmatprep.subr.mxu0 %v120
  %1518 = vmatpush1.msra.mxu0 %v119
  %1519 = vmatprep.subr.mxu0 %v124
  %1520 = vmatpush1.msra.mxu0 %v123
  %1521 = vmatprep.subr.mxu0 %v128
  %1522 = vmatpush1.msra.mxu0 %v127
  %1523 = vmatprep.subr.mxu0 %v132
  %1524 = vmatpush1.msra.mxu0 %v131
  %1525 = vmatprep.subr.mxu0 %v136
  %1526 = vmatpush1.msra.mxu0 %v135
  %1527 = vmatprep.subr.mxu0 %v140
  %1528 = vmatpush1.msra.mxu0 %v139
  %1529 = vmatprep.subr.mxu0 %v144
  %1530 = vmatpush1.msra.mxu0 %v143
  %1531 = vmatprep.subr.mxu0 %v148
  %1532 = vmatpush1.msra.mxu0 %v147
  %1533 = vmatprep.subr.mxu0 %v152
  %1534 = vmatpush1.msra.mxu0 %v151
  %1535 = vmatprep.subr.mxu0 %v156
  %1536 = vmatpush1.msra.mxu0 %v155
  %1537 = vmatprep.subr.mxu0 %v160
  %1538 = vmatpush1.msra.mxu0 %v159
  %1539 = vmatprep.subr.mxu0 %v164
  %1540 = vmatpush1.msra.mxu0 %v163
  %1541 = vmatprep.subr.mxu0 %v168
  %1542 = vmatpush1.msra.mxu0 %v167
  %1543 = vmatprep.subr.mxu0 %v172
  %1544 = vmatpush1.msra.mxu0 %v171
  %1545 = vmatprep.subr.mxu0 %v176
  %1546 = vmatpush1.msra.mxu0 %v175
  %1547 = vmatprep.subr.mxu0 %v180
  %1548 = vmatpush1.msra.mxu0 %v179
  %1549 = vmatprep.subr.mxu0 %v184
  %1550 = vmatpush1.msra.mxu0 %v183
  %1551 = vmatprep.subr.mxu0 %v188
  %1552 = vmatpush1.msra.mxu0 %v187
  %1553 = vmatprep.subr.mxu0 %v192
  %1554 = vmatpush1.msra.mxu0 %v191
  %1555 = vmatprep.subr.mxu0 %v196
  %1556 = vmatpush1.msra.mxu0 %v195
  %1557 = vmatprep.subr.mxu0 %v200
  %1558 = vmatpush1.msra.mxu0 %v199
  %1559 = vmatprep.subr.mxu0 %v204
  %1560 = vmatpush1.msra.mxu0 %v203
  %1561 = vmatprep.subr.mxu0 %v208
  %1562 = vmatpush1.msra.mxu0 %v207
  %1563 = vmatprep.mubr.f32.mxu0 %v1252
  %1564 = vmatmul.mubr.f32.gmra.mrb[0].mxu0 %v1427
  %v1565 = vpop.f32.mrb[0].mxu0
  %v1566 = vadd.f32 %v222, %v1565
  %v1567 = vpop.f32.mrb[0].mxu0
  %v1568 = vadd.f32 %v226, %v1567
  %1569 = vdwg.mxu0
  %v1570 = vxor.u32 %v1495, 2147483648
  %v1571 = vmul.f32 %v1570, 1.442695
  %v1572 = vpow.pop %v1571
  %v1573 = vadd.f32 %v1572, 1.0
  %v1574 = vrcp.pop %v1573
  %v1575 = vmul.f32 1.0, %v1574
  %v1576 = vxor.u32 %v1497, 2147483648
  %v1577 = vmul.f32 %v1576, 1.442695
  %v1578 = vpow.pop %v1577
  %v1579 = vadd.f32 %v1578, 1.0
  %v1580 = vrcp.pop %v1579
  %v1581 = vmul.f32 1.0, %v1580
  %v1582 = vtanh.pop %v1566
  %v1583 = vxor.u32 %v1568, 2147483648
  %v1584 = vmul.f32 %v1583, 1.442695
  %v1585 = vpow.pop %v1584
  %v1586 = vadd.f32 %v1585, 1.0
  %v1587 = vrcp.pop %v1586
  %v1588 = vmul.f32 1.0, %v1587
  %v1589 = vmul.f32 %v1581, %v1250
  %v1590 = vmul.f32 %v1575, %v1582
  %v1591 = vadd.f32 %v1589, %v1590
  %v1592 = vtanh.pop %v1591
  %v1593 = vmul.f32 %v1588, %v1592
  %s1594 = scalar_lea.vmem %s0, 128
  %v1595 = vld [vmem:[%s1594] sm:$0xff]
  %v1596 = vld [vmem:[%s1594 + $0x8] sm:$0xff]
  %v1597 = vld [vmem:[%s1594 + $0x10] sm:$0xff]
  %v1598 = vld [vmem:[%s1594 + $0x18] sm:$0xff]
  %1599 = vmatprep.subr.mxu0 %v18
  %1600 = vmatpush1.msra.mxu0 %v17
  %1601 = vmatprep.subr.mxu0 %v22
  %1602 = vmatpush1.msra.mxu0 %v21
  %1603 = vmatprep.subr.mxu0 %v26
  %1604 = vmatpush1.msra.mxu0 %v25
  %1605 = vmatprep.subr.mxu0 %v30
  %1606 = vmatpush1.msra.mxu0 %v29
  %1607 = vmatprep.subr.mxu0 %v34
  %1608 = vmatpush1.msra.mxu0 %v33
  %1609 = vmatprep.subr.mxu0 %v38
  %1610 = vmatpush1.msra.mxu0 %v37
  %1611 = vmatprep.subr.mxu0 %v42
  %1612 = vmatpush1.msra.mxu0 %v41
  %1613 = vmatprep.subr.mxu0 %v46
  %1614 = vmatpush1.msra.mxu0 %v45
  %1615 = vmatprep.subr.mxu0 %v50
  %1616 = vmatpush1.msra.mxu0 %v49
  %1617 = vmatprep.subr.mxu0 %v54
  %1618 = vmatpush1.msra.mxu0 %v53
  %1619 = vmatprep.subr.mxu0 %v58
  %1620 = vmatpush1.msra.mxu0 %v57
  %1621 = vmatprep.subr.mxu0 %v62
  %1622 = vmatpush1.msra.mxu0 %v61
  %1623 = vmatprep.subr.mxu0 %v66
  %1624 = vmatpush1.msra.mxu0 %v65
  %1625 = vmatprep.subr.mxu0 %v70
  %1626 = vmatpush1.msra.mxu0 %v69
  %1627 = vmatprep.subr.mxu0 %v74
  %1628 = vmatpush1.msra.mxu0 %v73
  %1629 = vmatprep.subr.mxu0 %v78
  %1630 = vmatpush1.msra.mxu0 %v77
  %1631 = vmatprep.subr.mxu0 0.0
  %1632 = vmatpush1.msra.mxu0 0.0
  %1633 = vmatprep.subr.mxu0 0.0
  %1634 = vmatpush1.msra.mxu0 0.0
  %1635 = vmatprep.subr.mxu0 0.0
  %1636 = vmatpush1.msra.mxu0 0.0
  %1637 = vmatprep.subr.mxu0 0.0
  %1638 = vmatpush1.msra.mxu0 0.0
  %1639 = vmatprep.subr.mxu0 0.0
  %1640 = vmatpush1.msra.mxu0 0.0
  %1641 = vmatprep.subr.mxu0 0.0
  %1642 = vmatpush1.msra.mxu0 0.0
  %1643 = vmatprep.subr.mxu0 0.0
  %1644 = vmatpush1.msra.mxu0 0.0
  %1645 = vmatprep.subr.mxu0 0.0
  %1646 = vmatpush1.msra.mxu0 0.0
  %1647 = vmatprep.subr.mxu0 0.0
  %1648 = vmatpush1.msra.mxu0 0.0
  %1649 = vmatprep.subr.mxu0 0.0
  %1650 = vmatpush1.msra.mxu0 0.0
  %1651 = vmatprep.subr.mxu0 0.0
  %1652 = vmatpush1.msra.mxu0 0.0
  %1653 = vmatprep.subr.mxu0 0.0
  %1654 = vmatpush1.msra.mxu0 0.0
  %1655 = vmatprep.subr.mxu0 0.0
  %1656 = vmatpush1.msra.mxu0 0.0
  %1657 = vmatprep.subr.mxu0 0.0
  %1658 = vmatpush1.msra.mxu0 0.0
  %1659 = vmatprep.subr.mxu0 0.0
  %1660 = vmatpush1.msra.mxu0 0.0
  %1661 = vmatprep.subr.mxu0 0.0
  %1662 = vmatpush1.msra.mxu0 0.0
  %1663 = vmatprep.mubr.f32.mxu0 0.0
  %1664 = vmatmul.mubr.f32.gmra.mrb[0].mxu0 %v1427
  %v1665 = vpop.f32.mrb[0].mxu0
  %v1666 = vadd.f32 0.0, %v1665
  %v1667 = vpop.f32.mrb[0].mxu0
  %v1668 = vadd.f32 0.0, %v1667
  %1669 = vdwg.mxu0
  %1670 = vmatprep.subr.mxu0 %v20
  %1671 = vmatpush1.msra.mxu0 %v19
  %1672 = vmatprep.subr.mxu0 %v24
  %1673 = vmatpush1.msra.mxu0 %v23
  %1674 = vmatprep.subr.mxu0 %v28
  %1675 = vmatpush1.msra.mxu0 %v27
  %1676 = vmatprep.subr.mxu0 %v32
  %1677 = vmatpush1.msra.mxu0 %v31
  %1678 = vmatprep.subr.mxu0 %v36
  %1679 = vmatpush1.msra.mxu0 %v35
  %1680 = vmatprep.subr.mxu0 %v40
  %1681 = vmatpush1.msra.mxu0 %v39
  %1682 = vmatprep.subr.mxu0 %v44
  %1683 = vmatpush1.msra.mxu0 %v43
  %1684 = vmatprep.subr.mxu0 %v48
  %1685 = vmatpush1.msra.mxu0 %v47
  %1686 = vmatprep.subr.mxu0 %v52
  %1687 = vmatpush1.msra.mxu0 %v51
  %1688 = vmatprep.subr.mxu0 %v56
  %1689 = vmatpush1.msra.mxu0 %v55
  %1690 = vmatprep.subr.mxu0 %v60
  %1691 = vmatpush1.msra.mxu0 %v59
  %1692 = vmatprep.subr.mxu0 %v64
  %1693 = vmatpush1.msra.mxu0 %v63
  %1694 = vmatprep.subr.mxu0 %v68
  %1695 = vmatpush1.msra.mxu0 %v67
  %1696 = vmatprep.subr.mxu0 %v72
  %1697 = vmatpush1.msra.mxu0 %v71
  %1698 = vmatprep.subr.mxu0 %v76
  %1699 = vmatpush1.msra.mxu0 %v75
  %1700 = vmatprep.subr.mxu0 %v80
  %1701 = vmatpush1.msra.mxu0 %v79
  %1702 = vmatprep.subr.mxu0 0.0
  %1703 = vmatpush1.msra.mxu0 0.0
  %1704 = vmatprep.subr.mxu0 0.0
  %1705 = vmatpush1.msra.mxu0 0.0
  %1706 = vmatprep.subr.mxu0 0.0
  %1707 = vmatpush1.msra.mxu0 0.0
  %1708 = vmatprep.subr.mxu0 0.0
  %1709 = vmatpush1.msra.mxu0 0.0
  %1710 = vmatprep.subr.mxu0 0.0
  %1711 = vmatpush1.msra.mxu0 0.0
  %1712 = vmatprep.subr.mxu0 0.0
  %1713 = vmatpush1.msra.mxu0 0.0
  %1714 = vmatprep.subr.mxu0 0.0
  %1715 = vmatpush1.msra.mxu0 0.0
  %1716 = vmatprep.subr.mxu0 0.0
  %1717 = vmatpush1.msra.mxu0 0.0
  %1718 = vmatprep.subr.mxu0 0.0
  %1719 = vmatpush1.msra.mxu0 0.0
  %1720 = vmatprep.subr.mxu0 0.0
  %1721 = vmatpush1.msra.mxu0 0.0
  %1722 = vmatprep.subr.mxu0 0.0
  %1723 = vmatpush1.msra.mxu0 0.0
  %1724 = vmatprep.subr.mxu0 0.0
  %1725 = vmatpush1.msra.mxu0 0.0
  %1726 = vmatprep.subr.mxu0 0.0
  %1727 = vmatpush1.msra.mxu0 0.0
  %1728 = vmatprep.subr.mxu0 0.0
  %1729 = vmatpush1.msra.mxu0 0.0
  %1730 = vmatprep.subr.mxu0 0.0
  %1731 = vmatpush1.msra.mxu0 0.0
  %1732 = vmatprep.subr.mxu0 0.0
  %1733 = vmatpush1.msra.mxu0 0.0
  %1734 = vmatprep.mubr.f32.mxu0 0.0
  %1735 = vmatmul.mubr.f32.gmra.mrb[0].mxu0 %v1427
  %v1736 = vpop.f32.mrb[0].mxu0
  %v1737 = vadd.f32 0.0, %v1736
  %v1738 = vpop.f32.mrb[0].mxu0
  %v1739 = vadd.f32 0.0, %v1738
  %1740 = vdwg.mxu0
  %v1741 = vadd.f32 %v1595, %v1666
  %v1742 = vadd.f32 %v1596, %v1668
  %v1743 = vadd.f32 %v1597, %v1737
  %v1744 = vadd.f32 %v1598, %v1739
  %v1745 = vxor.u32 %v1741, 2147483648
  %v1746 = vmul.f32 %v1745, 1.442695
  %v1747 = vpow.pop %v1746
  %v1748 = vadd.f32 %v1747, 1.0
  %v1749 = vrcp.pop %v1748
  %v1750 = vmul.f32 1.0, %v1749
  %v1751 = vxor.u32 %v1742, 2147483648
  %v1752 = vmul.f32 %v1751, 1.442695
  %v1753 = vpow.pop %v1752
  %v1754 = vadd.f32 %v1753, 1.0
  %v1755 = vrcp.pop %v1754
  %v1756 = vmul.f32 1.0, %v1755
  %v1757 = vtanh.pop %v1743
  %v1758 = vxor.u32 %v1744, 2147483648
  %v1759 = vmul.f32 %v1758, 1.442695
  %v1760 = vpow.pop %v1759
  %v1761 = vadd.f32 %v1760, 1.0
  %v1762 = vrcp.pop %v1761
  %v1763 = vmul.f32 1.0, %v1762
  %v1764 = vmul.f32 %v1756, %v1425
  %v1765 = vmul.f32 %v1750, %v1757
  %v1766 = vadd.f32 %v1764, %v1765
  %v1767 = vtanh.pop %v1766
  %v1768 = vmul.f32 %v1763, %v1767
  %1769 = vmatprep.subr.mxu0 %v82
  %1770 = vmatpush1.msra.mxu0 %v81
  %1771 = vmatprep.subr.mxu0 %v86
  %1772 = vmatpush1.msra.mxu0 %v85
  %1773 = vmatprep.subr.mxu0 %v90
  %1774 = vmatpush1.msra.mxu0 %v89
  %1775 = vmatprep.subr.mxu0 %v94
  %1776 = vmatpush1.msra.mxu0 %v93
  %1777 = vmatprep.subr.mxu0 %v98
  %1778 = vmatpush1.msra.mxu0 %v97
  %1779 = vmatprep.subr.mxu0 %v102
  %1780 = vmatpush1.msra.mxu0 %v101
  %1781 = vmatprep.subr.mxu0 %v106
  %1782 = vmatpush1.msra.mxu0 %v105
  %1783 = vmatprep.subr.mxu0 %v110
  %1784 = vmatpush1.msra.mxu0 %v109
  %1785 = vmatprep.subr.mxu0 %v114
  %1786 = vmatpush1.msra.mxu0 %v113
  %1787 = vmatprep.subr.mxu0 %v118
  %1788 = vmatpush1.msra.mxu0 %v117
  %1789 = vmatprep.subr.mxu0 %v122
  %1790 = vmatpush1.msra.mxu0 %v121
  %1791 = vmatprep.subr.mxu0 %v126
  %1792 = vmatpush1.msra.mxu0 %v125
  %1793 = vmatprep.subr.mxu0 %v130
  %1794 = vmatpush1.msra.mxu0 %v129
  %1795 = vmatprep.subr.mxu0 %v134
  %1796 = vmatpush1.msra.mxu0 %v133
  %1797 = vmatprep.subr.mxu0 %v138
  %1798 = vmatpush1.msra.mxu0 %v137
  %1799 = vmatprep.subr.mxu0 %v142
  %1800 = vmatpush1.msra.mxu0 %v141
  %1801 = vmatprep.subr.mxu0 %v146
  %1802 = vmatpush1.msra.mxu0 %v145
  %1803 = vmatprep.subr.mxu0 %v150
  %1804 = vmatpush1.msra.mxu0 %v149
  %1805 = vmatprep.subr.mxu0 %v154
  %1806 = vmatpush1.msra.mxu0 %v153
  %1807 = vmatprep.subr.mxu0 %v158
  %1808 = vmatpush1.msra.mxu0 %v157
  %1809 = vmatprep.subr.mxu0 %v162
  %1810 = vmatpush1.msra.mxu0 %v161
  %1811 = vmatprep.subr.mxu0 %v166
  %1812 = vmatpush1.msra.mxu0 %v165
  %1813 = vmatprep.subr.mxu0 %v170
  %1814 = vmatpush1.msra.mxu0 %v169
  %1815 = vmatprep.subr.mxu0 %v174
  %1816 = vmatpush1.msra.mxu0 %v173
  %1817 = vmatprep.subr.mxu0 %v178
  %1818 = vmatpush1.msra.mxu0 %v177
  %1819 = vmatprep.subr.mxu0 %v182
  %1820 = vmatpush1.msra.mxu0 %v181
  %1821 = vmatprep.subr.mxu0 %v186
  %1822 = vmatpush1.msra.mxu0 %v185
  %1823 = vmatprep.subr.mxu0 %v190
  %1824 = vmatpush1.msra.mxu0 %v189
  %1825 = vmatprep.subr.mxu0 %v194
  %1826 = vmatpush1.msra.mxu0 %v193
  %1827 = vmatprep.subr.mxu0 %v198
  %1828 = vmatpush1.msra.mxu0 %v197
  %1829 = vmatprep.subr.mxu0 %v202
  %1830 = vmatpush1.msra.mxu0 %v201
  %1831 = vmatprep.subr.mxu0 %v206
  %1832 = vmatpush1.msra.mxu0 %v205
  %1833 = vmatprep.mubr.f32.mxu0 %v1593
  %1834 = vmatmul.mubr.f32.gmra.mrb[0].mxu0 %v1768
  %v1835 = vpop.f32.mrb[0].mxu0
  %v1836 = vadd.f32 %v214, %v1835
  %v1837 = vpop.f32.mrb[0].mxu0
  %v1838 = vadd.f32 %v218, %v1837
  %1839 = vdwg.mxu0
  %1840 = vmatprep.subr.mxu0 %v84
  %1841 = vmatpush1.msra.mxu0 %v83
  %1842 = vmatprep.subr.mxu0 %v88
  %1843 = vmatpush1.msra.mxu0 %v87
  %1844 = vmatprep.subr.mxu0 %v92
  %1845 = vmatpush1.msra.mxu0 %v91
  %1846 = vmatprep.subr.mxu0 %v96
  %1847 = vmatpush1.msra.mxu0 %v95
  %1848 = vmatprep.subr.mxu0 %v100
  %1849 = vmatpush1.msra.mxu0 %v99
  %1850 = vmatprep.subr.mxu0 %v104
  %1851 = vmatpush1.msra.mxu0 %v103
  %1852 = vmatprep.subr.mxu0 %v108
  %1853 = vmatpush1.msra.mxu0 %v107
  %1854 = vmatprep.subr.mxu0 %v112
  %1855 = vmatpush1.msra.mxu0 %v111
  %1856 = vmatprep.subr.mxu0 %v116
  %1857 = vmatpush1.msra.mxu0 %v115
  %1858 = vmatprep.subr.mxu0 %v120
  %1859 = vmatpush1.msra.mxu0 %v119
  %1860 = vmatprep.subr.mxu0 %v124
  %1861 = vmatpush1.msra.mxu0 %v123
  %1862 = vmatprep.subr.mxu0 %v128
  %1863 = vmatpush1.msra.mxu0 %v127
  %1864 = vmatprep.subr.mxu0 %v132
  %1865 = vmatpush1.msra.mxu0 %v131
  %1866 = vmatprep.subr.mxu0 %v136
  %1867 = vmatpush1.msra.mxu0 %v135
  %1868 = vmatprep.subr.mxu0 %v140
  %1869 = vmatpush1.msra.mxu0 %v139
  %1870 = vmatprep.subr.mxu0 %v144
  %1871 = vmatpush1.msra.mxu0 %v143
  %1872 = vmatprep.subr.mxu0 %v148
  %1873 = vmatpush1.msra.mxu0 %v147
  %1874 = vmatprep.subr.mxu0 %v152
  %1875 = vmatpush1.msra.mxu0 %v151
  %1876 = vmatprep.subr.mxu0 %v156
  %1877 = vmatpush1.msra.mxu0 %v155
  %1878 = vmatprep.subr.mxu0 %v160
  %1879 = vmatpush1.msra.mxu0 %v159
  %1880 = vmatprep.subr.mxu0 %v164
  %1881 = vmatpush1.msra.mxu0 %v163
  %1882 = vmatprep.subr.mxu0 %v168
  %1883 = vmatpush1.msra.mxu0 %v167
  %1884 = vmatprep.subr.mxu0 %v172
  %1885 = vmatpush1.msra.mxu0 %v171
  %1886 = vmatprep.subr.mxu0 %v176
  %1887 = vmatpush1.msra.mxu0 %v175
  %1888 = vmatprep.subr.mxu0 %v180
  %1889 = vmatpush1.msra.mxu0 %v179
  %1890 = vmatprep.subr.mxu0 %v184
  %1891 = vmatpush1.msra.mxu0 %v183
  %1892 = vmatprep.subr.mxu0 %v188
  %1893 = vmatpush1.msra.mxu0 %v187
  %1894 = vmatprep.subr.mxu0 %v192
  %1895 = vmatpush1.msra.mxu0 %v191
  %1896 = vmatprep.subr.mxu0 %v196
  %1897 = vmatpush1.msra.mxu0 %v195
  %1898 = vmatprep.subr.mxu0 %v200
  %1899 = vmatpush1.msra.mxu0 %v199
  %1900 = vmatprep.subr.mxu0 %v204
  %1901 = vmatpush1.msra.mxu0 %v203
  %1902 = vmatprep.subr.mxu0 %v208
  %1903 = vmatpush1.msra.mxu0 %v207
  %1904 = vmatprep.mubr.f32.mxu0 %v1593
  %1905 = vmatmul.mubr.f32.gmra.mrb[0].mxu0 %v1768
  %v1906 = vpop.f32.mrb[0].mxu0
  %v1907 = vadd.f32 %v222, %v1906
  %v1908 = vpop.f32.mrb[0].mxu0
  %v1909 = vadd.f32 %v226, %v1908
  %1910 = vdwg.mxu0
  %v1911 = vxor.u32 %v1836, 2147483648
  %v1912 = vmul.f32 %v1911, 1.442695
  %v1913 = vpow.pop %v1912
  %v1914 = vadd.f32 %v1913, 1.0
  %v1915 = vrcp.pop %v1914
  %v1916 = vmul.f32 1.0, %v1915
  %v1917 = vxor.u32 %v1838, 2147483648
  %v1918 = vmul.f32 %v1917, 1.442695
  %v1919 = vpow.pop %v1918
  %v1920 = vadd.f32 %v1919, 1.0
  %v1921 = vrcp.pop %v1920
  %v1922 = vmul.f32 1.0, %v1921
  %v1923 = vtanh.pop %v1907
  %v1924 = vxor.u32 %v1909, 2147483648
  %v1925 = vmul.f32 %v1924, 1.442695
  %v1926 = vpow.pop %v1925
  %v1927 = vadd.f32 %v1926, 1.0
  %v1928 = vrcp.pop %v1927
  %v1929 = vmul.f32 1.0, %v1928
  %v1930 = vmul.f32 %v1922, %v1591
  %v1931 = vmul.f32 %v1916, %v1923
  %v1932 = vadd.f32 %v1930, %v1931
  %v1933 = vtanh.pop %v1932
  %v1934 = vmul.f32 %v1929, %v1933
  %s1935 = scalar_lea.vmem %s0, 160
  %v1936 = vld [vmem:[%s1935] sm:$0xff]
  %v1937 = vld [vmem:[%s1935 + $0x8] sm:$0xff]
  %v1938 = vld [vmem:[%s1935 + $0x10] sm:$0xff]
  %v1939 = vld [vmem:[%s1935 + $0x18] sm:$0xff]
  %1940 = vmatprep.subr.mxu0 %v18
  %1941 = vmatpush1.msra.mxu0 %v17
  %1942 = vmatprep.subr.mxu0 %v22
  %1943 = vmatpush1.msra.mxu0 %v21
  %1944 = vmatprep.subr.mxu0 %v26
  %1945 = vmatpush1.msra.mxu0 %v25
  %1946 = vmatprep.subr.mxu0 %v30
  %1947 = vmatpush1.msra.mxu0 %v29
  %1948 = vmatprep.subr.mxu0 %v34
  %1949 = vmatpush1.msra.mxu0 %v33
  %1950 = vmatprep.subr.mxu0 %v38
  %1951 = vmatpush1.msra.mxu0 %v37
  %1952 = vmatprep.subr.mxu0 %v42
  %1953 = vmatpush1.msra.mxu0 %v41
  %1954 = vmatprep.subr.mxu0 %v46
  %1955 = vmatpush1.msra.mxu0 %v45
  %1956 = vmatprep.subr.mxu0 %v50
  %1957 = vmatpush1.msra.mxu0 %v49
  %1958 = vmatprep.subr.mxu0 %v54
  %1959 = vmatpush1.msra.mxu0 %v53
  %1960 = vmatprep.subr.mxu0 %v58
  %1961 = vmatpush1.msra.mxu0 %v57
  %1962 = vmatprep.subr.mxu0 %v62
  %1963 = vmatpush1.msra.mxu0 %v61
  %1964 = vmatprep.subr.mxu0 %v66
  %1965 = vmatpush1.msra.mxu0 %v65
  %1966 = vmatprep.subr.mxu0 %v70
  %1967 = vmatpush1.msra.mxu0 %v69
  %1968 = vmatprep.subr.mxu0 %v74
  %1969 = vmatpush1.msra.mxu0 %v73
  %1970 = vmatprep.subr.mxu0 %v78
  %1971 = vmatpush1.msra.mxu0 %v77
  %1972 = vmatprep.subr.mxu0 0.0
  %1973 = vmatpush1.msra.mxu0 0.0
  %1974 = vmatprep.subr.mxu0 0.0
  %1975 = vmatpush1.msra.mxu0 0.0
  %1976 = vmatprep.subr.mxu0 0.0
  %1977 = vmatpush1.msra.mxu0 0.0
  %1978 = vmatprep.subr.mxu0 0.0
  %1979 = vmatpush1.msra.mxu0 0.0
  %1980 = vmatprep.subr.mxu0 0.0
  %1981 = vmatpush1.msra.mxu0 0.0
  %1982 = vmatprep.subr.mxu0 0.0
  %1983 = vmatpush1.msra.mxu0 0.0
  %1984 = vmatprep.subr.mxu0 0.0
  %1985 = vmatpush1.msra.mxu0 0.0
  %1986 = vmatprep.subr.mxu0 0.0
  %1987 = vmatpush1.msra.mxu0 0.0
  %1988 = vmatprep.subr.mxu0 0.0
  %1989 = vmatpush1.msra.mxu0 0.0
  %1990 = vmatprep.subr.mxu0 0.0
  %1991 = vmatpush1.msra.mxu0 0.0
  %1992 = vmatprep.subr.mxu0 0.0
  %1993 = vmatpush1.msra.mxu0 0.0
  %1994 = vmatprep.subr.mxu0 0.0
  %1995 = vmatpush1.msra.mxu0 0.0
  %1996 = vmatprep.subr.mxu0 0.0
  %1997 = vmatpush1.msra.mxu0 0.0
  %1998 = vmatprep.subr.mxu0 0.0
  %1999 = vmatpush1.msra.mxu0 0.0
  %2000 = vmatprep.subr.mxu0 0.0
  %2001 = vmatpush1.msra.mxu0 0.0
  %2002 = vmatprep.subr.mxu0 0.0
  %2003 = vmatpush1.msra.mxu0 0.0
  %2004 = vmatprep.mubr.f32.mxu0 0.0
  %2005 = vmatmul.mubr.f32.gmra.mrb[0].mxu0 %v1768
  %v2006 = vpop.f32.mrb[0].mxu0
  %v2007 = vadd.f32 0.0, %v2006
  %v2008 = vpop.f32.mrb[0].mxu0
  %v2009 = vadd.f32 0.0, %v2008
  %2010 = vdwg.mxu0
  %2011 = vmatprep.subr.mxu0 %v20
  %2012 = vmatpush1.msra.mxu0 %v19
  %2013 = vmatprep.subr.mxu0 %v24
  %2014 = vmatpush1.msra.mxu0 %v23
  %2015 = vmatprep.subr.mxu0 %v28
  %2016 = vmatpush1.msra.mxu0 %v27
  %2017 = vmatprep.subr.mxu0 %v32
  %2018 = vmatpush1.msra.mxu0 %v31
  %2019 = vmatprep.subr.mxu0 %v36
  %2020 = vmatpush1.msra.mxu0 %v35
  %2021 = vmatprep.subr.mxu0 %v40
  %2022 = vmatpush1.msra.mxu0 %v39
  %2023 = vmatprep.subr.mxu0 %v44
  %2024 = vmatpush1.msra.mxu0 %v43
  %2025 = vmatprep.subr.mxu0 %v48
  %2026 = vmatpush1.msra.mxu0 %v47
  %2027 = vmatprep.subr.mxu0 %v52
  %2028 = vmatpush1.msra.mxu0 %v51
  %2029 = vmatprep.subr.mxu0 %v56
  %2030 = vmatpush1.msra.mxu0 %v55
  %2031 = vmatprep.subr.mxu0 %v60
  %2032 = vmatpush1.msra.mxu0 %v59
  %2033 = vmatprep.subr.mxu0 %v64
  %2034 = vmatpush1.msra.mxu0 %v63
  %2035 = vmatprep.subr.mxu0 %v68
  %2036 = vmatpush1.msra.mxu0 %v67
  %2037 = vmatprep.subr.mxu0 %v72
  %2038 = vmatpush1.msra.mxu0 %v71
  %2039 = vmatprep.subr.mxu0 %v76
  %2040 = vmatpush1.msra.mxu0 %v75
  %2041 = vmatprep.subr.mxu0 %v80
  %2042 = vmatpush1.msra.mxu0 %v79
  %2043 = vmatprep.subr.mxu0 0.0
  %2044 = vmatpush1.msra.mxu0 0.0
  %2045 = vmatprep.subr.mxu0 0.0
  %2046 = vmatpush1.msra.mxu0 0.0
  %2047 = vmatprep.subr.mxu0 0.0
  %2048 = vmatpush1.msra.mxu0 0.0
  %2049 = vmatprep.subr.mxu0 0.0
  %2050 = vmatpush1.msra.mxu0 0.0
  %2051 = vmatprep.subr.mxu0 0.0
  %2052 = vmatpush1.msra.mxu0 0.0
  %2053 = vmatprep.subr.mxu0 0.0
  %2054 = vmatpush1.msra.mxu0 0.0
  %2055 = vmatprep.subr.mxu0 0.0
  %2056 = vmatpush1.msra.mxu0 0.0
  %2057 = vmatprep.subr.mxu0 0.0
  %2058 = vmatpush1.msra.mxu0 0.0
  %2059 = vmatprep.subr.mxu0 0.0
  %2060 = vmatpush1.msra.mxu0 0.0
  %2061 = vmatprep.subr.mxu0 0.0
  %2062 = vmatpush1.msra.mxu0 0.0
  %2063 = vmatprep.subr.mxu0 0.0
  %2064 = vmatpush1.msra.mxu0 0.0
  %2065 = vmatprep.subr.mxu0 0.0
  %2066 = vmatpush1.msra.mxu0 0.0
  %2067 = vmatprep.subr.mxu0 0.0
  %2068 = vmatpush1.msra.mxu0 0.0
  %2069 = vmatprep.subr.mxu0 0.0
  %2070 = vmatpush1.msra.mxu0 0.0
  %2071 = vmatprep.subr.mxu0 0.0
  %2072 = vmatpush1.msra.mxu0 0.0
  %2073 = vmatprep.subr.mxu0 0.0
  %2074 = vmatpush1.msra.mxu0 0.0
  %2075 = vmatprep.mubr.f32.mxu0 0.0
  %2076 = vmatmul.mubr.f32.gmra.mrb[0].mxu0 %v1768
  %v2077 = vpop.f32.mrb[0].mxu0
  %v2078 = vadd.f32 0.0, %v2077
  %v2079 = vpop.f32.mrb[0].mxu0
  %v2080 = vadd.f32 0.0, %v2079
  %2081 = vdwg.mxu0
  %v2082 = vadd.f32 %v1936, %v2007
  %v2083 = vadd.f32 %v1937, %v2009
  %v2084 = vadd.f32 %v1938, %v2078
  %v2085 = vadd.f32 %v1939, %v2080
  %v2086 = vxor.u32 %v2082, 2147483648
  %v2087 = vmul.f32 %v2086, 1.442695
  %v2088 = vpow.pop %v2087
  %v2089 = vadd.f32 %v2088, 1.0
  %v2090 = vrcp.pop %v2089
  %v2091 = vmul.f32 1.0, %v2090
  %v2092 = vxor.u32 %v2083, 2147483648
  %v2093 = vmul.f32 %v2092, 1.442695
  %v2094 = vpow.pop %v2093
  %v2095 = vadd.f32 %v2094, 1.0
  %v2096 = vrcp.pop %v2095
  %v2097 = vmul.f32 1.0, %v2096
  %v2098 = vtanh.pop %v2084
  %v2099 = vxor.u32 %v2085, 2147483648
  %v2100 = vmul.f32 %v2099, 1.442695
  %v2101 = vpow.pop %v2100
  %v2102 = vadd.f32 %v2101, 1.0
  %v2103 = vrcp.pop %v2102
  %v2104 = vmul.f32 1.0, %v2103
  %v2105 = vmul.f32 %v2097, %v1766
  %v2106 = vmul.f32 %v2091, %v2098
  %v2107 = vadd.f32 %v2105, %v2106
  %v2108 = vtanh.pop %v2107
  %v2109 = vmul.f32 %v2104, %v2108
  %2110 = vmatprep.subr.mxu0 %v82
  %2111 = vmatpush1.msra.mxu0 %v81
  %2112 = vmatprep.subr.mxu0 %v86
  %2113 = vmatpush1.msra.mxu0 %v85
  %2114 = vmatprep.subr.mxu0 %v90
  %2115 = vmatpush1.msra.mxu0 %v89
  %2116 = vmatprep.subr.mxu0 %v94
  %2117 = vmatpush1.msra.mxu0 %v93
  %2118 = vmatprep.subr.mxu0 %v98
  %2119 = vmatpush1.msra.mxu0 %v97
  %2120 = vmatprep.subr.mxu0 %v102
  %2121 = vmatpush1.msra.mxu0 %v101
  %2122 = vmatprep.subr.mxu0 %v106
  %2123 = vmatpush1.msra.mxu0 %v105
  %2124 = vmatprep.subr.mxu0 %v110
  %2125 = vmatpush1.msra.mxu0 %v109
  %2126 = vmatprep.subr.mxu0 %v114
  %2127 = vmatpush1.msra.mxu0 %v113
  %2128 = vmatprep.subr.mxu0 %v118
  %2129 = vmatpush1.msra.mxu0 %v117
  %2130 = vmatprep.subr.mxu0 %v122
  %2131 = vmatpush1.msra.mxu0 %v121
  %2132 = vmatprep.subr.mxu0 %v126
  %2133 = vmatpush1.msra.mxu0 %v125
  %2134 = vmatprep.subr.mxu0 %v130
  %2135 = vmatpush1.msra.mxu0 %v129
  %2136 = vmatprep.subr.mxu0 %v134
  %2137 = vmatpush1.msra.mxu0 %v133
  %2138 = vmatprep.subr.mxu0 %v138
  %2139 = vmatpush1.msra.mxu0 %v137
  %2140 = vmatprep.subr.mxu0 %v142
  %2141 = vmatpush1.msra.mxu0 %v141
  %2142 = vmatprep.subr.mxu0 %v146
  %2143 = vmatpush1.msra.mxu0 %v145
  %2144 = vmatprep.subr.mxu0 %v150
  %2145 = vmatpush1.msra.mxu0 %v149
  %2146 = vmatprep.subr.mxu0 %v154
  %2147 = vmatpush1.msra.mxu0 %v153
  %2148 = vmatprep.subr.mxu0 %v158
  %2149 = vmatpush1.msra.mxu0 %v157
  %2150 = vmatprep.subr.mxu0 %v162
  %2151 = vmatpush1.msra.mxu0 %v161
  %2152 = vmatprep.subr.mxu0 %v166
  %2153 = vmatpush1.msra.mxu0 %v165
  %2154 = vmatprep.subr.mxu0 %v170
  %2155 = vmatpush1.msra.mxu0 %v169
  %2156 = vmatprep.subr.mxu0 %v174
  %2157 = vmatpush1.msra.mxu0 %v173
  %2158 = vmatprep.subr.mxu0 %v178
  %2159 = vmatpush1.msra.mxu0 %v177
  %2160 = vmatprep.subr.mxu0 %v182
  %2161 = vmatpush1.msra.mxu0 %v181
  %2162 = vmatprep.subr.mxu0 %v186
  %2163 = vmatpush1.msra.mxu0 %v185
  %2164 = vmatprep.subr.mxu0 %v190
  %2165 = vmatpush1.msra.mxu0 %v189
  %2166 = vmatprep.subr.mxu0 %v194
  %2167 = vmatpush1.msra.mxu0 %v193
  %2168 = vmatprep.subr.mxu0 %v198
  %2169 = vmatpush1.msra.mxu0 %v197
  %2170 = vmatprep.subr.mxu0 %v202
  %2171 = vmatpush1.msra.mxu0 %v201
  %2172 = vmatprep.subr.mxu0 %v206
  %2173 = vmatpush1.msra.mxu0 %v205
  %2174 = vmatprep.mubr.f32.mxu0 %v1934
  %2175 = vmatmul.mubr.f32.gmra.mrb[0].mxu0 %v2109
  %v2176 = vpop.f32.mrb[0].mxu0
  %v2177 = vadd.f32 %v214, %v2176
  %v2178 = vpop.f32.mrb[0].mxu0
  %v2179 = vadd.f32 %v218, %v2178
  %2180 = vdwg.mxu0
  %2181 = vmatprep.subr.mxu0 %v84
  %2182 = vmatpush1.msra.mxu0 %v83
  %2183 = vmatprep.subr.mxu0 %v88
  %2184 = vmatpush1.msra.mxu0 %v87
  %2185 = vmatprep.subr.mxu0 %v92
  %2186 = vmatpush1.msra.mxu0 %v91
  %2187 = vmatprep.subr.mxu0 %v96
  %2188 = vmatpush1.msra.mxu0 %v95
  %2189 = vmatprep.subr.mxu0 %v100
  %2190 = vmatpush1.msra.mxu0 %v99
  %2191 = vmatprep.subr.mxu0 %v104
  %2192 = vmatpush1.msra.mxu0 %v103
  %2193 = vmatprep.subr.mxu0 %v108
  %2194 = vmatpush1.msra.mxu0 %v107
  %2195 = vmatprep.subr.mxu0 %v112
  %2196 = vmatpush1.msra.mxu0 %v111
  %2197 = vmatprep.subr.mxu0 %v116
  %2198 = vmatpush1.msra.mxu0 %v115
  %2199 = vmatprep.subr.mxu0 %v120
  %2200 = vmatpush1.msra.mxu0 %v119
  %2201 = vmatprep.subr.mxu0 %v124
  %2202 = vmatpush1.msra.mxu0 %v123
  %2203 = vmatprep.subr.mxu0 %v128
  %2204 = vmatpush1.msra.mxu0 %v127
  %2205 = vmatprep.subr.mxu0 %v132
  %2206 = vmatpush1.msra.mxu0 %v131
  %2207 = vmatprep.subr.mxu0 %v136
  %2208 = vmatpush1.msra.mxu0 %v135
  %2209 = vmatprep.subr.mxu0 %v140
  %2210 = vmatpush1.msra.mxu0 %v139
  %2211 = vmatprep.subr.mxu0 %v144
  %2212 = vmatpush1.msra.mxu0 %v143
  %2213 = vmatprep.subr.mxu0 %v148
  %2214 = vmatpush1.msra.mxu0 %v147
  %2215 = vmatprep.subr.mxu0 %v152
  %2216 = vmatpush1.msra.mxu0 %v151
  %2217 = vmatprep.subr.mxu0 %v156
  %2218 = vmatpush1.msra.mxu0 %v155
  %2219 = vmatprep.subr.mxu0 %v160
  %2220 = vmatpush1.msra.mxu0 %v159
  %2221 = vmatprep.subr.mxu0 %v164
  %2222 = vmatpush1.msra.mxu0 %v163
  %2223 = vmatprep.subr.mxu0 %v168
  %2224 = vmatpush1.msra.mxu0 %v167
  %2225 = vmatprep.subr.mxu0 %v172
  %2226 = vmatpush1.msra.mxu0 %v171
  %2227 = vmatprep.subr.mxu0 %v176
  %2228 = vmatpush1.msra.mxu0 %v175
  %2229 = vmatprep.subr.mxu0 %v180
  %2230 = vmatpush1.msra.mxu0 %v179
  %2231 = vmatprep.subr.mxu0 %v184
  %2232 = vmatpush1.msra.mxu0 %v183
  %2233 = vmatprep.subr.mxu0 %v188
  %2234 = vmatpush1.msra.mxu0 %v187
  %2235 = vmatprep.subr.mxu0 %v192
  %2236 = vmatpush1.msra.mxu0 %v191
  %2237 = vmatprep.subr.mxu0 %v196
  %2238 = vmatpush1.msra.mxu0 %v195
  %2239 = vmatprep.subr.mxu0 %v200
  %2240 = vmatpush1.msra.mxu0 %v199
  %2241 = vmatprep.subr.mxu0 %v204
  %2242 = vmatpush1.msra.mxu0 %v203
  %2243 = vmatprep.subr.mxu0 %v208
  %2244 = vmatpush1.msra.mxu0 %v207
  %2245 = vmatprep.mubr.f32.mxu0 %v1934
  %2246 = vmatmul.mubr.f32.gmra.mrb[0].mxu0 %v2109
  %v2247 = vpop.f32.mrb[0].mxu0
  %v2248 = vadd.f32 %v222, %v2247
  %v2249 = vpop.f32.mrb[0].mxu0
  %v2250 = vadd.f32 %v226, %v2249
  %2251 = vdwg.mxu0
  %v2252 = vxor.u32 %v2177, 2147483648
  %v2253 = vmul.f32 %v2252, 1.442695
  %v2254 = vpow.pop %v2253
  %v2255 = vadd.f32 %v2254, 1.0
  %v2256 = vrcp.pop %v2255
  %v2257 = vmul.f32 1.0, %v2256
  %v2258 = vxor.u32 %v2179, 2147483648
  %v2259 = vmul.f32 %v2258, 1.442695
  %v2260 = vpow.pop %v2259
  %v2261 = vadd.f32 %v2260, 1.0
  %v2262 = vrcp.pop %v2261
  %v2263 = vmul.f32 1.0, %v2262
  %v2264 = vtanh.pop %v2248
  %v2265 = vxor.u32 %v2250, 2147483648
  %v2266 = vmul.f32 %v2265, 1.442695
  %v2267 = vpow.pop %v2266
  %v2268 = vadd.f32 %v2267, 1.0
  %v2269 = vrcp.pop %v2268
  %v2270 = vmul.f32 1.0, %v2269
  %v2271 = vmul.f32 %v2263, %v1932
  %v2272 = vmul.f32 %v2257, %v2264
  %v2273 = vadd.f32 %v2271, %v2272
  %v2274 = vtanh.pop %v2273
  %v2275 = vmul.f32 %v2270, %v2274
  %s2276 = scalar_lea.vmem %s0, 192
  %v2277 = vld [vmem:[%s2276] sm:$0xff]
  %v2278 = vld [vmem:[%s2276 + $0x8] sm:$0xff]
  %v2279 = vld [vmem:[%s2276 + $0x10] sm:$0xff]
  %v2280 = vld [vmem:[%s2276 + $0x18] sm:$0xff]
  %2281 = vmatprep.subr.mxu0 %v18
  %2282 = vmatpush1.msra.mxu0 %v17
  %2283 = vmatprep.subr.mxu0 %v22
  %2284 = vmatpush1.msra.mxu0 %v21
  %2285 = vmatprep.subr.mxu0 %v26
  %2286 = vmatpush1.msra.mxu0 %v25
  %2287 = vmatprep.subr.mxu0 %v30
  %2288 = vmatpush1.msra.mxu0 %v29
  %2289 = vmatprep.subr.mxu0 %v34
  %2290 = vmatpush1.msra.mxu0 %v33
  %2291 = vmatprep.subr.mxu0 %v38
  %2292 = vmatpush1.msra.mxu0 %v37
  %2293 = vmatprep.subr.mxu0 %v42
  %2294 = vmatpush1.msra.mxu0 %v41
  %2295 = vmatprep.subr.mxu0 %v46
  %2296 = vmatpush1.msra.mxu0 %v45
  %2297 = vmatprep.subr.mxu0 %v50
  %2298 = vmatpush1.msra.mxu0 %v49
  %2299 = vmatprep.subr.mxu0 %v54
  %2300 = vmatpush1.msra.mxu0 %v53
  %2301 = vmatprep.subr.mxu0 %v58
  %2302 = vmatpush1.msra.mxu0 %v57
  %2303 = vmatprep.subr.mxu0 %v62
  %2304 = vmatpush1.msra.mxu0 %v61
  %2305 = vmatprep.subr.mxu0 %v66
  %2306 = vmatpush1.msra.mxu0 %v65
  %2307 = vmatprep.subr.mxu0 %v70
  %2308 = vmatpush1.msra.mxu0 %v69
  %2309 = vmatprep.subr.mxu0 %v74
  %2310 = vmatpush1.msra.mxu0 %v73
  %2311 = vmatprep.subr.mxu0 %v78
  %2312 = vmatpush1.msra.mxu0 %v77
  %2313 = vmatprep.subr.mxu0 0.0
  %2314 = vmatpush1.msra.mxu0 0.0
  %2315 = vmatprep.subr.mxu0 0.0
  %2316 = vmatpush1.msra.mxu0 0.0
  %2317 = vmatprep.subr.mxu0 0.0
  %2318 = vmatpush1.msra.mxu0 0.0
  %2319 = vmatprep.subr.mxu0 0.0
  %2320 = vmatpush1.msra.mxu0 0.0
  %2321 = vmatprep.subr.mxu0 0.0
  %2322 = vmatpush1.msra.mxu0 0.0
  %2323 = vmatprep.subr.mxu0 0.0
  %2324 = vmatpush1.msra.mxu0 0.0
  %2325 = vmatprep.subr.mxu0 0.0
  %2326 = vmatpush1.msra.mxu0 0.0
  %2327 = vmatprep.subr.mxu0 0.0
  %2328 = vmatpush1.msra.mxu0 0.0
  %2329 = vmatprep.subr.mxu0 0.0
  %2330 = vmatpush1.msra.mxu0 0.0
  %2331 = vmatprep.subr.mxu0 0.0
  %2332 = vmatpush1.msra.mxu0 0.0
  %2333 = vmatprep.subr.mxu0 0.0
  %2334 = vmatpush1.msra.mxu0 0.0
  %2335 = vmatprep.subr.mxu0 0.0
  %2336 = vmatpush1.msra.mxu0 0.0
  %2337 = vmatprep.subr.mxu0 0.0
  %2338 = vmatpush1.msra.mxu0 0.0
  %2339 = vmatprep.subr.mxu0 0.0
  %2340 = vmatpush1.msra.mxu0 0.0
  %2341 = vmatprep.subr.mxu0 0.0
  %2342 = vmatpush1.msra.mxu0 0.0
  %2343 = vmatprep.subr.mxu0 0.0
  %2344 = vmatpush1.msra.mxu0 0.0
  %2345 = vmatprep.mubr.f32.mxu0 0.0
  %2346 = vmatmul.mubr.f32.gmra.mrb[0].mxu0 %v2109
  %v2347 = vpop.f32.mrb[0].mxu0
  %v2348 = vadd.f32 0.0, %v2347
  %v2349 = vpop.f32.mrb[0].mxu0
  %v2350 = vadd.f32 0.0, %v2349
  %2351 = vdwg.mxu0
  %2352 = vmatprep.subr.mxu0 %v20
  %2353 = vmatpush1.msra.mxu0 %v19
  %2354 = vmatprep.subr.mxu0 %v24
  %2355 = vmatpush1.msra.mxu0 %v23
  %2356 = vmatprep.subr.mxu0 %v28
  %2357 = vmatpush1.msra.mxu0 %v27
  %2358 = vmatprep.subr.mxu0 %v32
  %2359 = vmatpush1.msra.mxu0 %v31
  %2360 = vmatprep.subr.mxu0 %v36
  %2361 = vmatpush1.msra.mxu0 %v35
  %2362 = vmatprep.subr.mxu0 %v40
  %2363 = vmatpush1.msra.mxu0 %v39
  %2364 = vmatprep.subr.mxu0 %v44
  %2365 = vmatpush1.msra.mxu0 %v43
  %2366 = vmatprep.subr.mxu0 %v48
  %2367 = vmatpush1.msra.mxu0 %v47
  %2368 = vmatprep.subr.mxu0 %v52
  %2369 = vmatpush1.msra.mxu0 %v51
  %2370 = vmatprep.subr.mxu0 %v56
  %2371 = vmatpush1.msra.mxu0 %v55
  %2372 = vmatprep.subr.mxu0 %v60
  %2373 = vmatpush1.msra.mxu0 %v59
  %2374 = vmatprep.subr.mxu0 %v64
  %2375 = vmatpush1.msra.mxu0 %v63
  %2376 = vmatprep.subr.mxu0 %v68
  %2377 = vmatpush1.msra.mxu0 %v67
  %2378 = vmatprep.subr.mxu0 %v72
  %2379 = vmatpush1.msra.mxu0 %v71
  %2380 = vmatprep.subr.mxu0 %v76
  %2381 = vmatpush1.msra.mxu0 %v75
  %2382 = vmatprep.subr.mxu0 %v80
  %2383 = vmatpush1.msra.mxu0 %v79
  %2384 = vmatprep.subr.mxu0 0.0
  %2385 = vmatpush1.msra.mxu0 0.0
  %2386 = vmatprep.subr.mxu0 0.0
  %2387 = vmatpush1.msra.mxu0 0.0
  %2388 = vmatprep.subr.mxu0 0.0
  %2389 = vmatpush1.msra.mxu0 0.0
  %2390 = vmatprep.subr.mxu0 0.0
  %2391 = vmatpush1.msra.mxu0 0.0
  %2392 = vmatprep.subr.mxu0 0.0
  %2393 = vmatpush1.msra.mxu0 0.0
  %2394 = vmatprep.subr.mxu0 0.0
  %2395 = vmatpush1.msra.mxu0 0.0
  %2396 = vmatprep.subr.mxu0 0.0
  %2397 = vmatpush1.msra.mxu0 0.0
  %2398 = vmatprep.subr.mxu0 0.0
  %2399 = vmatpush1.msra.mxu0 0.0
  %2400 = vmatprep.subr.mxu0 0.0
  %2401 = vmatpush1.msra.mxu0 0.0
  %2402 = vmatprep.subr.mxu0 0.0
  %2403 = vmatpush1.msra.mxu0 0.0
  %2404 = vmatprep.subr.mxu0 0.0
  %2405 = vmatpush1.msra.mxu0 0.0
  %2406 = vmatprep.subr.mxu0 0.0
  %2407 = vmatpush1.msra.mxu0 0.0
  %2408 = vmatprep.subr.mxu0 0.0
  %2409 = vmatpush1.msra.mxu0 0.0
  %2410 = vmatprep.subr.mxu0 0.0
  %2411 = vmatpush1.msra.mxu0 0.0
  %2412 = vmatprep.subr.mxu0 0.0
  %2413 = vmatpush1.msra.mxu0 0.0
  %2414 = vmatprep.subr.mxu0 0.0
  %2415 = vmatpush1.msra.mxu0 0.0
  %2416 = vmatprep.mubr.f32.mxu0 0.0
  %2417 = vmatmul.mubr.f32.gmra.mrb[0].mxu0 %v2109
  %v2418 = vpop.f32.mrb[0].mxu0
  %v2419 = vadd.f32 0.0, %v2418
  %v2420 = vpop.f32.mrb[0].mxu0
  %v2421 = vadd.f32 0.0, %v2420
  %2422 = vdwg.mxu0
  %v2423 = vadd.f32 %v2277, %v2348
  %v2424 = vadd.f32 %v2278, %v2350
  %v2425 = vadd.f32 %v2279, %v2419
  %v2426 = vadd.f32 %v2280, %v2421
  %v2427 = vxor.u32 %v2423, 2147483648
  %v2428 = vmul.f32 %v2427, 1.442695
  %v2429 = vpow.pop %v2428
  %v2430 = vadd.f32 %v2429, 1.0
  %v2431 = vrcp.pop %v2430
  %v2432 = vmul.f32 1.0, %v2431
  %v2433 = vxor.u32 %v2424, 2147483648
  %v2434 = vmul.f32 %v2433, 1.442695
  %v2435 = vpow.pop %v2434
  %v2436 = vadd.f32 %v2435, 1.0
  %v2437 = vrcp.pop %v2436
  %v2438 = vmul.f32 1.0, %v2437
  %v2439 = vtanh.pop %v2425
  %v2440 = vxor.u32 %v2426, 2147483648
  %v2441 = vmul.f32 %v2440, 1.442695
  %v2442 = vpow.pop %v2441
  %v2443 = vadd.f32 %v2442, 1.0
  %v2444 = vrcp.pop %v2443
  %v2445 = vmul.f32 1.0, %v2444
  %v2446 = vmul.f32 %v2438, %v2107
  %v2447 = vmul.f32 %v2432, %v2439
  %v2448 = vadd.f32 %v2446, %v2447
  %v2449 = vtanh.pop %v2448
  %v2450 = vmul.f32 %v2445, %v2449
  %2451 = vmatprep.subr.mxu0 %v82
  %2452 = vmatpush1.msra.mxu0 %v81
  %2453 = vmatprep.subr.mxu0 %v86
  %2454 = vmatpush1.msra.mxu0 %v85
  %2455 = vmatprep.subr.mxu0 %v90
  %2456 = vmatpush1.msra.mxu0 %v89
  %2457 = vmatprep.subr.mxu0 %v94
  %2458 = vmatpush1.msra.mxu0 %v93
  %2459 = vmatprep.subr.mxu0 %v98
  %2460 = vmatpush1.msra.mxu0 %v97
  %2461 = vmatprep.subr.mxu0 %v102
  %2462 = vmatpush1.msra.mxu0 %v101
  %2463 = vmatprep.subr.mxu0 %v106
  %2464 = vmatpush1.msra.mxu0 %v105
  %2465 = vmatprep.subr.mxu0 %v110
  %2466 = vmatpush1.msra.mxu0 %v109
  %2467 = vmatprep.subr.mxu0 %v114
  %2468 = vmatpush1.msra.mxu0 %v113
  %2469 = vmatprep.subr.mxu0 %v118
  %2470 = vmatpush1.msra.mxu0 %v117
  %2471 = vmatprep.subr.mxu0 %v122
  %2472 = vmatpush1.msra.mxu0 %v121
  %2473 = vmatprep.subr.mxu0 %v126
  %2474 = vmatpush1.msra.mxu0 %v125
  %2475 = vmatprep.subr.mxu0 %v130
  %2476 = vmatpush1.msra.mxu0 %v129
  %2477 = vmatprep.subr.mxu0 %v134
  %2478 = vmatpush1.msra.mxu0 %v133
  %2479 = vmatprep.subr.mxu0 %v138
  %2480 = vmatpush1.msra.mxu0 %v137
  %2481 = vmatprep.subr.mxu0 %v142
  %2482 = vmatpush1.msra.mxu0 %v141
  %2483 = vmatprep.subr.mxu0 %v146
  %2484 = vmatpush1.msra.mxu0 %v145
  %2485 = vmatprep.subr.mxu0 %v150
  %2486 = vmatpush1.msra.mxu0 %v149
  %2487 = vmatprep.subr.mxu0 %v154
  %2488 = vmatpush1.msra.mxu0 %v153
  %2489 = vmatprep.subr.mxu0 %v158
  %2490 = vmatpush1.msra.mxu0 %v157
  %2491 = vmatprep.subr.mxu0 %v162
  %2492 = vmatpush1.msra.mxu0 %v161
  %2493 = vmatprep.subr.mxu0 %v166
  %2494 = vmatpush1.msra.mxu0 %v165
  %2495 = vmatprep.subr.mxu0 %v170
  %2496 = vmatpush1.msra.mxu0 %v169
  %2497 = vmatprep.subr.mxu0 %v174
  %2498 = vmatpush1.msra.mxu0 %v173
  %2499 = vmatprep.subr.mxu0 %v178
  %2500 = vmatpush1.msra.mxu0 %v177
  %2501 = vmatprep.subr.mxu0 %v182
  %2502 = vmatpush1.msra.mxu0 %v181
  %2503 = vmatprep.subr.mxu0 %v186
  %2504 = vmatpush1.msra.mxu0 %v185
  %2505 = vmatprep.subr.mxu0 %v190
  %2506 = vmatpush1.msra.mxu0 %v189
  %2507 = vmatprep.subr.mxu0 %v194
  %2508 = vmatpush1.msra.mxu0 %v193
  %2509 = vmatprep.subr.mxu0 %v198
  %2510 = vmatpush1.msra.mxu0 %v197
  %2511 = vmatprep.subr.mxu0 %v202
  %2512 = vmatpush1.msra.mxu0 %v201
  %2513 = vmatprep.subr.mxu0 %v206
  %2514 = vmatpush1.msra.mxu0 %v205
  %2515 = vmatprep.mubr.f32.mxu0 %v2275
  %2516 = vmatmul.mubr.f32.gmra.mrb[0].mxu0 %v2450
  %v2517 = vpop.f32.mrb[0].mxu0
  %v2518 = vadd.f32 %v214, %v2517
  %v2519 = vpop.f32.mrb[0].mxu0
  %v2520 = vadd.f32 %v218, %v2519
  %2521 = vdwg.mxu0
  %2522 = vmatprep.subr.mxu0 %v84
  %2523 = vmatpush1.msra.mxu0 %v83
  %2524 = vmatprep.subr.mxu0 %v88
  %2525 = vmatpush1.msra.mxu0 %v87
  %2526 = vmatprep.subr.mxu0 %v92
  %2527 = vmatpush1.msra.mxu0 %v91
  %2528 = vmatprep.subr.mxu0 %v96
  %2529 = vmatpush1.msra.mxu0 %v95
  %2530 = vmatprep.subr.mxu0 %v100
  %2531 = vmatpush1.msra.mxu0 %v99
  %2532 = vmatprep.subr.mxu0 %v104
  %2533 = vmatpush1.msra.mxu0 %v103
  %2534 = vmatprep.subr.mxu0 %v108
  %2535 = vmatpush1.msra.mxu0 %v107
  %2536 = vmatprep.subr.mxu0 %v112
  %2537 = vmatpush1.msra.mxu0 %v111
  %2538 = vmatprep.subr.mxu0 %v116
  %2539 = vmatpush1.msra.mxu0 %v115
  %2540 = vmatprep.subr.mxu0 %v120
  %2541 = vmatpush1.msra.mxu0 %v119
  %2542 = vmatprep.subr.mxu0 %v124
  %2543 = vmatpush1.msra.mxu0 %v123
  %2544 = vmatprep.subr.mxu0 %v128
  %2545 = vmatpush1.msra.mxu0 %v127
  %2546 = vmatprep.subr.mxu0 %v132
  %2547 = vmatpush1.msra.mxu0 %v131
  %2548 = vmatprep.subr.mxu0 %v136
  %2549 = vmatpush1.msra.mxu0 %v135
  %2550 = vmatprep.subr.mxu0 %v140
  %2551 = vmatpush1.msra.mxu0 %v139
  %2552 = vmatprep.subr.mxu0 %v144
  %2553 = vmatpush1.msra.mxu0 %v143
  %2554 = vmatprep.subr.mxu0 %v148
  %2555 = vmatpush1.msra.mxu0 %v147
  %2556 = vmatprep.subr.mxu0 %v152
  %2557 = vmatpush1.msra.mxu0 %v151
  %2558 = vmatprep.subr.mxu0 %v156
  %2559 = vmatpush1.msra.mxu0 %v155
  %2560 = vmatprep.subr.mxu0 %v160
  %2561 = vmatpush1.msra.mxu0 %v159
  %2562 = vmatprep.subr.mxu0 %v164
  %2563 = vmatpush1.msra.mxu0 %v163
  %2564 = vmatprep.subr.mxu0 %v168
  %2565 = vmatpush1.msra.mxu0 %v167
  %2566 = vmatprep.subr.mxu0 %v172
  %2567 = vmatpush1.msra.mxu0 %v171
  %2568 = vmatprep.subr.mxu0 %v176
  %2569 = vmatpush1.msra.mxu0 %v175
  %2570 = vmatprep.subr.mxu0 %v180
  %2571 = vmatpush1.msra.mxu0 %v179
  %2572 = vmatprep.subr.mxu0 %v184
  %2573 = vmatpush1.msra.mxu0 %v183
  %2574 = vmatprep.subr.mxu0 %v188
  %2575 = vmatpush1.msra.mxu0 %v187
  %2576 = vmatprep.subr.mxu0 %v192
  %2577 = vmatpush1.msra.mxu0 %v191
  %2578 = vmatprep.subr.mxu0 %v196
  %2579 = vmatpush1.msra.mxu0 %v195
  %2580 = vmatprep.subr.mxu0 %v200
  %2581 = vmatpush1.msra.mxu0 %v199
  %2582 = vmatprep.subr.mxu0 %v204
  %2583 = vmatpush1.msra.mxu0 %v203
  %2584 = vmatprep.subr.mxu0 %v208
  %2585 = vmatpush1.msra.mxu0 %v207
  %2586 = vmatprep.mubr.f32.mxu0 %v2275
  %2587 = vmatmul.mubr.f32.gmra.mrb[0].mxu0 %v2450
  %v2588 = vpop.f32.mrb[0].mxu0
  %v2589 = vadd.f32 %v222, %v2588
  %v2590 = vpop.f32.mrb[0].mxu0
  %v2591 = vadd.f32 %v226, %v2590
  %2592 = vdwg.mxu0
  %v2593 = vxor.u32 %v2518, 2147483648
  %v2594 = vmul.f32 %v2593, 1.442695
  %v2595 = vpow.pop %v2594
  %v2596 = vadd.f32 %v2595, 1.0
  %v2597 = vrcp.pop %v2596
  %v2598 = vmul.f32 1.0, %v2597
  %v2599 = vxor.u32 %v2520, 2147483648
  %v2600 = vmul.f32 %v2599, 1.442695
  %v2601 = vpow.pop %v2600
  %v2602 = vadd.f32 %v2601, 1.0
  %v2603 = vrcp.pop %v2602
  %v2604 = vmul.f32 1.0, %v2603
  %v2605 = vtanh.pop %v2589
  %v2606 = vxor.u32 %v2591, 2147483648
  %v2607 = vmul.f32 %v2606, 1.442695
  %v2608 = vpow.pop %v2607
  %v2609 = vadd.f32 %v2608, 1.0
  %v2610 = vrcp.pop %v2609
  %v2611 = vmul.f32 1.0, %v2610
  %v2612 = vmul.f32 %v2604, %v2273
  %v2613 = vmul.f32 %v2598, %v2605
  %v2614 = vadd.f32 %v2612, %v2613
  %v2615 = vtanh.pop %v2614
  %v2616 = vmul.f32 %v2611, %v2615
  %s2617 = scalar_lea.vmem %s0, 224
  %v2618 = vld [vmem:[%s2617] sm:$0xff]
  %v2619 = vld [vmem:[%s2617 + $0x8] sm:$0xff]
  %v2620 = vld [vmem:[%s2617 + $0x10] sm:$0xff]
  %v2621 = vld [vmem:[%s2617 + $0x18] sm:$0xff]
  %2622 = vmatprep.subr.mxu0 %v18
  %2623 = vmatpush1.msra.mxu0 %v17
  %2624 = vmatprep.subr.mxu0 %v22
  %2625 = vmatpush1.msra.mxu0 %v21
  %2626 = vmatprep.subr.mxu0 %v26
  %2627 = vmatpush1.msra.mxu0 %v25
  %2628 = vmatprep.subr.mxu0 %v30
  %2629 = vmatpush1.msra.mxu0 %v29
  %2630 = vmatprep.subr.mxu0 %v34
  %2631 = vmatpush1.msra.mxu0 %v33
  %2632 = vmatprep.subr.mxu0 %v38
  %2633 = vmatpush1.msra.mxu0 %v37
  %2634 = vmatprep.subr.mxu0 %v42
  %2635 = vmatpush1.msra.mxu0 %v41
  %2636 = vmatprep.subr.mxu0 %v46
  %2637 = vmatpush1.msra.mxu0 %v45
  %2638 = vmatprep.subr.mxu0 %v50
  %2639 = vmatpush1.msra.mxu0 %v49
  %2640 = vmatprep.subr.mxu0 %v54
  %2641 = vmatpush1.msra.mxu0 %v53
  %2642 = vmatprep.subr.mxu0 %v58
  %2643 = vmatpush1.msra.mxu0 %v57
  %2644 = vmatprep.subr.mxu0 %v62
  %2645 = vmatpush1.msra.mxu0 %v61
  %2646 = vmatprep.subr.mxu0 %v66
  %2647 = vmatpush1.msra.mxu0 %v65
  %2648 = vmatprep.subr.mxu0 %v70
  %2649 = vmatpush1.msra.mxu0 %v69
  %2650 = vmatprep.subr.mxu0 %v74
  %2651 = vmatpush1.msra.mxu0 %v73
  %2652 = vmatprep.subr.mxu0 %v78
  %2653 = vmatpush1.msra.mxu0 %v77
  %2654 = vmatprep.subr.mxu0 0.0
  %2655 = vmatpush1.msra.mxu0 0.0
  %2656 = vmatprep.subr.mxu0 0.0
  %2657 = vmatpush1.msra.mxu0 0.0
  %2658 = vmatprep.subr.mxu0 0.0
  %2659 = vmatpush1.msra.mxu0 0.0
  %2660 = vmatprep.subr.mxu0 0.0
  %2661 = vmatpush1.msra.mxu0 0.0
  %2662 = vmatprep.subr.mxu0 0.0
  %2663 = vmatpush1.msra.mxu0 0.0
  %2664 = vmatprep.subr.mxu0 0.0
  %2665 = vmatpush1.msra.mxu0 0.0
  %2666 = vmatprep.subr.mxu0 0.0
  %2667 = vmatpush1.msra.mxu0 0.0
  %2668 = vmatprep.subr.mxu0 0.0
  %2669 = vmatpush1.msra.mxu0 0.0
  %2670 = vmatprep.subr.mxu0 0.0
  %2671 = vmatpush1.msra.mxu0 0.0
  %2672 = vmatprep.subr.mxu0 0.0
  %2673 = vmatpush1.msra.mxu0 0.0
  %2674 = vmatprep.subr.mxu0 0.0
  %2675 = vmatpush1.msra.mxu0 0.0
  %2676 = vmatprep.subr.mxu0 0.0
  %2677 = vmatpush1.msra.mxu0 0.0
  %2678 = vmatprep.subr.mxu0 0.0
  %2679 = vmatpush1.msra.mxu0 0.0
  %2680 = vmatprep.subr.mxu0 0.0
  %2681 = vmatpush1.msra.mxu0 0.0
  %2682 = vmatprep.subr.mxu0 0.0
  %2683 = vmatpush1.msra.mxu0 0.0
  %2684 = vmatprep.subr.mxu0 0.0
  %2685 = vmatpush1.msra.mxu0 0.0
  %2686 = vmatprep.mubr.f32.mxu0 0.0
  %2687 = vmatmul.mubr.f32.gmra.mrb[0].mxu0 %v2450
  %v2688 = vpop.f32.mrb[0].mxu0
  %v2689 = vadd.f32 0.0, %v2688
  %v2690 = vpop.f32.mrb[0].mxu0
  %v2691 = vadd.f32 0.0, %v2690
  %2692 = vdwg.mxu0
  %2693 = vmatprep.subr.mxu0 %v20
  %2694 = vmatpush1.msra.mxu0 %v19
  %2695 = vmatprep.subr.mxu0 %v24
  %2696 = vmatpush1.msra.mxu0 %v23
  %2697 = vmatprep.subr.mxu0 %v28
  %2698 = vmatpush1.msra.mxu0 %v27
  %2699 = vmatprep.subr.mxu0 %v32
  %2700 = vmatpush1.msra.mxu0 %v31
  %2701 = vmatprep.subr.mxu0 %v36
  %2702 = vmatpush1.msra.mxu0 %v35
  %2703 = vmatprep.subr.mxu0 %v40
  %2704 = vmatpush1.msra.mxu0 %v39
  %2705 = vmatprep.subr.mxu0 %v44
  %2706 = vmatpush1.msra.mxu0 %v43
  %2707 = vmatprep.subr.mxu0 %v48
  %2708 = vmatpush1.msra.mxu0 %v47
  %2709 = vmatprep.subr.mxu0 %v52
  %2710 = vmatpush1.msra.mxu0 %v51
  %2711 = vmatprep.subr.mxu0 %v56
  %2712 = vmatpush1.msra.mxu0 %v55
  %2713 = vmatprep.subr.mxu0 %v60
  %2714 = vmatpush1.msra.mxu0 %v59
  %2715 = vmatprep.subr.mxu0 %v64
  %2716 = vmatpush1.msra.mxu0 %v63
  %2717 = vmatprep.subr.mxu0 %v68
  %2718 = vmatpush1.msra.mxu0 %v67
  %2719 = vmatprep.subr.mxu0 %v72
  %2720 = vmatpush1.msra.mxu0 %v71
  %2721 = vmatprep.subr.mxu0 %v76
  %2722 = vmatpush1.msra.mxu0 %v75
  %2723 = vmatprep.subr.mxu0 %v80
  %2724 = vmatpush1.msra.mxu0 %v79
  %2725 = vmatprep.subr.mxu0 0.0
  %2726 = vmatpush1.msra.mxu0 0.0
  %2727 = vmatprep.subr.mxu0 0.0
  %2728 = vmatpush1.msra.mxu0 0.0
  %2729 = vmatprep.subr.mxu0 0.0
  %2730 = vmatpush1.msra.mxu0 0.0
  %2731 = vmatprep.subr.mxu0 0.0
  %2732 = vmatpush1.msra.mxu0 0.0
  %2733 = vmatprep.subr.mxu0 0.0
  %2734 = vmatpush1.msra.mxu0 0.0
  %2735 = vmatprep.subr.mxu0 0.0
  %2736 = vmatpush1.msra.mxu0 0.0
  %2737 = vmatprep.subr.mxu0 0.0
  %2738 = vmatpush1.msra.mxu0 0.0
  %2739 = vmatprep.subr.mxu0 0.0
  %2740 = vmatpush1.msra.mxu0 0.0
  %2741 = vmatprep.subr.mxu0 0.0
  %2742 = vmatpush1.msra.mxu0 0.0
  %2743 = vmatprep.subr.mxu0 0.0
  %2744 = vmatpush1.msra.mxu0 0.0
  %2745 = vmatprep.subr.mxu0 0.0
  %2746 = vmatpush1.msra.mxu0 0.0
  %2747 = vmatprep.subr.mxu0 0.0
  %2748 = vmatpush1.msra.mxu0 0.0
  %2749 = vmatprep.subr.mxu0 0.0
  %2750 = vmatpush1.msra.mxu0 0.0
  %2751 = vmatprep.subr.mxu0 0.0
  %2752 = vmatpush1.msra.mxu0 0.0
  %2753 = vmatprep.subr.mxu0 0.0
  %2754 = vmatpush1.msra.mxu0 0.0
  %2755 = vmatprep.subr.mxu0 0.0
  %2756 = vmatpush1.msra.mxu0 0.0
  %2757 = vmatprep.mubr.f32.mxu0 0.0
  %2758 = vmatmul.mubr.f32.gmra.mrb[0].mxu0 %v2450
  %v2759 = vpop.f32.mrb[0].mxu0
  %v2760 = vadd.f32 0.0, %v2759
  %v2761 = vpop.f32.mrb[0].mxu0
  %v2762 = vadd.f32 0.0, %v2761
  %2763 = vdwg.mxu0
  %v2764 = vadd.f32 %v2618, %v2689
  %v2765 = vadd.f32 %v2619, %v2691
  %v2766 = vadd.f32 %v2620, %v2760
  %v2767 = vadd.f32 %v2621, %v2762
  %v2768 = vxor.u32 %v2764, 2147483648
  %v2769 = vmul.f32 %v2768, 1.442695
  %v2770 = vpow.pop %v2769
  %v2771 = vadd.f32 %v2770, 1.0
  %v2772 = vrcp.pop %v2771
  %v2773 = vmul.f32 1.0, %v2772
  %v2774 = vxor.u32 %v2765, 2147483648
  %v2775 = vmul.f32 %v2774, 1.442695
  %v2776 = vpow.pop %v2775
  %v2777 = vadd.f32 %v2776, 1.0
  %v2778 = vrcp.pop %v2777
  %v2779 = vmul.f32 1.0, %v2778
  %v2780 = vtanh.pop %v2766
  %v2781 = vxor.u32 %v2767, 2147483648
  %v2782 = vmul.f32 %v2781, 1.442695
  %v2783 = vpow.pop %v2782
  %v2784 = vadd.f32 %v2783, 1.0
  %v2785 = vrcp.pop %v2784
  %v2786 = vmul.f32 1.0, %v2785
  %v2787 = vmul.f32 %v2779, %v2448
  %v2788 = vmul.f32 %v2773, %v2780
  %v2789 = vadd.f32 %v2787, %v2788
  %v2790 = vtanh.pop %v2789
  %v2791 = vmul.f32 %v2786, %v2790
  %2792 = vmatprep.subr.mxu0 %v82
  %2793 = vmatpush1.msra.mxu0 %v81
  %2794 = vmatprep.subr.mxu0 %v86
  %2795 = vmatpush1.msra.mxu0 %v85
  %2796 = vmatprep.subr.mxu0 %v90
  %2797 = vmatpush1.msra.mxu0 %v89
  %2798 = vmatprep.subr.mxu0 %v94
  %2799 = vmatpush1.msra.mxu0 %v93
  %2800 = vmatprep.subr.mxu0 %v98
  %2801 = vmatpush1.msra.mxu0 %v97
  %2802 = vmatprep.subr.mxu0 %v102
  %2803 = vmatpush1.msra.mxu0 %v101
  %2804 = vmatprep.subr.mxu0 %v106
  %2805 = vmatpush1.msra.mxu0 %v105
  %2806 = vmatprep.subr.mxu0 %v110
  %2807 = vmatpush1.msra.mxu0 %v109
  %2808 = vmatprep.subr.mxu0 %v114
  %2809 = vmatpush1.msra.mxu0 %v113
  %2810 = vmatprep.subr.mxu0 %v118
  %2811 = vmatpush1.msra.mxu0 %v117
  %2812 = vmatprep.subr.mxu0 %v122
  %2813 = vmatpush1.msra.mxu0 %v121
  %2814 = vmatprep.subr.mxu0 %v126
  %2815 = vmatpush1.msra.mxu0 %v125
  %2816 = vmatprep.subr.mxu0 %v130
  %2817 = vmatpush1.msra.mxu0 %v129
  %2818 = vmatprep.subr.mxu0 %v134
  %2819 = vmatpush1.msra.mxu0 %v133
  %2820 = vmatprep.subr.mxu0 %v138
  %2821 = vmatpush1.msra.mxu0 %v137
  %2822 = vmatprep.subr.mxu0 %v142
  %2823 = vmatpush1.msra.mxu0 %v141
  %2824 = vmatprep.subr.mxu0 %v146
  %2825 = vmatpush1.msra.mxu0 %v145
  %2826 = vmatprep.subr.mxu0 %v150
  %2827 = vmatpush1.msra.mxu0 %v149
  %2828 = vmatprep.subr.mxu0 %v154
  %2829 = vmatpush1.msra.mxu0 %v153
  %2830 = vmatprep.subr.mxu0 %v158
  %2831 = vmatpush1.msra.mxu0 %v157
  %2832 = vmatprep.subr.mxu0 %v162
  %2833 = vmatpush1.msra.mxu0 %v161
  %2834 = vmatprep.subr.mxu0 %v166
  %2835 = vmatpush1.msra.mxu0 %v165
  %2836 = vmatprep.subr.mxu0 %v170
  %2837 = vmatpush1.msra.mxu0 %v169
  %2838 = vmatprep.subr.mxu0 %v174
  %2839 = vmatpush1.msra.mxu0 %v173
  %2840 = vmatprep.subr.mxu0 %v178
  %2841 = vmatpush1.msra.mxu0 %v177
  %2842 = vmatprep.subr.mxu0 %v182
  %2843 = vmatpush1.msra.mxu0 %v181
  %2844 = vmatprep.subr.mxu0 %v186
  %2845 = vmatpush1.msra.mxu0 %v185
  %2846 = vmatprep.subr.mxu0 %v190
  %2847 = vmatpush1.msra.mxu0 %v189
  %2848 = vmatprep.subr.mxu0 %v194
  %2849 = vmatpush1.msra.mxu0 %v193
  %2850 = vmatprep.subr.mxu0 %v198
  %2851 = vmatpush1.msra.mxu0 %v197
  %2852 = vmatprep.subr.mxu0 %v202
  %2853 = vmatpush1.msra.mxu0 %v201
  %2854 = vmatprep.subr.mxu0 %v206
  %2855 = vmatpush1.msra.mxu0 %v205
  %2856 = vmatprep.mubr.f32.mxu0 %v2616
  %2857 = vmatmul.mubr.f32.gmra.mrb[0].mxu0 %v2791
  %v2858 = vpop.f32.mrb[0].mxu0
  %v2859 = vadd.f32 %v214, %v2858
  %v2860 = vpop.f32.mrb[0].mxu0
  %v2861 = vadd.f32 %v218, %v2860
  %2862 = vdwg.mxu0
  %2863 = vmatprep.subr.mxu0 %v84
  %2864 = vmatpush1.msra.mxu0 %v83
  %2865 = vmatprep.subr.mxu0 %v88
  %2866 = vmatpush1.msra.mxu0 %v87
  %2867 = vmatprep.subr.mxu0 %v92
  %2868 = vmatpush1.msra.mxu0 %v91
  %2869 = vmatprep.subr.mxu0 %v96
  %2870 = vmatpush1.msra.mxu0 %v95
  %2871 = vmatprep.subr.mxu0 %v100
  %2872 = vmatpush1.msra.mxu0 %v99
  %2873 = vmatprep.subr.mxu0 %v104
  %2874 = vmatpush1.msra.mxu0 %v103
  %2875 = vmatprep.subr.mxu0 %v108
  %2876 = vmatpush1.msra.mxu0 %v107
  %2877 = vmatprep.subr.mxu0 %v112
  %2878 = vmatpush1.msra.mxu0 %v111
  %2879 = vmatprep.subr.mxu0 %v116
  %2880 = vmatpush1.msra.mxu0 %v115
  %2881 = vmatprep.subr.mxu0 %v120
  %2882 = vmatpush1.msra.mxu0 %v119
  %2883 = vmatprep.subr.mxu0 %v124
  %2884 = vmatpush1.msra.mxu0 %v123
  %2885 = vmatprep.subr.mxu0 %v128
  %2886 = vmatpush1.msra.mxu0 %v127
  %2887 = vmatprep.subr.mxu0 %v132
  %2888 = vmatpush1.msra.mxu0 %v131
  %2889 = vmatprep.subr.mxu0 %v136
  %2890 = vmatpush1.msra.mxu0 %v135
  %2891 = vmatprep.subr.mxu0 %v140
  %2892 = vmatpush1.msra.mxu0 %v139
  %2893 = vmatprep.subr.mxu0 %v144
  %2894 = vmatpush1.msra.mxu0 %v143
  %2895 = vmatprep.subr.mxu0 %v148
  %2896 = vmatpush1.msra.mxu0 %v147
  %2897 = vmatprep.subr.mxu0 %v152
  %2898 = vmatpush1.msra.mxu0 %v151
  %2899 = vmatprep.subr.mxu0 %v156
  %2900 = vmatpush1.msra.mxu0 %v155
  %2901 = vmatprep.subr.mxu0 %v160
  %2902 = vmatpush1.msra.mxu0 %v159
  %2903 = vmatprep.subr.mxu0 %v164
  %2904 = vmatpush1.msra.mxu0 %v163
  %2905 = vmatprep.subr.mxu0 %v168
  %2906 = vmatpush1.msra.mxu0 %v167
  %2907 = vmatprep.subr.mxu0 %v172
  %2908 = vmatpush1.msra.mxu0 %v171
  %2909 = vmatprep.subr.mxu0 %v176
  %2910 = vmatpush1.msra.mxu0 %v175
  %2911 = vmatprep.subr.mxu0 %v180
  %2912 = vmatpush1.msra.mxu0 %v179
  %2913 = vmatprep.subr.mxu0 %v184
  %2914 = vmatpush1.msra.mxu0 %v183
  %2915 = vmatprep.subr.mxu0 %v188
  %2916 = vmatpush1.msra.mxu0 %v187
  %2917 = vmatprep.subr.mxu0 %v192
  %2918 = vmatpush1.msra.mxu0 %v191
  %2919 = vmatprep.subr.mxu0 %v196
  %2920 = vmatpush1.msra.mxu0 %v195
  %2921 = vmatprep.subr.mxu0 %v200
  %2922 = vmatpush1.msra.mxu0 %v199
  %2923 = vmatprep.subr.mxu0 %v204
  %2924 = vmatpush1.msra.mxu0 %v203
  %2925 = vmatprep.subr.mxu0 %v208
  %2926 = vmatpush1.msra.mxu0 %v207
  %2927 = vmatprep.mubr.f32.mxu0 %v2616
  %2928 = vmatmul.mubr.f32.gmra.mrb[0].mxu0 %v2791
  %v2929 = vpop.f32.mrb[0].mxu0
  %v2930 = vadd.f32 %v222, %v2929
  %v2931 = vpop.f32.mrb[0].mxu0
  %v2932 = vadd.f32 %v226, %v2931
  %2933 = vdwg.mxu0
  %v2934 = vxor.u32 %v2859, 2147483648
  %v2935 = vmul.f32 %v2934, 1.442695
  %v2936 = vpow.pop %v2935
  %v2937 = vadd.f32 %v2936, 1.0
  %v2938 = vrcp.pop %v2937
  %v2939 = vmul.f32 1.0, %v2938
  %v2940 = vxor.u32 %v2861, 2147483648
  %v2941 = vmul.f32 %v2940, 1.442695
  %v2942 = vpow.pop %v2941
  %v2943 = vadd.f32 %v2942, 1.0
  %v2944 = vrcp.pop %v2943
  %v2945 = vmul.f32 1.0, %v2944
  %v2946 = vtanh.pop %v2930
  %v2947 = vxor.u32 %v2932, 2147483648
  %v2948 = vmul.f32 %v2947, 1.442695
  %v2949 = vpow.pop %v2948
  %v2950 = vadd.f32 %v2949, 1.0
  %v2951 = vrcp.pop %v2950
  %v2952 = vmul.f32 1.0, %v2951
  %v2953 = vmul.f32 %v2945, %v2614
  %v2954 = vmul.f32 %v2939, %v2946
  %v2955 = vadd.f32 %v2953, %v2954
  %v2956 = vtanh.pop %v2955
  %v2957 = vmul.f32 %v2952, %v2956
  %2958 = vst [vmem:[%s4] sm:$0xff] %v2957
  // Predicated region
  $region18: #{lstm_model_forward.1} parent=0 // pred_check
    _
  $region19: #{lstm_model_forward.1} parent=0 // pred_check_branch
    %2960 = sbr.rel (0) target = $region21
  $region20: #{lstm_model_forward.1} parent=0 // pred_region
    _
  $region21: #{lstm_model_forward.1} parent=0 // pred_fallthru
    _
  // Predicated region
  $region22: #{lstm_model_forward.1} parent=0 // pred_check
    _
  $region23: #{lstm_model_forward.1} parent=0 // pred_check_branch
    %2962 = sbr.rel (0) target = $region25
  $region24: #{lstm_model_forward.1} parent=0 // pred_region
    _
  $region25: #{lstm_model_forward.1} parent=0 // pred_fallthru
    _

</llo_original>
